<compile_context>
chip_gen: v6e
topology: v6e:2x2x1
jax: 0.10.0
libtpu: 0.0.40
codegen_flags: <defaults>
</compile_context>

<pallas_src>
import functools
import math

import jax
import jax.numpy as jnp
from jax.experimental import pallas as pl
from jax.experimental.pallas import tpu as pltpu

F32 = jnp.float32
BF16 = jnp.bfloat16
LN_EPS = 1e-5
NEG_INF = -1e9


def _layer_norm(x, g, b):
    mu = jnp.mean(x, axis=-1, keepdims=True)
    xc = x - mu
    var = jnp.mean(xc * xc, axis=-1, keepdims=True)
    return xc * jax.lax.rsqrt(var + LN_EPS) * g + b


def _gelu(x):
    # TODO(synk): fairseq 'gelu' is the exact erf GELU; tanh approximation is
    # used since erf has no guaranteed Mosaic lowering.
    c = math.sqrt(2.0 / math.pi)
    return 0.5 * x * (1.0 + jnp.tanh(c * (x + 0.044715 * x * x * x)))


def _encoder_kernel(
    # per-graph inputs
    node_ref, pair_ref,
    # shared (layer-independent) parameters
    graph_token_ref, w_nf_ref, b_nf_ref,
    # per-head bias affine (SMEM scalars)
    hs_ref, hb_ref,
    # per-layer parameters (layer selected by the BlockSpec index_map)
    ln1_g_ref, ln1_b_ref, wqkv_ref, bqkv_ref, wo_ref, bo_ref,
    ln2_g_ref, ln2_b_ref, w1_ref, b1_ref, w2_ref, b2_ref,
    # output: stacked states [L+1, B, T_pad, D], slot 0 = embedding
    states_ref,
    # scratch
    x_sc, qkv_sc, o_sc,
    *, num_heads, head_dim, seq_len):
  step = pl.program_id(0)        # 0 = embedding, s >= 1 = encoder layer s-1
  b = pl.program_id(1)           # graph index
  t_pad, d = o_sc.shape

  # --------------------- step 0: node-feature embedding ---------------------
  # TODO(synk): real AffinCraftNodeFeature uses categorical atom encoders +
  # masif / gbscore features; approximated with a linear projection here.
  @pl.when(step == 0)
  def _embed():
    node = node_ref[0]                                           # [T, Fn] bf16
    proj = jnp.dot(node, w_nf_ref[...],
                   preferred_element_type=F32) + b_nf_ref[...]   # [T, D] f32
    row = jax.lax.broadcasted_iota(jnp.int32, (t_pad, 1), 0)
    x0 = jnp.where(row == 0, graph_token_ref[...], proj)         # token row 0
    x_sc[b] = x0
    states_ref[0, 0] = x0

  # ----------------------- step s >= 1: encoder layer -----------------------
  @pl.when(step > 0)
  def _layer():
    x = x_sc[b]                                                  # [T, D] f32

    # ---- self-attention (pre-LN); 1/sqrt(dh) folded into wq/bq in wrapper --
    h = _layer_norm(x, ln1_g_ref[0], ln1_b_ref[0]).astype(BF16)
    qkv = jnp.dot(h, wqkv_ref[0], preferred_element_type=F32) + bqkv_ref[0]
    qkv_sc[...] = qkv.astype(BF16)                               # [T, 3D]

    pair = pair_ref[0].astype(F32)                               # [T, T]
    col = jax.lax.broadcasted_iota(jnp.int32, (1, t_pad), 1)
    key_valid = col < seq_len                                    # [1, T]

    # Per-head state lives in VMEM scratch, so the unrolled loop does not
    # carry vregs across iterations.
    # TODO(synk): for very large H or long T, switch to a pl.loop over a
    # sublane-major head layout / flash-style key-block tiling.
    # TODO(synk): the per-head pair bias is layer-invariant and could be
    # hoisted to a VMEM scratch when H*T_pad^2 fits the budget.
    for hd in range(num_heads):
      lo = hd * head_dim
      hi = lo + head_dim
      qh = qkv_sc[:, lo:hi]
      kh = qkv_sc[:, d + lo:d + hi]
      vh = qkv_sc[:, 2 * d + lo:2 * d + hi]
      s = jax.lax.dot_general(qh, kh, (((1,), (1,)), ((), ())),
                              preferred_element_type=F32)        # [T, T]
      # per-head affine of the pairwise feature (approx. AffinCraftAttnBias)
      s = s + pair * hs_ref[hd] + hb_ref[hd]
      s = jnp.where(key_valid, s, NEG_INF)                       # mask pad keys
      m = jnp.max(s, axis=-1, keepdims=True)
      p = jnp.exp(s - m)
      inv = pl.reciprocal(jnp.sum(p, axis=-1, keepdims=True), approx=True)
      oh = jnp.dot(p.astype(BF16), vh, preferred_element_type=F32) * inv
      o_sc[:, lo:hi] = oh.astype(BF16)

    # single full-width output projection (contraction K = D) after the loop
    x = x + jnp.dot(o_sc[...], wo_ref[0],
                    preferred_element_type=F32) + bo_ref[0]

    # --------------------------- feed-forward -------------------------------
    hf = _layer_norm(x, ln2_g_ref[0], ln2_b_ref[0]).astype(BF16)
    hf = _gelu(jnp.dot(hf, w1_ref[0], preferred_element_type=F32) + b1_ref[0])
    hf = jnp.dot(hf.astype(BF16), w2_ref[0],
                 preferred_element_type=F32) + b2_ref[0]
    x = x + hf

    x_sc[b] = x
    states_ref[0, 0] = x


def init_params(key, *, num_layers, d, ffn, node_feat_dim, num_heads):
    ks = jax.random.split(key, 12)

    def nrm(k, shape, scale=0.02):
        return (scale * jax.random.normal(k, shape)).astype(F32)

    return {
        # node-feature encoder (approx. AffinCraftNodeFeature)
        "graph_token": nrm(ks[0], (1, d)),
        "w_nf": nrm(ks[1], (node_feat_dim, d)),
        "b_nf": jnp.zeros((1, d), F32),
        # per-layer transformer weights (stacked along leading L axis)
        "ln1_g": jnp.ones((num_layers, 1, d), F32),
        "ln1_b": jnp.zeros((num_layers, 1, d), F32),
        "wq": nrm(ks[2], (num_layers, d, d)),
        "bq": jnp.zeros((num_layers, 1, d), F32),
        "wk": nrm(ks[3], (num_layers, d, d)),
        "bk": jnp.zeros((num_layers, 1, d), F32),
        "wv": nrm(ks[4], (num_layers, d, d)),
        "bv": jnp.zeros((num_layers, 1, d), F32),
        "wo": nrm(ks[5], (num_layers, d, d)),
        "bo": jnp.zeros((num_layers, 1, d), F32),
        "ln2_g": jnp.ones((num_layers, 1, d), F32),
        "ln2_b": jnp.zeros((num_layers, 1, d), F32),
        "w1": nrm(ks[6], (num_layers, d, ffn)),
        "b1": jnp.zeros((num_layers, 1, ffn), F32),
        "w2": nrm(ks[7], (num_layers, ffn, d)),
        "b2": jnp.zeros((num_layers, 1, d), F32),
        # per-head affine of the pairwise bias (approx. AffinCraftAttnBias)
        "head_scale": nrm(ks[8], (num_heads,), scale=0.1),
        "head_bias": nrm(ks[9], (num_heads,), scale=0.1),
    }


def affincraft_graph_encoder(batched_data, params, *, num_heads, num_layers):
    node_feat = batched_data["node_feat"]                 # [B, N, Fn]
    pair_feat = batched_data["pair_feat"]                 # [B, T, T], T = N+1
    B, N, Fn = node_feat.shape
    T = N + 1
    D = params["graph_token"].shape[-1]
    FFN = params["w1"].shape[-1]
    H = num_heads
    L = num_layers
    dh = D // H
    assert D % 128 == 0 and FFN % 128 == 0, "choose lane-dense hidden dims"

    T_pad = ((T + 15) // 16) * 16          # sublane-dense token count
    Fn_pad = ((Fn + 127) // 128) * 128     # lane-dense node-feature dim

    # Node features: row 0 is a dummy slot for the graph token (filled by the
    # kernel), rows 1..N are the real node features, rest zero-padded.
    node_pad = jnp.zeros((B, T_pad, Fn_pad), BF16)
    node_pad = node_pad.at[:, 1:N + 1, :Fn].set(node_feat.astype(BF16))

    # pair bias travels as bf16 (halves DMA + VMEM); padded key columns are
    # masked in-kernel via jnp.where (mask always dominates the bias).
    pair_pad = jnp.zeros((B, T_pad, T_pad), BF16)
    pair_pad = pair_pad.at[:, :T, :T].set(pair_feat.astype(BF16))

    scaling = 1.0 / math.sqrt(dh)
    w_nf_pad = (jnp.zeros((Fn_pad, D), F32)
                .at[:Fn, :].set(params["w_nf"]).astype(BF16))

    # fused QKV projection: one [D, 3D] weight / [1, 3D] bias per layer.
    wqkv = jnp.concatenate(
        [params["wq"] * scaling, params["wk"], params["wv"]],
        axis=-1).astype(BF16)                              # [L, D, 3D]
    bqkv = jnp.concatenate(
        [params["bq"] * scaling, params["bk"], params["bv"]],
        axis=-1).astype(F32)                               # [L, 1, 3D]

    shared_weights = [
        params["graph_token"].astype(F32),                 # (1, D)
        w_nf_pad,                                          # (Fn_pad, D) bf16
        params["b_nf"].astype(F32),                        # (1, D)
    ]
    smem_weights = [
        params["head_scale"].astype(F32),                  # (H,)
        params["head_bias"].astype(F32),                   # (H,)
    ]
    layer_weights = [
        params["ln1_g"].astype(F32), params["ln1_b"].astype(F32),
        wqkv, bqkv,
        params["wo"].astype(BF16), params["bo"].astype(F32),
        params["ln2_g"].astype(F32), params["ln2_b"].astype(F32),
        params["w1"].astype(BF16), params["b1"].astype(F32),
        params["w2"].astype(BF16), params["b2"].astype(F32),
    ]

    def shared_spec(arr):
        nd = arr.ndim
        return pl.BlockSpec(arr.shape, lambda l, b, _nd=nd: (0,) * _nd)

    def layer_spec(arr):
        # step 0 is the embedding step; encoder layer l runs at grid step l+1.
        # The block index is constant over the inner batch axis -> each layer's
        # weights are DMA'd once per layer (and stay resident for B steps).
        blk = (1,) + arr.shape[1:]
        nz = arr.ndim - 1
        return pl.BlockSpec(
            blk, lambda l, b, _nz=nz: (jnp.maximum(l - 1, 0),) + (0,) * _nz)

    smem_spec = pl.BlockSpec(memory_space=pltpu.MemorySpace.SMEM)

    in_specs = (
        [pl.BlockSpec((1, T_pad, Fn_pad), lambda l, b: (b, 0, 0)),  # node feats
         pl.BlockSpec((1, T_pad, T_pad), lambda l, b: (b, 0, 0))]   # pair feats
        + [shared_spec(w) for w in shared_weights]
        + [smem_spec for _ in smem_weights]
        + [layer_spec(w) for w in layer_weights]
    )
    out_specs = pl.BlockSpec((1, 1, T_pad, D), lambda l, b: (l, b, 0, 0))
    out_shape = jax.ShapeDtypeStruct((L + 1, B, T_pad, D), F32)

    # ------------------------- explicit VMEM budget --------------------------
    blocked_in_bytes = (
        T_pad * Fn_pad * 2 + T_pad * T_pad * 2             # node + pair blocks
        + D * 4 + Fn_pad * D * 2 + D * 4                   # token, w_nf, b_nf
        + 4 * D * 4                                        # ln1/ln2 gains+biases
        + D * 3 * D * 2 + 3 * D * 4                        # wqkv, bqkv
        + D * D * 2 + D * 4                                # wo, bo
        + D * FFN * 2 + FFN * 4 + FFN * D * 2 + D * 4)     # w1, b1, w2, b2
    out_bytes = T_pad * D * 4
    scratch_bytes = B * T_pad * D * 4 + T_pad * 3 * D * 2 + T_pad * D * 2
    interm_bytes = T_pad * FFN * 4 + 4 * T_pad * T_pad * 4 + 6 * T_pad * D * 4
    est = 2 * (blocked_in_bytes + out_bytes) + scratch_bytes + interm_bytes
    try:
        vmem_cap = int(getattr(pltpu.get_tpu_info(), "vmem_capacity_bytes",
                               64 * 1024 * 1024))
    except Exception:
        vmem_cap = 64 * 1024 * 1024                        # v7x-safe fallback
    vmem_limit = int(min(max(est, 32 * 1024 * 1024), int(0.9 * vmem_cap)))

    kernel = functools.partial(_encoder_kernel, num_heads=H, head_dim=dh,
                               seq_len=T)

    states = pl.pallas_call(
        kernel,
        grid=(L + 1, B),
        in_specs=in_specs,
        out_specs=out_specs,
        out_shape=out_shape,
        scratch_shapes=[
            pltpu.VMEM((B, T_pad, D), F32),     # activations carried over layers
            pltpu.VMEM((T_pad, 3 * D), BF16),   # fused q/k/v
            pltpu.VMEM((T_pad, D), BF16),       # per-head attention outputs
        ],
        compiler_params=pltpu.CompilerParams(
            dimension_semantics=("arbitrary", "parallel"),
            vmem_limit_bytes=vmem_limit),
    )(node_pad, pair_pad, *shared_weights, *smem_weights, *layer_weights)

    # graph_rep needs no transpose: final layer, graph-token row 0.
    graph_rep = states[L, :, 0, :]                                   # [B, D]
    # single transpose to fairseq's time-first [T, B, D] convention.
    stacked = jnp.transpose(states[:, :, :T, :], (0, 2, 1, 3))       # [L+1,T,B,D]
    inner_states = [stacked[i] for i in range(L + 1)]
    return inner_states, graph_rep


if __name__ == "__main__":
    # small shapes consistent with the module (node_feat_dim = 9)
    B, N, Fn = 2, 11, 9            # batch, nodes, node feature dim
    D, FFN, H, L = 128, 256, 4, 2  # embedding, ffn, heads, encoder layers
    T = N + 1

    key = jax.random.PRNGKey(0)
    k_node, k_pair, k_params = jax.random.split(key, 3)

    node_feat = jax.random.normal(k_node, (B, N, Fn), dtype=F32)
    pair = jax.random.normal(k_pair, (B, T, T), dtype=F32)
    pair_feat = 0.5 * (pair + jnp.transpose(pair, (0, 2, 1)))  # symmetric

    params = init_params(k_params, num_layers=L, d=D, ffn=FFN,
                         node_feat_dim=Fn, num_heads=H)

    batched_data = {"node_feat": node_feat, "pair_feat": pair_feat}
    inner_states, graph_rep = affincraft_graph_encoder(
        batched_data, params, num_heads=H, num_layers=L)

    jax.block_until_ready(graph_rep)
    jax.block_until_ready(inner_states[-1])

    assert len(inner_states) == L + 1
    assert inner_states[-1].shape == (T, B, D)
    assert graph_rep.shape == (B, D)
    assert bool(jnp.all(jnp.isfinite(graph_rep)))
    assert bool(jnp.all(jnp.isfinite(inner_states[-1])))
    print("KERNEL_OK")
</pallas_src>

<mosaic_0001>
module attributes {stable_mosaic.version = 11 : i64} {
  func.func @_encoder_kernel(%arg0: i32, %arg1: i32, %arg2: memref<1x16x128xbf16, #tpu.memory_space<vmem>>, %arg3: memref<1x16x16xbf16, #tpu.memory_space<vmem>>, %arg4: memref<1x128xf32, #tpu.memory_space<vmem>>, %arg5: memref<128x128xbf16, #tpu.memory_space<vmem>>, %arg6: memref<1x128xf32, #tpu.memory_space<vmem>>, %arg7: memref<4xf32, #tpu.memory_space<smem>>, %arg8: memref<4xf32, #tpu.memory_space<smem>>, %arg9: memref<1x1x128xf32, #tpu.memory_space<vmem>>, %arg10: memref<1x1x128xf32, #tpu.memory_space<vmem>>, %arg11: memref<1x128x384xbf16, #tpu.memory_space<vmem>>, %arg12: memref<1x1x384xf32, #tpu.memory_space<vmem>>, %arg13: memref<1x128x128xbf16, #tpu.memory_space<vmem>>, %arg14: memref<1x1x128xf32, #tpu.memory_space<vmem>>, %arg15: memref<1x1x128xf32, #tpu.memory_space<vmem>>, %arg16: memref<1x1x128xf32, #tpu.memory_space<vmem>>, %arg17: memref<1x128x256xbf16, #tpu.memory_space<vmem>>, %arg18: memref<1x1x256xf32, #tpu.memory_space<vmem>>, %arg19: memref<1x256x128xbf16, #tpu.memory_space<vmem>>, %arg20: memref<1x1x128xf32, #tpu.memory_space<vmem>>, %arg21: memref<1x1x16x128xf32, #tpu.memory_space<vmem>>, %arg22: memref<2x16x128xf32, #tpu.memory_space<vmem>>, %arg23: memref<16x384xbf16, #tpu.memory_space<vmem>>, %arg24: memref<16x128xbf16, #tpu.memory_space<vmem>>) attributes {dimension_semantics = [#tpu.dimension_semantics<arbitrary>, #tpu.dimension_semantics<parallel>], iteration_bounds = array<i64: 3, 2>, scalar_prefetch = 0 : i64, scratch_operands = 3 : i64, tpu.core_type = #tpu.core_type<tc>, window_params = [{transform_indices = @transform_0, window_bounds = array<i64: 1, 16, 128>}, {transform_indices = @transform_1, window_bounds = array<i64: 1, 16, 16>}, {pipeline_mode = #tpu.pipeline_mode<synchronous>, transform_indices = @transform_2, window_bounds = array<i64: 1, 128>}, {pipeline_mode = #tpu.pipeline_mode<synchronous>, transform_indices = @transform_3, window_bounds = array<i64: 128, 128>}, {pipeline_mode = #tpu.pipeline_mode<synchronous>, transform_indices = @transform_4, window_bounds = array<i64: 1, 128>}, {transform_indices = @transform_5, window_bounds = array<i64: 4>}, {transform_indices = @transform_6, window_bounds = array<i64: 4>}, {transform_indices = @transform_7, window_bounds = array<i64: 1, 1, 128>}, {transform_indices = @transform_8, window_bounds = array<i64: 1, 1, 128>}, {transform_indices = @transform_9, window_bounds = array<i64: 1, 128, 384>}, {transform_indices = @transform_10, window_bounds = array<i64: 1, 1, 384>}, {transform_indices = @transform_11, window_bounds = array<i64: 1, 128, 128>}, {transform_indices = @transform_12, window_bounds = array<i64: 1, 1, 128>}, {transform_indices = @transform_13, window_bounds = array<i64: 1, 1, 128>}, {transform_indices = @transform_14, window_bounds = array<i64: 1, 1, 128>}, {transform_indices = @transform_15, window_bounds = array<i64: 1, 128, 256>}, {transform_indices = @transform_16, window_bounds = array<i64: 1, 1, 256>}, {transform_indices = @transform_17, window_bounds = array<i64: 1, 256, 128>}, {transform_indices = @transform_18, window_bounds = array<i64: 1, 1, 128>}, {transform_indices = @transform_19, window_bounds = array<i64: 1, 1, 16, 128>}]} {
    %c0_i32 = arith.constant 0 : i32
    %0 = arith.cmpi eq, %arg0, %c0_i32 : i32
    %1 = arith.extui %0 : i1 to i32
    %c0_i32_0 = arith.constant 0 : i32
    %2 = arith.cmpi ne, %1, %c0_i32_0 : i32
    scf.if %2 {
      %c0 = arith.constant 0 : index
      %c0_3 = arith.constant 0 : index
      %c0_4 = arith.constant 0 : index
      %6 = vector.load %arg2[%c0, %c0_3, %c0_4] : memref<1x16x128xbf16, #tpu.memory_space<vmem>>, vector<1x16x128xbf16>
      %7 = vector.shape_cast %6 : vector<1x16x128xbf16> to vector<16x128xbf16>
      %c0_5 = arith.constant 0 : index
      %c0_6 = arith.constant 0 : index
      %8 = vector.load %arg5[%c0_5, %c0_6] : memref<128x128xbf16, #tpu.memory_space<vmem>>, vector<128x128xbf16>
      %cst = arith.constant dense<0.000000e+00> : vector<16x128xf32>
      %9 = tpu.matmul %7, %8, %cst {dimension_numbers = #tpu.dot_dimension_numbers<[1], [0], [0], [1], [0, 0, 1, 1], [], []>} : vector<16x128xbf16>, vector<128x128xbf16>, vector<16x128xf32> -> vector<16x128xf32>
      %c0_7 = arith.constant 0 : index
      %c0_8 = arith.constant 0 : index
      %10 = vector.load %arg6[%c0_7, %c0_8] : memref<1x128xf32, #tpu.memory_space<vmem>>, vector<1x128xf32>
      %11 = vector.broadcast %10 : vector<1x128xf32> to vector<16x128xf32>
      %12 = arith.addf %9, %11 : vector<16x128xf32>
      %13 = tpu.iota {dimensions = array<i32: 0>} : vector<16x1xi32>
      %c0_i32_9 = arith.constant 0 : i32
      %14 = vector.broadcast %c0_i32_9 : i32 to vector<16x1xi32>
      %15 = arith.cmpi eq, %13, %14 : vector<16x1xi32>
      %c0_10 = arith.constant 0 : index
      %c0_11 = arith.constant 0 : index
      %16 = vector.load %arg4[%c0_10, %c0_11] : memref<1x128xf32, #tpu.memory_space<vmem>>, vector<1x128xf32>
      %17 = vector.shape_cast %15 : vector<16x1xi1> to vector<16x1xi1>
      %18 = vector.broadcast %17 : vector<16x1xi1> to vector<16x128xi1>
      %19 = vector.shape_cast %16 : vector<1x128xf32> to vector<1x128xf32>
      %20 = vector.broadcast %19 : vector<1x128xf32> to vector<16x128xf32>
      %21 = arith.select %18, %20, %12 : vector<16x128xi1>, vector<16x128xf32>
      %22 = arith.index_cast %arg1 : i32 to index
      %c0_12 = arith.constant 0 : index
      %c0_13 = arith.constant 0 : index
      %23 = vector.load %arg22[%22, %c0_12, %c0_13] : memref<2x16x128xf32, #tpu.memory_space<vmem>>, vector<1x16x128xf32>
      %24 = vector.shape_cast %23 : vector<1x16x128xf32> to vector<16x128xf32>
      %25 = vector.shape_cast %21 : vector<16x128xf32> to vector<1x16x128xf32>
      tpu.vector_store %arg22[%22, %c0_12, %c0_13], %25 {strides = array<i32>} : memref<2x16x128xf32, #tpu.memory_space<vmem>>, vector<1x16x128xf32>,
      %c0_14 = arith.constant 0 : index
      %c0_15 = arith.constant 0 : index
      %c0_16 = arith.constant 0 : index
      %c0_17 = arith.constant 0 : index
      %26 = vector.load %arg21[%c0_14, %c0_15, %c0_16, %c0_17] : memref<1x1x16x128xf32, #tpu.memory_space<vmem>>, vector<1x1x16x128xf32>
      %27 = vector.shape_cast %26 : vector<1x1x16x128xf32> to vector<16x128xf32>
      %28 = vector.shape_cast %21 : vector<16x128xf32> to vector<1x1x16x128xf32>
      tpu.vector_store %arg21[%c0_14, %c0_15, %c0_16, %c0_17], %28 {strides = array<i32>} : memref<1x1x16x128xf32, #tpu.memory_space<vmem>>, vector<1x1x16x128xf32>,
    } else {
    }
    %c0_i32_1 = arith.constant 0 : i32
    %3 = arith.cmpi sgt, %arg0, %c0_i32_1 : i32
    %4 = arith.extui %3 : i1 to i32
    %c0_i32_2 = arith.constant 0 : i32
    %5 = arith.cmpi ne, %4, %c0_i32_2 : i32
    scf.if %5 {
      %6 = arith.index_cast %arg1 : i32 to index
      %c0 = arith.constant 0 : index
      %c0_3 = arith.constant 0 : index
      %7 = vector.load %arg22[%6, %c0, %c0_3] : memref<2x16x128xf32, #tpu.memory_space<vmem>>, vector<1x16x128xf32>
      %8 = vector.shape_cast %7 : vector<1x16x128xf32> to vector<16x128xf32>
      %c0_4 = arith.constant 0 : index
      %c0_5 = arith.constant 0 : index
      %c0_6 = arith.constant 0 : index
      %9 = vector.load %arg9[%c0_4, %c0_5, %c0_6] : memref<1x1x128xf32, #tpu.memory_space<vmem>>, vector<1x1x128xf32>
      %10 = vector.shape_cast %9 : vector<1x1x128xf32> to vector<1x128xf32>
      %c0_7 = arith.constant 0 : index
      %c0_8 = arith.constant 0 : index
      %c0_9 = arith.constant 0 : index
      %11 = vector.load %arg10[%c0_7, %c0_8, %c0_9] : memref<1x1x128xf32, #tpu.memory_space<vmem>>, vector<1x1x128xf32>
      %12 = vector.shape_cast %11 : vector<1x1x128xf32> to vector<1x128xf32>
      %cst = arith.constant dense<0.000000e+00> : vector<16xf32>
      %13 = vector.multi_reduction <add>, %8, %cst [1] : vector<16x128xf32> to vector<16xf32>
      %14 = vector.shape_cast %13 : vector<16xf32> to vector<16x1xf32>
      %cst_10 = arith.constant 1.280000e+02 : f32
      %15 = vector.broadcast %cst_10 : f32 to vector<16x1xf32>
      %16 = arith.divf %14, %15 : vector<16x1xf32>
      %17 = vector.broadcast %16 : vector<16x1xf32> to vector<16x128xf32>
      %18 = arith.subf %8, %17 : vector<16x128xf32>
      %19 = arith.mulf %18, %18 : vector<16x128xf32>
      %cst_11 = arith.constant dense<0.000000e+00> : vector<16xf32>
      %20 = vector.multi_reduction <add>, %19, %cst_11 [1] : vector<16x128xf32> to vector<16xf32>
      %21 = vector.shape_cast %20 : vector<16xf32> to vector<16x1xf32>
      %cst_12 = arith.constant 1.280000e+02 : f32
      %22 = vector.broadcast %cst_12 : f32 to vector<16x1xf32>
      %23 = arith.divf %21, %22 : vector<16x1xf32>
      %cst_13 = arith.constant 9.99999974E-6 : f32
      %24 = vector.broadcast %cst_13 : f32 to vector<16x1xf32>
      %25 = arith.addf %23, %24 : vector<16x1xf32>
      %26 = math.rsqrt %25 : vector<16x1xf32>
      %27 = vector.broadcast %26 : vector<16x1xf32> to vector<16x128xf32>
      %28 = arith.mulf %18, %27 : vector<16x128xf32>
      %29 = vector.broadcast %10 : vector<1x128xf32> to vector<16x128xf32>
      %30 = arith.mulf %28, %29 : vector<16x128xf32>
      %31 = vector.broadcast %12 : vector<1x128xf32> to vector<16x128xf32>
      %32 = arith.addf %30, %31 : vector<16x128xf32>
      %33 = arith.truncf %32 : vector<16x128xf32> to vector<16x128xbf16>
      %c0_14 = arith.constant 0 : index
      %c0_15 = arith.constant 0 : index
      %c0_16 = arith.constant 0 : index
      %34 = vector.load %arg11[%c0_14, %c0_15, %c0_16] : memref<1x128x384xbf16, #tpu.memory_space<vmem>>, vector<1x128x384xbf16>
      %35 = vector.shape_cast %34 : vector<1x128x384xbf16> to vector<128x384xbf16>
      %cst_17 = arith.constant dense<0.000000e+00> : vector<16x384xf32>
      %36 = tpu.matmul %33, %35, %cst_17 {dimension_numbers = #tpu.dot_dimension_numbers<[1], [0], [0], [1], [0, 0, 1, 1], [], []>} : vector<16x128xbf16>, vector<128x384xbf16>, vector<16x384xf32> -> vector<16x384xf32>
      %c0_18 = arith.constant 0 : index
      %c0_19 = arith.constant 0 : index
      %c0_20 = arith.constant 0 : index
      %37 = vector.load %arg12[%c0_18, %c0_19, %c0_20] : memref<1x1x384xf32, #tpu.memory_space<vmem>>, vector<1x1x384xf32>
      %38 = vector.shape_cast %37 : vector<1x1x384xf32> to vector<1x384xf32>
      %39 = vector.broadcast %38 : vector<1x384xf32> to vector<16x384xf32>
      %40 = arith.addf %36, %39 : vector<16x384xf32>
      %41 = arith.truncf %40 : vector<16x384xf32> to vector<16x384xbf16>
      %c0_21 = arith.constant 0 : index
      %c0_22 = arith.constant 0 : index
      %42 = vector.load %arg23[%c0_21, %c0_22] : memref<16x384xbf16, #tpu.memory_space<vmem>>, vector<16x384xbf16>
      tpu.vector_store %arg23[%c0_21, %c0_22], %41 {strides = array<i32>} : memref<16x384xbf16, #tpu.memory_space<vmem>>, vector<16x384xbf16>,
      %c0_23 = arith.constant 0 : index
      %c0_24 = arith.constant 0 : index
      %c0_25 = arith.constant 0 : index
      %43 = vector.load %arg3[%c0_23, %c0_24, %c0_25] : memref<1x16x16xbf16, #tpu.memory_space<vmem>>, vector<1x16x16xbf16>
      %44 = vector.shape_cast %43 : vector<1x16x16xbf16> to vector<16x16xbf16>
      %45 = arith.extf %44 : vector<16x16xbf16> to vector<16x16xf32>
      %46 = tpu.iota {dimensions = array<i32: 1>} : vector<1x16xi32>
      %c12_i32 = arith.constant 12 : i32
      %47 = vector.broadcast %c12_i32 : i32 to vector<1x16xi32>
      %48 = arith.cmpi slt, %46, %47 : vector<1x16xi32>
      %c0_26 = arith.constant 0 : index
      %c0_27 = arith.constant 0 : index
      %49 = vector.load %arg23[%c0_26, %c0_27] : memref<16x384xbf16, #tpu.memory_space<vmem>>, vector<16x32xbf16>
      %c0_28 = arith.constant 0 : index
      %c128 = arith.constant 128 : index
      %50 = vector.load %arg23[%c0_28, %c128] : memref<16x384xbf16, #tpu.memory_space<vmem>>, vector<16x32xbf16>
      %c0_29 = arith.constant 0 : index
      %c256 = arith.constant 256 : index
      %51 = vector.load %arg23[%c0_29, %c256] : memref<16x384xbf16, #tpu.memory_space<vmem>>, vector<16x32xbf16>
      %cst_30 = arith.constant dense<0.000000e+00> : vector<16x16xf32>
      %52 = tpu.matmul %49, %50, %cst_30 {dimension_numbers = #tpu.dot_dimension_numbers<[1], [1], [0], [0], [0, 0, 1, 0], [], []>} : vector<16x32xbf16>, vector<16x32xbf16>, vector<16x16xf32> -> vector<16x16xf32>
      %c0_31 = arith.constant 0 : index
      %53 = memref.load %arg7[%c0_31] : memref<4xf32, #tpu.memory_space<smem>>
      %54 = vector.broadcast %53 : f32 to vector<16x16xf32>
      %55 = arith.mulf %45, %54 : vector<16x16xf32>
      %56 = arith.addf %52, %55 : vector<16x16xf32>
      %c0_32 = arith.constant 0 : index
      %57 = memref.load %arg8[%c0_32] : memref<4xf32, #tpu.memory_space<smem>>
      %58 = vector.broadcast %57 : f32 to vector<16x16xf32>
      %59 = arith.addf %56, %58 : vector<16x16xf32>
      %cst_33 = arith.constant -1.000000e+09 : f32
      %60 = vector.shape_cast %48 : vector<1x16xi1> to vector<1x16xi1>
      %61 = vector.broadcast %60 : vector<1x16xi1> to vector<16x16xi1>
      %62 = vector.broadcast %cst_33 : f32 to vector<16x16xf32>
      %63 = arith.select %61, %59, %62 : vector<16x16xi1>, vector<16x16xf32>
      %cst_34 = arith.constant dense<0xFF800000> : vector<16xf32>
      %64 = vector.multi_reduction <maximumf>, %63, %cst_34 [1] : vector<16x16xf32> to vector<16xf32>
      %65 = vector.shape_cast %64 : vector<16xf32> to vector<16x1xf32>
      %66 = vector.broadcast %65 : vector<16x1xf32> to vector<16x16xf32>
      %67 = arith.subf %63, %66 : vector<16x16xf32>
      %68 = math.exp %67 : vector<16x16xf32>
      %cst_35 = arith.constant dense<0.000000e+00> : vector<16xf32>
      %69 = vector.multi_reduction <add>, %68, %cst_35 [1] : vector<16x16xf32> to vector<16xf32>
      %70 = vector.shape_cast %69 : vector<16xf32> to vector<16x1xf32>
      %71 = tpu.reciprocal %70 {approx = true} : vector<16x1xf32> -> vector<16x1xf32>
      %72 = arith.truncf %68 : vector<16x16xf32> to vector<16x16xbf16>
      %cst_36 = arith.constant dense<0.000000e+00> : vector<16x32xf32>
      %73 = tpu.matmul %72, %51, %cst_36 {dimension_numbers = #tpu.dot_dimension_numbers<[1], [0], [0], [1], [0, 0, 1, 1], [], []>} : vector<16x16xbf16>, vector<16x32xbf16>, vector<16x32xf32> -> vector<16x32xf32>
      %74 = vector.broadcast %71 : vector<16x1xf32> to vector<16x32xf32>
      %75 = arith.mulf %73, %74 : vector<16x32xf32>
      %76 = arith.truncf %75 : vector<16x32xf32> to vector<16x32xbf16>
      %c0_37 = arith.constant 0 : index
      %c0_38 = arith.constant 0 : index
      %77 = vector.load %arg24[%c0_37, %c0_38] : memref<16x128xbf16, #tpu.memory_space<vmem>>, vector<16x32xbf16>
      tpu.vector_store %arg24[%c0_37, %c0_38], %76 {strides = array<i32>} : memref<16x128xbf16, #tpu.memory_space<vmem>>, vector<16x32xbf16>,
      %c0_39 = arith.constant 0 : index
      %c32 = arith.constant 32 : index
      %78 = vector.load %arg23[%c0_39, %c32] : memref<16x384xbf16, #tpu.memory_space<vmem>>, vector<16x32xbf16>
      %c0_40 = arith.constant 0 : index
      %c160 = arith.constant 160 : index
      %79 = vector.load %arg23[%c0_40, %c160] : memref<16x384xbf16, #tpu.memory_space<vmem>>, vector<16x32xbf16>
      %c0_41 = arith.constant 0 : index
      %c288 = arith.constant 288 : index
      %80 = vector.load %arg23[%c0_41, %c288] : memref<16x384xbf16, #tpu.memory_space<vmem>>, vector<16x32xbf16>
      %cst_42 = arith.constant dense<0.000000e+00> : vector<16x16xf32>
      %81 = tpu.matmul %78, %79, %cst_42 {dimension_numbers = #tpu.dot_dimension_numbers<[1], [1], [0], [0], [0, 0, 1, 0], [], []>} : vector<16x32xbf16>, vector<16x32xbf16>, vector<16x16xf32> -> vector<16x16xf32>
      %c1 = arith.constant 1 : index
      %82 = memref.load %arg7[%c1] : memref<4xf32, #tpu.memory_space<smem>>
      %83 = vector.broadcast %82 : f32 to vector<16x16xf32>
      %84 = arith.mulf %45, %83 : vector<16x16xf32>
      %85 = arith.addf %81, %84 : vector<16x16xf32>
      %c1_43 = arith.constant 1 : index
      %86 = memref.load %arg8[%c1_43] : memref<4xf32, #tpu.memory_space<smem>>
      %87 = vector.broadcast %86 : f32 to vector<16x16xf32>
      %88 = arith.addf %85, %87 : vector<16x16xf32>
      %cst_44 = arith.constant -1.000000e+09 : f32
      %89 = vector.shape_cast %48 : vector<1x16xi1> to vector<1x16xi1>
      %90 = vector.broadcast %89 : vector<1x16xi1> to vector<16x16xi1>
      %91 = vector.broadcast %cst_44 : f32 to vector<16x16xf32>
      %92 = arith.select %90, %88, %91 : vector<16x16xi1>, vector<16x16xf32>
      %cst_45 = arith.constant dense<0xFF800000> : vector<16xf32>
      %93 = vector.multi_reduction <maximumf>, %92, %cst_45 [1] : vector<16x16xf32> to vector<16xf32>
      %94 = vector.shape_cast %93 : vector<16xf32> to vector<16x1xf32>
      %95 = vector.broadcast %94 : vector<16x1xf32> to vector<16x16xf32>
      %96 = arith.subf %92, %95 : vector<16x16xf32>
      %97 = math.exp %96 : vector<16x16xf32>
      %cst_46 = arith.constant dense<0.000000e+00> : vector<16xf32>
      %98 = vector.multi_reduction <add>, %97, %cst_46 [1] : vector<16x16xf32> to vector<16xf32>
      %99 = vector.shape_cast %98 : vector<16xf32> to vector<16x1xf32>
      %100 = tpu.reciprocal %99 {approx = true} : vector<16x1xf32> -> vector<16x1xf32>
      %101 = arith.truncf %97 : vector<16x16xf32> to vector<16x16xbf16>
      %cst_47 = arith.constant dense<0.000000e+00> : vector<16x32xf32>
      %102 = tpu.matmul %101, %80, %cst_47 {dimension_numbers = #tpu.dot_dimension_numbers<[1], [0], [0], [1], [0, 0, 1, 1], [], []>} : vector<16x16xbf16>, vector<16x32xbf16>, vector<16x32xf32> -> vector<16x32xf32>
      %103 = vector.broadcast %100 : vector<16x1xf32> to vector<16x32xf32>
      %104 = arith.mulf %102, %103 : vector<16x32xf32>
      %105 = arith.truncf %104 : vector<16x32xf32> to vector<16x32xbf16>
      %c0_48 = arith.constant 0 : index
      %c32_49 = arith.constant 32 : index
      %106 = vector.load %arg24[%c0_48, %c32_49] : memref<16x128xbf16, #tpu.memory_space<vmem>>, vector<16x32xbf16>
      tpu.vector_store %arg24[%c0_48, %c32_49], %105 {strides = array<i32>} : memref<16x128xbf16, #tpu.memory_space<vmem>>, vector<16x32xbf16>,
      %c0_50 = arith.constant 0 : index
      %c64 = arith.constant 64 : index
      %107 = vector.load %arg23[%c0_50, %c64] : memref<16x384xbf16, #tpu.memory_space<vmem>>, vector<16x32xbf16>
      %c0_51 = arith.constant 0 : index
      %c192 = arith.constant 192 : index
      %108 = vector.load %arg23[%c0_51, %c192] : memref<16x384xbf16, #tpu.memory_space<vmem>>, vector<16x32xbf16>
      %c0_52 = arith.constant 0 : index
      %c320 = arith.constant 320 : index
      %109 = vector.load %arg23[%c0_52, %c320] : memref<16x384xbf16, #tpu.memory_space<vmem>>, vector<16x32xbf16>
      %cst_53 = arith.constant dense<0.000000e+00> : vector<16x16xf32>
      %110 = tpu.matmul %107, %108, %cst_53 {dimension_numbers = #tpu.dot_dimension_numbers<[1], [1], [0], [0], [0, 0, 1, 0], [], []>} : vector<16x32xbf16>, vector<16x32xbf16>, vector<16x16xf32> -> vector<16x16xf32>
      %c2 = arith.constant 2 : index
      %111 = memref.load %arg7[%c2] : memref<4xf32, #tpu.memory_space<smem>>
      %112 = vector.broadcast %111 : f32 to vector<16x16xf32>
      %113 = arith.mulf %45, %112 : vector<16x16xf32>
      %114 = arith.addf %110, %113 : vector<16x16xf32>
      %c2_54 = arith.constant 2 : index
      %115 = memref.load %arg8[%c2_54] : memref<4xf32, #tpu.memory_space<smem>>
      %116 = vector.broadcast %115 : f32 to vector<16x16xf32>
      %117 = arith.addf %114, %116 : vector<16x16xf32>
      %cst_55 = arith.constant -1.000000e+09 : f32
      %118 = vector.shape_cast %48 : vector<1x16xi1> to vector<1x16xi1>
      %119 = vector.broadcast %118 : vector<1x16xi1> to vector<16x16xi1>
      %120 = vector.broadcast %cst_55 : f32 to vector<16x16xf32>
      %121 = arith.select %119, %117, %120 : vector<16x16xi1>, vector<16x16xf32>
      %cst_56 = arith.constant dense<0xFF800000> : vector<16xf32>
      %122 = vector.multi_reduction <maximumf>, %121, %cst_56 [1] : vector<16x16xf32> to vector<16xf32>
      %123 = vector.shape_cast %122 : vector<16xf32> to vector<16x1xf32>
      %124 = vector.broadcast %123 : vector<16x1xf32> to vector<16x16xf32>
      %125 = arith.subf %121, %124 : vector<16x16xf32>
      %126 = math.exp %125 : vector<16x16xf32>
      %cst_57 = arith.constant dense<0.000000e+00> : vector<16xf32>
      %127 = vector.multi_reduction <add>, %126, %cst_57 [1] : vector<16x16xf32> to vector<16xf32>
      %128 = vector.shape_cast %127 : vector<16xf32> to vector<16x1xf32>
      %129 = tpu.reciprocal %128 {approx = true} : vector<16x1xf32> -> vector<16x1xf32>
      %130 = arith.truncf %126 : vector<16x16xf32> to vector<16x16xbf16>
      %cst_58 = arith.constant dense<0.000000e+00> : vector<16x32xf32>
      %131 = tpu.matmul %130, %109, %cst_58 {dimension_numbers = #tpu.dot_dimension_numbers<[1], [0], [0], [1], [0, 0, 1, 1], [], []>} : vector<16x16xbf16>, vector<16x32xbf16>, vector<16x32xf32> -> vector<16x32xf32>
      %132 = vector.broadcast %129 : vector<16x1xf32> to vector<16x32xf32>
      %133 = arith.mulf %131, %132 : vector<16x32xf32>
      %134 = arith.truncf %133 : vector<16x32xf32> to vector<16x32xbf16>
      %c0_59 = arith.constant 0 : index
      %c64_60 = arith.constant 64 : index
      %135 = vector.load %arg24[%c0_59, %c64_60] : memref<16x128xbf16, #tpu.memory_space<vmem>>, vector<16x32xbf16>
      tpu.vector_store %arg24[%c0_59, %c64_60], %134 {strides = array<i32>} : memref<16x128xbf16, #tpu.memory_space<vmem>>, vector<16x32xbf16>,
      %c0_61 = arith.constant 0 : index
      %c96 = arith.constant 96 : index
      %136 = vector.load %arg23[%c0_61, %c96] : memref<16x384xbf16, #tpu.memory_space<vmem>>, vector<16x32xbf16>
      %c0_62 = arith.constant 0 : index
      %c224 = arith.constant 224 : index
      %137 = vector.load %arg23[%c0_62, %c224] : memref<16x384xbf16, #tpu.memory_space<vmem>>, vector<16x32xbf16>
      %c0_63 = arith.constant 0 : index
      %c352 = arith.constant 352 : index
      %138 = vector.load %arg23[%c0_63, %c352] : memref<16x384xbf16, #tpu.memory_space<vmem>>, vector<16x32xbf16>
      %cst_64 = arith.constant dense<0.000000e+00> : vector<16x16xf32>
      %139 = tpu.matmul %136, %137, %cst_64 {dimension_numbers = #tpu.dot_dimension_numbers<[1], [1], [0], [0], [0, 0, 1, 0], [], []>} : vector<16x32xbf16>, vector<16x32xbf16>, vector<16x16xf32> -> vector<16x16xf32>
      %c3 = arith.constant 3 : index
      %140 = memref.load %arg7[%c3] : memref<4xf32, #tpu.memory_space<smem>>
      %141 = vector.broadcast %140 : f32 to vector<16x16xf32>
      %142 = arith.mulf %45, %141 : vector<16x16xf32>
      %143 = arith.addf %139, %142 : vector<16x16xf32>
      %c3_65 = arith.constant 3 : index
      %144 = memref.load %arg8[%c3_65] : memref<4xf32, #tpu.memory_space<smem>>
      %145 = vector.broadcast %144 : f32 to vector<16x16xf32>
      %146 = arith.addf %143, %145 : vector<16x16xf32>
      %cst_66 = arith.constant -1.000000e+09 : f32
      %147 = vector.shape_cast %48 : vector<1x16xi1> to vector<1x16xi1>
      %148 = vector.broadcast %147 : vector<1x16xi1> to vector<16x16xi1>
      %149 = vector.broadcast %cst_66 : f32 to vector<16x16xf32>
      %150 = arith.select %148, %146, %149 : vector<16x16xi1>, vector<16x16xf32>
      %cst_67 = arith.constant dense<0xFF800000> : vector<16xf32>
      %151 = vector.multi_reduction <maximumf>, %150, %cst_67 [1] : vector<16x16xf32> to vector<16xf32>
      %152 = vector.shape_cast %151 : vector<16xf32> to vector<16x1xf32>
      %153 = vector.broadcast %152 : vector<16x1xf32> to vector<16x16xf32>
      %154 = arith.subf %150, %153 : vector<16x16xf32>
      %155 = math.exp %154 : vector<16x16xf32>
      %cst_68 = arith.constant dense<0.000000e+00> : vector<16xf32>
      %156 = vector.multi_reduction <add>, %155, %cst_68 [1] : vector<16x16xf32> to vector<16xf32>
      %157 = vector.shape_cast %156 : vector<16xf32> to vector<16x1xf32>
      %158 = tpu.reciprocal %157 {approx = true} : vector<16x1xf32> -> vector<16x1xf32>
      %159 = arith.truncf %155 : vector<16x16xf32> to vector<16x16xbf16>
      %cst_69 = arith.constant dense<0.000000e+00> : vector<16x32xf32>
      %160 = tpu.matmul %159, %138, %cst_69 {dimension_numbers = #tpu.dot_dimension_numbers<[1], [0], [0], [1], [0, 0, 1, 1], [], []>} : vector<16x16xbf16>, vector<16x32xbf16>, vector<16x32xf32> -> vector<16x32xf32>
      %161 = vector.broadcast %158 : vector<16x1xf32> to vector<16x32xf32>
      %162 = arith.mulf %160, %161 : vector<16x32xf32>
      %163 = arith.truncf %162 : vector<16x32xf32> to vector<16x32xbf16>
      %c0_70 = arith.constant 0 : index
      %c96_71 = arith.constant 96 : index
      %164 = vector.load %arg24[%c0_70, %c96_71] : memref<16x128xbf16, #tpu.memory_space<vmem>>, vector<16x32xbf16>
      tpu.vector_store %arg24[%c0_70, %c96_71], %163 {strides = array<i32>} : memref<16x128xbf16, #tpu.memory_space<vmem>>, vector<16x32xbf16>,
      %c0_72 = arith.constant 0 : index
      %c0_73 = arith.constant 0 : index
      %165 = vector.load %arg24[%c0_72, %c0_73] : memref<16x128xbf16, #tpu.memory_space<vmem>>, vector<16x128xbf16>
      %c0_74 = arith.constant 0 : index
      %c0_75 = arith.constant 0 : index
      %c0_76 = arith.constant 0 : index
      %166 = vector.load %arg13[%c0_74, %c0_75, %c0_76] : memref<1x128x128xbf16, #tpu.memory_space<vmem>>, vector<1x128x128xbf16>
      %167 = vector.shape_cast %166 : vector<1x128x128xbf16> to vector<128x128xbf16>
      %cst_77 = arith.constant dense<0.000000e+00> : vector<16x128xf32>
      %168 = tpu.matmul %165, %167, %cst_77 {dimension_numbers = #tpu.dot_dimension_numbers<[1], [0], [0], [1], [0, 0, 1, 1], [], []>} : vector<16x128xbf16>, vector<128x128xbf16>, vector<16x128xf32> -> vector<16x128xf32>
      %169 = arith.addf %8, %168 : vector<16x128xf32>
      %c0_78 = arith.constant 0 : index
      %c0_79 = arith.constant 0 : index
      %c0_80 = arith.constant 0 : index
      %170 = vector.load %arg14[%c0_78, %c0_79, %c0_80] : memref<1x1x128xf32, #tpu.memory_space<vmem>>, vector<1x1x128xf32>
      %171 = vector.shape_cast %170 : vector<1x1x128xf32> to vector<1x128xf32>
      %172 = vector.broadcast %171 : vector<1x128xf32> to vector<16x128xf32>
      %173 = arith.addf %169, %172 : vector<16x128xf32>
      %c0_81 = arith.constant 0 : index
      %c0_82 = arith.constant 0 : index
      %c0_83 = arith.constant 0 : index
      %174 = vector.load %arg15[%c0_81, %c0_82, %c0_83] : memref<1x1x128xf32, #tpu.memory_space<vmem>>, vector<1x1x128xf32>
      %175 = vector.shape_cast %174 : vector<1x1x128xf32> to vector<1x128xf32>
      %c0_84 = arith.constant 0 : index
      %c0_85 = arith.constant 0 : index
      %c0_86 = arith.constant 0 : index
      %176 = vector.load %arg16[%c0_84, %c0_85, %c0_86] : memref<1x1x128xf32, #tpu.memory_space<vmem>>, vector<1x1x128xf32>
      %177 = vector.shape_cast %176 : vector<1x1x128xf32> to vector<1x128xf32>
      %cst_87 = arith.constant dense<0.000000e+00> : vector<16xf32>
      %178 = vector.multi_reduction <add>, %173, %cst_87 [1] : vector<16x128xf32> to vector<16xf32>
      %179 = vector.shape_cast %178 : vector<16xf32> to vector<16x1xf32>
      %cst_88 = arith.constant 1.280000e+02 : f32
      %180 = vector.broadcast %cst_88 : f32 to vector<16x1xf32>
      %181 = arith.divf %179, %180 : vector<16x1xf32>
      %182 = vector.broadcast %181 : vector<16x1xf32> to vector<16x128xf32>
      %183 = arith.subf %173, %182 : vector<16x128xf32>
      %184 = arith.mulf %183, %183 : vector<16x128xf32>
      %cst_89 = arith.constant dense<0.000000e+00> : vector<16xf32>
      %185 = vector.multi_reduction <add>, %184, %cst_89 [1] : vector<16x128xf32> to vector<16xf32>
      %186 = vector.shape_cast %185 : vector<16xf32> to vector<16x1xf32>
      %cst_90 = arith.constant 1.280000e+02 : f32
      %187 = vector.broadcast %cst_90 : f32 to vector<16x1xf32>
      %188 = arith.divf %186, %187 : vector<16x1xf32>
      %cst_91 = arith.constant 9.99999974E-6 : f32
      %189 = vector.broadcast %cst_91 : f32 to vector<16x1xf32>
      %190 = arith.addf %188, %189 : vector<16x1xf32>
      %191 = math.rsqrt %190 : vector<16x1xf32>
      %192 = vector.broadcast %191 : vector<16x1xf32> to vector<16x128xf32>
      %193 = arith.mulf %183, %192 : vector<16x128xf32>
      %194 = vector.broadcast %175 : vector<1x128xf32> to vector<16x128xf32>
      %195 = arith.mulf %193, %194 : vector<16x128xf32>
      %196 = vector.broadcast %177 : vector<1x128xf32> to vector<16x128xf32>
      %197 = arith.addf %195, %196 : vector<16x128xf32>
      %198 = arith.truncf %197 : vector<16x128xf32> to vector<16x128xbf16>
      %c0_92 = arith.constant 0 : index
      %c0_93 = arith.constant 0 : index
      %c0_94 = arith.constant 0 : index
      %199 = vector.load %arg17[%c0_92, %c0_93, %c0_94] : memref<1x128x256xbf16, #tpu.memory_space<vmem>>, vector<1x128x256xbf16>
      %200 = vector.shape_cast %199 : vector<1x128x256xbf16> to vector<128x256xbf16>
      %cst_95 = arith.constant dense<0.000000e+00> : vector<16x256xf32>
      %201 = tpu.matmul %198, %200, %cst_95 {dimension_numbers = #tpu.dot_dimension_numbers<[1], [0], [0], [1], [0, 0, 1, 1], [], []>} : vector<16x128xbf16>, vector<128x256xbf16>, vector<16x256xf32> -> vector<16x256xf32>
      %c0_96 = arith.constant 0 : index
      %c0_97 = arith.constant 0 : index
      %c0_98 = arith.constant 0 : index
      %202 = vector.load %arg18[%c0_96, %c0_97, %c0_98] : memref<1x1x256xf32, #tpu.memory_space<vmem>>, vector<1x1x256xf32>
      %203 = vector.shape_cast %202 : vector<1x1x256xf32> to vector<1x256xf32>
      %204 = vector.broadcast %203 : vector<1x256xf32> to vector<16x256xf32>
      %205 = arith.addf %201, %204 : vector<16x256xf32>
      %cst_99 = arith.constant 5.000000e-01 : f32
      %206 = vector.broadcast %cst_99 : f32 to vector<16x256xf32>
      %207 = arith.mulf %206, %205 : vector<16x256xf32>
      %cst_100 = arith.constant 4.471500e-02 : f32
      %208 = vector.broadcast %cst_100 : f32 to vector<16x256xf32>
      %209 = arith.mulf %208, %205 : vector<16x256xf32>
      %210 = arith.mulf %209, %205 : vector<16x256xf32>
      %211 = arith.mulf %210, %205 : vector<16x256xf32>
      %212 = arith.addf %205, %211 : vector<16x256xf32>
      %cst_101 = arith.constant 0.797884583 : f32
      %213 = vector.broadcast %cst_101 : f32 to vector<16x256xf32>
      %214 = arith.mulf %213, %212 : vector<16x256xf32>
      %215 = math.tanh %214 : vector<16x256xf32>
      %cst_102 = arith.constant 1.000000e+00 : f32
      %216 = vector.broadcast %cst_102 : f32 to vector<16x256xf32>
      %217 = arith.addf %216, %215 : vector<16x256xf32>
      %218 = arith.mulf %207, %217 : vector<16x256xf32>
      %219 = arith.truncf %218 : vector<16x256xf32> to vector<16x256xbf16>
      %c0_103 = arith.constant 0 : index
      %c0_104 = arith.constant 0 : index
      %c0_105 = arith.constant 0 : index
      %220 = vector.load %arg19[%c0_103, %c0_104, %c0_105] : memref<1x256x128xbf16, #tpu.memory_space<vmem>>, vector<1x256x128xbf16>
      %221 = vector.shape_cast %220 : vector<1x256x128xbf16> to vector<256x128xbf16>
      %cst_106 = arith.constant dense<0.000000e+00> : vector<16x128xf32>
      %222 = tpu.matmul %219, %221, %cst_106 {dimension_numbers = #tpu.dot_dimension_numbers<[1], [0], [0], [1], [0, 0, 1, 1], [], []>} : vector<16x256xbf16>, vector<256x128xbf16>, vector<16x128xf32> -> vector<16x128xf32>
      %c0_107 = arith.constant 0 : index
      %c0_108 = arith.constant 0 : index
      %c0_109 = arith.constant 0 : index
      %223 = vector.load %arg20[%c0_107, %c0_108, %c0_109] : memref<1x1x128xf32, #tpu.memory_space<vmem>>, vector<1x1x128xf32>
      %224 = vector.shape_cast %223 : vector<1x1x128xf32> to vector<1x128xf32>
      %225 = vector.broadcast %224 : vector<1x128xf32> to vector<16x128xf32>
      %226 = arith.addf %222, %225 : vector<16x128xf32>
      %227 = arith.addf %173, %226 : vector<16x128xf32>
      %228 = arith.index_cast %arg1 : i32 to index
      %c0_110 = arith.constant 0 : index
      %c0_111 = arith.constant 0 : index
      %229 = vector.load %arg22[%228, %c0_110, %c0_111] : memref<2x16x128xf32, #tpu.memory_space<vmem>>, vector<1x16x128xf32>
      %230 = vector.shape_cast %229 : vector<1x16x128xf32> to vector<16x128xf32>
      %231 = vector.shape_cast %227 : vector<16x128xf32> to vector<1x16x128xf32>
      tpu.vector_store %arg22[%228, %c0_110, %c0_111], %231 {strides = array<i32>} : memref<2x16x128xf32, #tpu.memory_space<vmem>>, vector<1x16x128xf32>,
      %c0_112 = arith.constant 0 : index
      %c0_113 = arith.constant 0 : index
      %c0_114 = arith.constant 0 : index
      %c0_115 = arith.constant 0 : index
      %232 = vector.load %arg21[%c0_112, %c0_113, %c0_114, %c0_115] : memref<1x1x16x128xf32, #tpu.memory_space<vmem>>, vector<1x1x16x128xf32>
      %233 = vector.shape_cast %232 : vector<1x1x16x128xf32> to vector<16x128xf32>
      %234 = vector.shape_cast %227 : vector<16x128xf32> to vector<1x1x16x128xf32>
      tpu.vector_store %arg21[%c0_112, %c0_113, %c0_114, %c0_115], %234 {strides = array<i32>} : memref<1x1x16x128xf32, #tpu.memory_space<vmem>>, vector<1x1x16x128xf32>,
    } else {
    }
    return
  }
  func.func @transform_0(%arg0: i32, %arg1: i32) -> (i32, i32, i32) {
    %c0_i32 = arith.constant 0 : i32
    %c0_i32_0 = arith.constant 0 : i32
    %c0_i32_1 = arith.constant 0 : i32
    return %arg1, %c0_i32, %c0_i32_0 : i32, i32, i32
  }
  func.func @transform_1(%arg0: i32, %arg1: i32) -> (i32, i32, i32) {
    %c0_i32 = arith.constant 0 : i32
    %c0_i32_0 = arith.constant 0 : i32
    %c0_i32_1 = arith.constant 0 : i32
    return %arg1, %c0_i32, %c0_i32_0 : i32, i32, i32
  }
  func.func @transform_2(%arg0: i32, %arg1: i32) -> (i32, i32) {
    %c0_i32 = arith.constant 0 : i32
    %c0_i32_0 = arith.constant 0 : i32
    %c0_i32_1 = arith.constant 0 : i32
    return %c0_i32, %c0_i32_0 : i32, i32
  }
  func.func @transform_3(%arg0: i32, %arg1: i32) -> (i32, i32) {
    %c0_i32 = arith.constant 0 : i32
    %c0_i32_0 = arith.constant 0 : i32
    %c0_i32_1 = arith.constant 0 : i32
    return %c0_i32, %c0_i32_0 : i32, i32
  }
  func.func @transform_4(%arg0: i32, %arg1: i32) -> (i32, i32) {
    %c0_i32 = arith.constant 0 : i32
    %c0_i32_0 = arith.constant 0 : i32
    %c0_i32_1 = arith.constant 0 : i32
    return %c0_i32, %c0_i32_0 : i32, i32
  }
  func.func @transform_5(%arg0: i32, %arg1: i32) -> i32 {
    %c0_i32 = arith.constant 0 : i32
    %c0_i32_0 = arith.constant 0 : i32
    return %c0_i32 : i32
  }
  func.func @transform_6(%arg0: i32, %arg1: i32) -> i32 {
    %c0_i32 = arith.constant 0 : i32
    %c0_i32_0 = arith.constant 0 : i32
    return %c0_i32 : i32
  }
  func.func @transform_7(%arg0: i32, %arg1: i32) -> (i32, i32, i32) {
    %c1_i32 = arith.constant 1 : i32
    %0 = arith.subi %arg0, %c1_i32 : i32
    %c0_i32 = arith.constant 0 : i32
    %1 = arith.maxsi %0, %c0_i32 : i32
    %c0_i32_0 = arith.constant 0 : i32
    %c0_i32_1 = arith.constant 0 : i32
    %c0_i32_2 = arith.constant 0 : i32
    return %1, %c0_i32_0, %c0_i32_1 : i32, i32, i32
  }
  func.func @transform_8(%arg0: i32, %arg1: i32) -> (i32, i32, i32) {
    %c1_i32 = arith.constant 1 : i32
    %0 = arith.subi %arg0, %c1_i32 : i32
    %c0_i32 = arith.constant 0 : i32
    %1 = arith.maxsi %0, %c0_i32 : i32
    %c0_i32_0 = arith.constant 0 : i32
    %c0_i32_1 = arith.constant 0 : i32
    %c0_i32_2 = arith.constant 0 : i32
    return %1, %c0_i32_0, %c0_i32_1 : i32, i32, i32
  }
  func.func @transform_9(%arg0: i32, %arg1: i32) -> (i32, i32, i32) {
    %c1_i32 = arith.constant 1 : i32
    %0 = arith.subi %arg0, %c1_i32 : i32
    %c0_i32 = arith.constant 0 : i32
    %1 = arith.maxsi %0, %c0_i32 : i32
    %c0_i32_0 = arith.constant 0 : i32
    %c0_i32_1 = arith.constant 0 : i32
    %c0_i32_2 = arith.constant 0 : i32
    return %1, %c0_i32_0, %c0_i32_1 : i32, i32, i32
  }
  func.func @transform_10(%arg0: i32, %arg1: i32) -> (i32, i32, i32) {
    %c1_i32 = arith.constant 1 : i32
    %0 = arith.subi %arg0, %c1_i32 : i32
    %c0_i32 = arith.constant 0 : i32
    %1 = arith.maxsi %0, %c0_i32 : i32
    %c0_i32_0 = arith.constant 0 : i32
    %c0_i32_1 = arith.constant 0 : i32
    %c0_i32_2 = arith.constant 0 : i32
    return %1, %c0_i32_0, %c0_i32_1 : i32, i32, i32
  }
  func.func @transform_11(%arg0: i32, %arg1: i32) -> (i32, i32, i32) {
    %c1_i32 = arith.constant 1 : i32
    %0 = arith.subi %arg0, %c1_i32 : i32
    %c0_i32 = arith.constant 0 : i32
    %1 = arith.maxsi %0, %c0_i32 : i32
    %c0_i32_0 = arith.constant 0 : i32
    %c0_i32_1 = arith.constant 0 : i32
    %c0_i32_2 = arith.constant 0 : i32
    return %1, %c0_i32_0, %c0_i32_1 : i32, i32, i32
  }
  func.func @transform_12(%arg0: i32, %arg1: i32) -> (i32, i32, i32) {
    %c1_i32 = arith.constant 1 : i32
    %0 = arith.subi %arg0, %c1_i32 : i32
    %c0_i32 = arith.constant 0 : i32
    %1 = arith.maxsi %0, %c0_i32 : i32
    %c0_i32_0 = arith.constant 0 : i32
    %c0_i32_1 = arith.constant 0 : i32
    %c0_i32_2 = arith.constant 0 : i32
    return %1, %c0_i32_0, %c0_i32_1 : i32, i32, i32
  }
  func.func @transform_13(%arg0: i32, %arg1: i32) -> (i32, i32, i32) {
    %c1_i32 = arith.constant 1 : i32
    %0 = arith.subi %arg0, %c1_i32 : i32
    %c0_i32 = arith.constant 0 : i32
    %1 = arith.maxsi %0, %c0_i32 : i32
    %c0_i32_0 = arith.constant 0 : i32
    %c0_i32_1 = arith.constant 0 : i32
    %c0_i32_2 = arith.constant 0 : i32
    return %1, %c0_i32_0, %c0_i32_1 : i32, i32, i32
  }
  func.func @transform_14(%arg0: i32, %arg1: i32) -> (i32, i32, i32) {
    %c1_i32 = arith.constant 1 : i32
    %0 = arith.subi %arg0, %c1_i32 : i32
    %c0_i32 = arith.constant 0 : i32
    %1 = arith.maxsi %0, %c0_i32 : i32
    %c0_i32_0 = arith.constant 0 : i32
    %c0_i32_1 = arith.constant 0 : i32
    %c0_i32_2 = arith.constant 0 : i32
    return %1, %c0_i32_0, %c0_i32_1 : i32, i32, i32
  }
  func.func @transform_15(%arg0: i32, %arg1: i32) -> (i32, i32, i32) {
    %c1_i32 = arith.constant 1 : i32
    %0 = arith.subi %arg0, %c1_i32 : i32
    %c0_i32 = arith.constant 0 : i32
    %1 = arith.maxsi %0, %c0_i32 : i32
    %c0_i32_0 = arith.constant 0 : i32
    %c0_i32_1 = arith.constant 0 : i32
    %c0_i32_2 = arith.constant 0 : i32
    return %1, %c0_i32_0, %c0_i32_1 : i32, i32, i32
  }
  func.func @transform_16(%arg0: i32, %arg1: i32) -> (i32, i32, i32) {
    %c1_i32 = arith.constant 1 : i32
    %0 = arith.subi %arg0, %c1_i32 : i32
    %c0_i32 = arith.constant 0 : i32
    %1 = arith.maxsi %0, %c0_i32 : i32
    %c0_i32_0 = arith.constant 0 : i32
    %c0_i32_1 = arith.constant 0 : i32
    %c0_i32_2 = arith.constant 0 : i32
    return %1, %c0_i32_0, %c0_i32_1 : i32, i32, i32
  }
  func.func @transform_17(%arg0: i32, %arg1: i32) -> (i32, i32, i32) {
    %c1_i32 = arith.constant 1 : i32
    %0 = arith.subi %arg0, %c1_i32 : i32
    %c0_i32 = arith.constant 0 : i32
    %1 = arith.maxsi %0, %c0_i32 : i32
    %c0_i32_0 = arith.constant 0 : i32
    %c0_i32_1 = arith.constant 0 : i32
    %c0_i32_2 = arith.constant 0 : i32
    return %1, %c0_i32_0, %c0_i32_1 : i32, i32, i32
  }
  func.func @transform_18(%arg0: i32, %arg1: i32) -> (i32, i32, i32) {
    %c1_i32 = arith.constant 1 : i32
    %0 = arith.subi %arg0, %c1_i32 : i32
    %c0_i32 = arith.constant 0 : i32
    %1 = arith.maxsi %0, %c0_i32 : i32
    %c0_i32_0 = arith.constant 0 : i32
    %c0_i32_1 = arith.constant 0 : i32
    %c0_i32_2 = arith.constant 0 : i32
    return %1, %c0_i32_0, %c0_i32_1 : i32, i32, i32
  }
  func.func @transform_19(%arg0: i32, %arg1: i32) -> (i32, i32, i32, i32) {
    %c0_i32 = arith.constant 0 : i32
    %c0_i32_0 = arith.constant 0 : i32
    %c0_i32_1 = arith.constant 0 : i32
    return %arg0, %arg1, %c0_i32, %c0_i32_0 : i32, i32, i32, i32
  }
}

</mosaic_0001>

<llo_original>
// kernel: tpu_custom_call.1
$region0: #{tpu_custom_call.1}
  #allocation0 [shape = 'u32[]', space=smem, size = 0x4, offset = 0x4, fixed_abs, tag = 'smem constant byte address 0x4 - core index']
  #allocation1 [shape = 'u32[144,128]{1,0:T(1,128)}', space=vmem, size = 0x12000, scoped, tag = 'internal scratch']
  #allocation2 [shape = 'f32[2,16,128]{2,1,0:T(8,128)}', space=vmem, size = 0x4000, scoped, tag = 'scratch operand']
  #allocation3 [shape = 'bf16[16,384]{1,0:T(8,128)(2,1)}', space=vmem, size = 0x3000, scoped, tag = 'scratch operand']
  #allocation4 [shape = 'bf16[16,128]{1,0:T(8,128)(2,1)}', space=vmem, size = 0x1000, scoped, tag = 'scratch operand']
  %s0 = inlined_call_operand.hbm [shape: bf16[2,16,128], index: 0, kind: input, shape index: {}]
  %s1 = inlined_call_operand.hbm [shape: bf16[2,16,16], index: 1, kind: input, shape index: {}]
  %s2 = inlined_call_operand.hbm [shape: f32[1,128], index: 2, kind: input, shape index: {}]
  %s3 = inlined_call_operand.hbm [shape: bf16[128,128], index: 3, kind: input, shape index: {}]
  %s4 = inlined_call_operand.hbm [shape: f32[1,128], index: 4, kind: input, shape index: {}]
  %s5 = inlined_call_operand.hbm [shape: f32[4], index: 5, kind: input, shape index: {}]
  %s6 = inlined_call_operand.hbm [shape: f32[4], index: 6, kind: input, shape index: {}]
  %s7 = inlined_call_operand.vmem [shape: f32[2,1,128], index: 7, kind: input, shape index: {}]
  %s8 = inlined_call_operand.vmem [shape: f32[2,1,128], index: 8, kind: input, shape index: {}]
  %s9 = inlined_call_operand.hbm [shape: bf16[2,128,384], index: 9, kind: input, shape index: {}]
  %s10 = inlined_call_operand.vmem [shape: f32[2,1,384], index: 10, kind: input, shape index: {}]
  %s11 = inlined_call_operand.hbm [shape: bf16[2,128,128], index: 11, kind: input, shape index: {}]
  %s12 = inlined_call_operand.vmem [shape: f32[2,1,128], index: 12, kind: input, shape index: {}]
  %s13 = inlined_call_operand.vmem [shape: f32[2,1,128], index: 13, kind: input, shape index: {}]
  %s14 = inlined_call_operand.vmem [shape: f32[2,1,128], index: 14, kind: input, shape index: {}]
  %s15 = inlined_call_operand.hbm [shape: bf16[2,128,256], index: 15, kind: input, shape index: {}]
  %s16 = inlined_call_operand.vmem [shape: f32[2,1,256], index: 16, kind: input, shape index: {}]
  %s17 = inlined_call_operand.hbm [shape: bf16[2,256,128], index: 17, kind: input, shape index: {}]
  %s18 = inlined_call_operand.vmem [shape: f32[2,1,128], index: 18, kind: input, shape index: {}]
  %s19 = inlined_call_operand.hbm [shape: f32[3,2,16,128], index: 19, kind: output, shape index: {}]
  %s20 = sld [smem:[#allocation0]]
  $region161: #{tpu_custom_call.1} parent=0
    _
  %s22 = ssub.s32 1, %s20
  %s23 = scalar_select 0, %s22, %s20
  $region1: #{tpu_custom_call.1} parent=0
    #allocation5 [shape = 'u8[8192]{0}', space=vmem, size = 0x2000, scoped, tag = 'input window, operand 0']
    #allocation6 [shape = 's32[2]{0}', space=sflag, size = 0x8, scoped, tag = 'scoped memory for tpu_custom_call.1']
    #allocation7 [shape = 's32[2]{0}', space=sflag, size = 0x8, scoped, tag = 'scoped memory for tpu_custom_call.1']
    #allocation8 [shape = 's32[2]{0}', space=sflag, size = 0x8, scoped, tag = 'scoped memory for tpu_custom_call.1']
    #allocation9 [shape = 'u8[8192]{0}', space=vmem, size = 0x2000, scoped, tag = 'input window, operand 1']
    #allocation10 [shape = 's32[2]{0}', space=sflag, size = 0x8, scoped, tag = 'scoped memory for tpu_custom_call.1']
    #allocation11 [shape = 'u8[512]{0}', space=vmem, size = 0x400, scoped, tag = 'input window, operand 2, single buffered']
    #allocation12 [shape = 'u8[32768]{0}', space=vmem, size = 0x8000, scoped, tag = 'input window, operand 3, single buffered']
    #allocation13 [shape = 's32[1]{0}', space=sflag, size = 0x4, scoped, tag = 'scoped memory for tpu_custom_call.1']
    #allocation14 [shape = 'u8[512]{0}', space=vmem, size = 0x400, scoped, tag = 'input window, operand 4, single buffered']
    #allocation15 [shape = 'u8[512]{0}', space=smem, size = 0x200, scoped, tag = 'input window, operand 5, single buffered']
    #allocation16 [shape = 'u8[512]{0}', space=smem, size = 0x200, scoped, tag = 'input window, operand 6, single buffered']
    #allocation17 [shape = 's32[1]{0}', space=sflag, size = 0x4, scoped, tag = 'scoped memory for tpu_custom_call.1']
    #allocation18 [shape = 'u8[196608]{0}', space=vmem, size = 0x30000, scoped, tag = 'input window, operand 9']
    #allocation19 [shape = 's32[2]{0}', space=sflag, size = 0x8, scoped, tag = 'scoped memory for tpu_custom_call.1']
    #allocation20 [shape = 'u8[65536]{0}', space=vmem, size = 0x10000, scoped, tag = 'input window, operand 11']
    #allocation21 [shape = 'u8[131072]{0}', space=vmem, size = 0x20000, scoped, tag = 'input window, operand 15']
    #allocation22 [shape = 's32[2]{0}', space=sflag, size = 0x8, scoped, tag = 'scoped memory for tpu_custom_call.1']
    #allocation23 [shape = 'u8[131072]{0}', space=vmem, size = 0x20000, scoped, tag = 'input window, operand 17']
    #allocation24 [shape = 'u8[16384]{0}', space=vmem, size = 0x4000, scoped, tag = 'output window, operand 0']
    %24 = vsyncpa [#allocation6], 0
    %s25 = scalar_lea.sflag [#allocation6], 1
    %26 = vsyncpa %s25, 0
    %27 = vsyncpa [#allocation10], 0
    %s28 = scalar_lea.sflag [#allocation10], 1
    %29 = vsyncpa %s28, 0
    %30 = vsyncpa [#allocation13], 0
    %31 = vsyncpa [#allocation8], 0
    %32 = vsyncpa [#allocation17], 0
    %33 = vsyncpa [#allocation19], 0
    %s34 = scalar_lea.sflag [#allocation19], 1
    %35 = vsyncpa %s34, 0
    %36 = vsyncpa [#allocation22], 0
    %s37 = scalar_lea.sflag [#allocation22], 1
    %38 = vsyncpa %s37, 0
    %39 = vsyncpa [#allocation7], 0
    %s40 = scalar_lea.sflag [#allocation7], 1
    %41 = vsyncpa %s40, 0
    loop: start=0, step=1, limit=8
    $region2: #{tpu_custom_call.1} parent=1 // loop_pre_header
      _
    $region3: #{tpu_custom_call.1} parent=1 // loop_header
      %s43 = sphi 0, %s47
      %p44 = scmp.ge.s32.totalorder %s43, 8
      %s50 = sphi 0, %s62
      %s51 = sphi 0, %s58
      %s52 = sphi 0, %s50
      %s53 = sphi 0, %s51
      %s54 = sphi 0, %s52
      %s55 = sphi 0, %s53
      %s65 = sphi 0, %s67
      %s68 = sphi 0, %s65
      %s69 = sphi 0, %s68
      %s85 = sphi 0, %s69
      %s91 = sphi 0, %s93
      %s94 = sphi 0, %s91
      %s95 = sphi 0, %s94
      %s111 = sphi 0, %s95
      %s115 = sphi 0, %s115
      %s117 = sphi 0, %s115
      %s118 = sphi 0, %s117
      %s132 = sphi 0, %s118
      %s136 = sphi 0, %s136
      %s138 = sphi 0, %s136
      %s139 = sphi 0, %s138
      %s153 = sphi 0, %s139
      %s157 = sphi 0, %s157
      %s159 = sphi 0, %s157
      %s160 = sphi 0, %s159
      %s174 = sphi 0, %s160
      %s178 = sphi 0, %s178
      %s180 = sphi 0, %s178
      %s181 = sphi 0, %s180
      %s195 = sphi 0, %s181
      %s199 = sphi 0, %s199
      %s201 = sphi 0, %s199
      %s202 = sphi 0, %s201
      %s216 = sphi 0, %s202
      %s228 = sphi 0, %s230
      %s231 = sphi 0, %s228
      %s232 = sphi 0, %s231
      %s248 = sphi 0, %s232
      %s260 = sphi 0, %s262
      %s263 = sphi 0, %s260
      %s264 = sphi 0, %s263
      %s280 = sphi 0, %s264
      %s292 = sphi 0, %s294
      %s295 = sphi 0, %s292
      %s296 = sphi 0, %s295
      %s312 = sphi 0, %s296
      %s324 = sphi 0, %s326
      %s327 = sphi 0, %s324
      %s328 = sphi 0, %s327
      %s344 = sphi 0, %s328
      %s356 = sphi 0, %s358
      %s359 = sphi 0, %s356
      %s360 = sphi 0, %s359
      %s376 = sphi 0, %s360
      %s388 = sphi 0, %s390
      %s391 = sphi 0, %s388
      %s392 = sphi 0, %s391
      %s408 = sphi 0, %s392
      %s420 = sphi 0, %s422
      %s423 = sphi 0, %s420
      %s424 = sphi 0, %s423
      %s440 = sphi 0, %s424
      %s452 = sphi 0, %s454
      %s455 = sphi 0, %s452
      %s456 = sphi 0, %s455
      %s472 = sphi 0, %s456
      %s484 = sphi 0, %s486
      %s487 = sphi 0, %s484
      %s488 = sphi 0, %s487
      %s504 = sphi 0, %s488
      %s516 = sphi 0, %s518
      %s519 = sphi 0, %s516
      %s520 = sphi 0, %s519
      %s536 = sphi 0, %s520
      %s548 = sphi 0, %s550
      %s551 = sphi 0, %s548
      %s552 = sphi 0, %s551
      %s568 = sphi 0, %s552
      %s580 = sphi 0, %s582
      %s583 = sphi 0, %s580
      %s584 = sphi 0, %s583
      %s600 = sphi 0, %s584
      %s608 = sphi 0, %s610
      %s611 = sphi 0, %s608
      %s612 = sphi 0, %s611
      %s628 = sphi 0, %s612
    $region4: #{tpu_custom_call.1} parent=1 // loop_header_branch
      %46 = sbr.rel (%p44) target = $region8
    $region5: #{tpu_custom_call.1} parent=1 // loop_body
      %s48 = ssub.s32 %s43, 1
      %s49 = ssub.s32 %s43, 2
      %s56 = sadd.s32 1, %s51
      %p57 = scmp.ge.s32.totalorder %s56, 2
      %s58 = scalar_select %p57, 0, %s56
      %s59 = sadd.s32 1, %s50
      %s60 = scalar_select %p57, %s59, %s50
      %p61 = scmp.ge.s32.totalorder %s60, 3
      %s62 = scalar_select %p61, 0, %s60
      %s63 = ssub.s32 %s51, %s58
      %p64 = scmp.eq.s32.totalorder %s63, 0
      %s66 = sadd.s32 %s65, 1
      %s67 = scalar_select %p64, %s65, %s66
      %p70 = pneg %p64
      %p71 = scmp.eq.s32.totalorder %s43, 5
      %p72 = por %p70, %p71
      %p73 = scmp.ne.s32.totalorder %s65, %s68
      %p74 = scmp.eq.s32.totalorder %s43, 0
      %p75 = por %p73, %p74
      %p76 = scmp.ne.s32.totalorder %s65, %s68
      %p77 = scmp.eq.s32.totalorder %s48, 5
      %p78 = por %p76, %p77
      %p79 = scmp.ne.s32.totalorder %s68, %s69
      %p80 = scmp.eq.s32.totalorder %s48, 0
      %p81 = por %p79, %p80
      %p82 = scmp.ne.s32.totalorder %s68, %s69
      %p83 = scmp.eq.s32.totalorder %s49, 5
      %p84 = por %p82, %p83
      %p86 = scmp.ne.s32.totalorder %s69, %s85
      %p87 = scmp.eq.s32.totalorder %s49, 0
      %p88 = por %p86, %p87
      %s89 = ssub.s32 %s51, %s58
      %p90 = scmp.eq.s32.totalorder %s89, 0
      %s92 = sadd.s32 %s91, 1
      %s93 = scalar_select %p90, %s91, %s92
      %p96 = pneg %p90
      %p97 = scmp.eq.s32.totalorder %s43, 5
      %p98 = por %p96, %p97
      %p99 = scmp.ne.s32.totalorder %s91, %s94
      %p100 = scmp.eq.s32.totalorder %s43, 0
      %p101 = por %p99, %p100
      %p102 = scmp.ne.s32.totalorder %s91, %s94
      %p103 = scmp.eq.s32.totalorder %s48, 5
      %p104 = por %p102, %p103
      %p105 = scmp.ne.s32.totalorder %s94, %s95
      %p106 = scmp.eq.s32.totalorder %s48, 0
      %p107 = por %p105, %p106
      %p108 = scmp.ne.s32.totalorder %s94, %s95
      %p109 = scmp.eq.s32.totalorder %s49, 5
      %p110 = por %p108, %p109
      %p112 = scmp.ne.s32.totalorder %s95, %s111
      %p113 = scmp.eq.s32.totalorder %s49, 0
      %p114 = por %p112, %p113
      %s116 = sadd.s32 %s115, 1
      %p119 = scmp.eq.s32.totalorder %s43, 5
      %p120 = scmp.ne.s32.totalorder %s115, %s117
      %p121 = scmp.eq.s32.totalorder %s43, 0
      %p122 = por %p120, %p121
      %p123 = scmp.ne.s32.totalorder %s115, %s117
      %p124 = scmp.eq.s32.totalorder %s48, 5
      %p125 = por %p123, %p124
      %p126 = scmp.ne.s32.totalorder %s117, %s118
      %p127 = scmp.eq.s32.totalorder %s48, 0
      %p128 = por %p126, %p127
      %p129 = scmp.ne.s32.totalorder %s117, %s118
      %p130 = scmp.eq.s32.totalorder %s49, 5
      %p131 = por %p129, %p130
      %p133 = scmp.ne.s32.totalorder %s118, %s132
      %p134 = scmp.eq.s32.totalorder %s49, 0
      %p135 = por %p133, %p134
      %s137 = sadd.s32 %s136, 1
      %p140 = scmp.eq.s32.totalorder %s43, 5
      %p141 = scmp.ne.s32.totalorder %s136, %s138
      %p142 = scmp.eq.s32.totalorder %s43, 0
      %p143 = por %p141, %p142
      %p144 = scmp.ne.s32.totalorder %s136, %s138
      %p145 = scmp.eq.s32.totalorder %s48, 5
      %p146 = por %p144, %p145
      %p147 = scmp.ne.s32.totalorder %s138, %s139
      %p148 = scmp.eq.s32.totalorder %s48, 0
      %p149 = por %p147, %p148
      %p150 = scmp.ne.s32.totalorder %s138, %s139
      %p151 = scmp.eq.s32.totalorder %s49, 5
      %p152 = por %p150, %p151
      %p154 = scmp.ne.s32.totalorder %s139, %s153
      %p155 = scmp.eq.s32.totalorder %s49, 0
      %p156 = por %p154, %p155
      %s158 = sadd.s32 %s157, 1
      %p161 = scmp.eq.s32.totalorder %s43, 5
      %p162 = scmp.ne.s32.totalorder %s157, %s159
      %p163 = scmp.eq.s32.totalorder %s43, 0
      %p164 = por %p162, %p163
      %p165 = scmp.ne.s32.totalorder %s157, %s159
      %p166 = scmp.eq.s32.totalorder %s48, 5
      %p167 = por %p165, %p166
      %p168 = scmp.ne.s32.totalorder %s159, %s160
      %p169 = scmp.eq.s32.totalorder %s48, 0
      %p170 = por %p168, %p169
      %p171 = scmp.ne.s32.totalorder %s159, %s160
      %p172 = scmp.eq.s32.totalorder %s49, 5
      %p173 = por %p171, %p172
      %p175 = scmp.ne.s32.totalorder %s160, %s174
      %p176 = scmp.eq.s32.totalorder %s49, 0
      %p177 = por %p175, %p176
      %s179 = sadd.s32 %s178, 1
      %p182 = scmp.eq.s32.totalorder %s43, 5
      %p183 = scmp.ne.s32.totalorder %s178, %s180
      %p184 = scmp.eq.s32.totalorder %s43, 0
      %p185 = por %p183, %p184
      %p186 = scmp.ne.s32.totalorder %s178, %s180
      %p187 = scmp.eq.s32.totalorder %s48, 5
      %p188 = por %p186, %p187
      %p189 = scmp.ne.s32.totalorder %s180, %s181
      %p190 = scmp.eq.s32.totalorder %s48, 0
      %p191 = por %p189, %p190
      %p192 = scmp.ne.s32.totalorder %s180, %s181
      %p193 = scmp.eq.s32.totalorder %s49, 5
      %p194 = por %p192, %p193
      %p196 = scmp.ne.s32.totalorder %s181, %s195
      %p197 = scmp.eq.s32.totalorder %s49, 0
      %p198 = por %p196, %p197
      %s200 = sadd.s32 %s199, 1
      %p203 = scmp.eq.s32.totalorder %s43, 5
      %p204 = scmp.ne.s32.totalorder %s199, %s201
      %p205 = scmp.eq.s32.totalorder %s43, 0
      %p206 = por %p204, %p205
      %p207 = scmp.ne.s32.totalorder %s199, %s201
      %p208 = scmp.eq.s32.totalorder %s48, 5
      %p209 = por %p207, %p208
      %p210 = scmp.ne.s32.totalorder %s201, %s202
      %p211 = scmp.eq.s32.totalorder %s48, 0
      %p212 = por %p210, %p211
      %p213 = scmp.ne.s32.totalorder %s201, %s202
      %p214 = scmp.eq.s32.totalorder %s49, 5
      %p215 = por %p213, %p214
      %p217 = scmp.ne.s32.totalorder %s202, %s216
      %p218 = scmp.eq.s32.totalorder %s49, 0
      %p219 = por %p217, %p218
      %s220 = ssub.s32 %s50, 1
      %p221 = scmp.gt.s32.totalorder %s220, 0
      %s222 = scalar_select %p221, %s220, 0
      %s223 = ssub.s32 %s62, 1
      %p224 = scmp.gt.s32.totalorder %s223, 0
      %s225 = scalar_select %p224, %s223, 0
      %s226 = ssub.s32 %s222, %s225
      %p227 = scmp.eq.s32.totalorder %s226, 0
      %s229 = sadd.s32 %s228, 1
      %s230 = scalar_select %p227, %s228, %s229
      %p233 = pneg %p227
      %p234 = scmp.eq.s32.totalorder %s43, 5
      %p235 = por %p233, %p234
      %p236 = scmp.ne.s32.totalorder %s228, %s231
      %p237 = scmp.eq.s32.totalorder %s43, 0
      %p238 = por %p236, %p237
      %p239 = scmp.ne.s32.totalorder %s228, %s231
      %p240 = scmp.eq.s32.totalorder %s48, 5
      %p241 = por %p239, %p240
      %p242 = scmp.ne.s32.totalorder %s231, %s232
      %p243 = scmp.eq.s32.totalorder %s48, 0
      %p244 = por %p242, %p243
      %p245 = scmp.ne.s32.totalorder %s231, %s232
      %p246 = scmp.eq.s32.totalorder %s49, 5
      %p247 = por %p245, %p246
      %p249 = scmp.ne.s32.totalorder %s232, %s248
      %p250 = scmp.eq.s32.totalorder %s49, 0
      %p251 = por %p249, %p250
      %s252 = ssub.s32 %s50, 1
      %p253 = scmp.gt.s32.totalorder %s252, 0
      %s254 = scalar_select %p253, %s252, 0
      %s255 = ssub.s32 %s62, 1
      %p256 = scmp.gt.s32.totalorder %s255, 0
      %s257 = scalar_select %p256, %s255, 0
      %s258 = ssub.s32 %s254, %s257
      %p259 = scmp.eq.s32.totalorder %s258, 0
      %s261 = sadd.s32 %s260, 1
      %s262 = scalar_select %p259, %s260, %s261
      %p265 = pneg %p259
      %p266 = scmp.eq.s32.totalorder %s43, 5
      %p267 = por %p265, %p266
      %p268 = scmp.ne.s32.totalorder %s260, %s263
      %p269 = scmp.eq.s32.totalorder %s43, 0
      %p270 = por %p268, %p269
      %p271 = scmp.ne.s32.totalorder %s260, %s263
      %p272 = scmp.eq.s32.totalorder %s48, 5
      %p273 = por %p271, %p272
      %p274 = scmp.ne.s32.totalorder %s263, %s264
      %p275 = scmp.eq.s32.totalorder %s48, 0
      %p276 = por %p274, %p275
      %p277 = scmp.ne.s32.totalorder %s263, %s264
      %p278 = scmp.eq.s32.totalorder %s49, 5
      %p279 = por %p277, %p278
      %p281 = scmp.ne.s32.totalorder %s264, %s280
      %p282 = scmp.eq.s32.totalorder %s49, 0
      %p283 = por %p281, %p282
      %s284 = ssub.s32 %s50, 1
      %p285 = scmp.gt.s32.totalorder %s284, 0
      %s286 = scalar_select %p285, %s284, 0
      %s287 = ssub.s32 %s62, 1
      %p288 = scmp.gt.s32.totalorder %s287, 0
      %s289 = scalar_select %p288, %s287, 0
      %s290 = ssub.s32 %s286, %s289
      %p291 = scmp.eq.s32.totalorder %s290, 0
      %s293 = sadd.s32 %s292, 1
      %s294 = scalar_select %p291, %s292, %s293
      %p297 = pneg %p291
      %p298 = scmp.eq.s32.totalorder %s43, 5
      %p299 = por %p297, %p298
      %p300 = scmp.ne.s32.totalorder %s292, %s295
      %p301 = scmp.eq.s32.totalorder %s43, 0
      %p302 = por %p300, %p301
      %p303 = scmp.ne.s32.totalorder %s292, %s295
      %p304 = scmp.eq.s32.totalorder %s48, 5
      %p305 = por %p303, %p304
      %p306 = scmp.ne.s32.totalorder %s295, %s296
      %p307 = scmp.eq.s32.totalorder %s48, 0
      %p308 = por %p306, %p307
      %p309 = scmp.ne.s32.totalorder %s295, %s296
      %p310 = scmp.eq.s32.totalorder %s49, 5
      %p311 = por %p309, %p310
      %p313 = scmp.ne.s32.totalorder %s296, %s312
      %p314 = scmp.eq.s32.totalorder %s49, 0
      %p315 = por %p313, %p314
      %s316 = ssub.s32 %s50, 1
      %p317 = scmp.gt.s32.totalorder %s316, 0
      %s318 = scalar_select %p317, %s316, 0
      %s319 = ssub.s32 %s62, 1
      %p320 = scmp.gt.s32.totalorder %s319, 0
      %s321 = scalar_select %p320, %s319, 0
      %s322 = ssub.s32 %s318, %s321
      %p323 = scmp.eq.s32.totalorder %s322, 0
      %s325 = sadd.s32 %s324, 1
      %s326 = scalar_select %p323, %s324, %s325
      %p329 = pneg %p323
      %p330 = scmp.eq.s32.totalorder %s43, 5
      %p331 = por %p329, %p330
      %p332 = scmp.ne.s32.totalorder %s324, %s327
      %p333 = scmp.eq.s32.totalorder %s43, 0
      %p334 = por %p332, %p333
      %p335 = scmp.ne.s32.totalorder %s324, %s327
      %p336 = scmp.eq.s32.totalorder %s48, 5
      %p337 = por %p335, %p336
      %p338 = scmp.ne.s32.totalorder %s327, %s328
      %p339 = scmp.eq.s32.totalorder %s48, 0
      %p340 = por %p338, %p339
      %p341 = scmp.ne.s32.totalorder %s327, %s328
      %p342 = scmp.eq.s32.totalorder %s49, 5
      %p343 = por %p341, %p342
      %p345 = scmp.ne.s32.totalorder %s328, %s344
      %p346 = scmp.eq.s32.totalorder %s49, 0
      %p347 = por %p345, %p346
      %s348 = ssub.s32 %s50, 1
      %p349 = scmp.gt.s32.totalorder %s348, 0
      %s350 = scalar_select %p349, %s348, 0
      %s351 = ssub.s32 %s62, 1
      %p352 = scmp.gt.s32.totalorder %s351, 0
      %s353 = scalar_select %p352, %s351, 0
      %s354 = ssub.s32 %s350, %s353
      %p355 = scmp.eq.s32.totalorder %s354, 0
      %s357 = sadd.s32 %s356, 1
      %s358 = scalar_select %p355, %s356, %s357
      %p361 = pneg %p355
      %p362 = scmp.eq.s32.totalorder %s43, 5
      %p363 = por %p361, %p362
      %p364 = scmp.ne.s32.totalorder %s356, %s359
      %p365 = scmp.eq.s32.totalorder %s43, 0
      %p366 = por %p364, %p365
      %p367 = scmp.ne.s32.totalorder %s356, %s359
      %p368 = scmp.eq.s32.totalorder %s48, 5
      %p369 = por %p367, %p368
      %p370 = scmp.ne.s32.totalorder %s359, %s360
      %p371 = scmp.eq.s32.totalorder %s48, 0
      %p372 = por %p370, %p371
      %p373 = scmp.ne.s32.totalorder %s359, %s360
      %p374 = scmp.eq.s32.totalorder %s49, 5
      %p375 = por %p373, %p374
      %p377 = scmp.ne.s32.totalorder %s360, %s376
      %p378 = scmp.eq.s32.totalorder %s49, 0
      %p379 = por %p377, %p378
      %s380 = ssub.s32 %s50, 1
      %p381 = scmp.gt.s32.totalorder %s380, 0
      %s382 = scalar_select %p381, %s380, 0
      %s383 = ssub.s32 %s62, 1
      %p384 = scmp.gt.s32.totalorder %s383, 0
      %s385 = scalar_select %p384, %s383, 0
      %s386 = ssub.s32 %s382, %s385
      %p387 = scmp.eq.s32.totalorder %s386, 0
      %s389 = sadd.s32 %s388, 1
      %s390 = scalar_select %p387, %s388, %s389
      %p393 = pneg %p387
      %p394 = scmp.eq.s32.totalorder %s43, 5
      %p395 = por %p393, %p394
      %p396 = scmp.ne.s32.totalorder %s388, %s391
      %p397 = scmp.eq.s32.totalorder %s43, 0
      %p398 = por %p396, %p397
      %p399 = scmp.ne.s32.totalorder %s388, %s391
      %p400 = scmp.eq.s32.totalorder %s48, 5
      %p401 = por %p399, %p400
      %p402 = scmp.ne.s32.totalorder %s391, %s392
      %p403 = scmp.eq.s32.totalorder %s48, 0
      %p404 = por %p402, %p403
      %p405 = scmp.ne.s32.totalorder %s391, %s392
      %p406 = scmp.eq.s32.totalorder %s49, 5
      %p407 = por %p405, %p406
      %p409 = scmp.ne.s32.totalorder %s392, %s408
      %p410 = scmp.eq.s32.totalorder %s49, 0
      %p411 = por %p409, %p410
      %s412 = ssub.s32 %s50, 1
      %p413 = scmp.gt.s32.totalorder %s412, 0
      %s414 = scalar_select %p413, %s412, 0
      %s415 = ssub.s32 %s62, 1
      %p416 = scmp.gt.s32.totalorder %s415, 0
      %s417 = scalar_select %p416, %s415, 0
      %s418 = ssub.s32 %s414, %s417
      %p419 = scmp.eq.s32.totalorder %s418, 0
      %s421 = sadd.s32 %s420, 1
      %s422 = scalar_select %p419, %s420, %s421
      %p425 = pneg %p419
      %p426 = scmp.eq.s32.totalorder %s43, 5
      %p427 = por %p425, %p426
      %p428 = scmp.ne.s32.totalorder %s420, %s423
      %p429 = scmp.eq.s32.totalorder %s43, 0
      %p430 = por %p428, %p429
      %p431 = scmp.ne.s32.totalorder %s420, %s423
      %p432 = scmp.eq.s32.totalorder %s48, 5
      %p433 = por %p431, %p432
      %p434 = scmp.ne.s32.totalorder %s423, %s424
      %p435 = scmp.eq.s32.totalorder %s48, 0
      %p436 = por %p434, %p435
      %p437 = scmp.ne.s32.totalorder %s423, %s424
      %p438 = scmp.eq.s32.totalorder %s49, 5
      %p439 = por %p437, %p438
      %p441 = scmp.ne.s32.totalorder %s424, %s440
      %p442 = scmp.eq.s32.totalorder %s49, 0
      %p443 = por %p441, %p442
      %s444 = ssub.s32 %s50, 1
      %p445 = scmp.gt.s32.totalorder %s444, 0
      %s446 = scalar_select %p445, %s444, 0
      %s447 = ssub.s32 %s62, 1
      %p448 = scmp.gt.s32.totalorder %s447, 0
      %s449 = scalar_select %p448, %s447, 0
      %s450 = ssub.s32 %s446, %s449
      %p451 = scmp.eq.s32.totalorder %s450, 0
      %s453 = sadd.s32 %s452, 1
      %s454 = scalar_select %p451, %s452, %s453
      %p457 = pneg %p451
      %p458 = scmp.eq.s32.totalorder %s43, 5
      %p459 = por %p457, %p458
      %p460 = scmp.ne.s32.totalorder %s452, %s455
      %p461 = scmp.eq.s32.totalorder %s43, 0
      %p462 = por %p460, %p461
      %p463 = scmp.ne.s32.totalorder %s452, %s455
      %p464 = scmp.eq.s32.totalorder %s48, 5
      %p465 = por %p463, %p464
      %p466 = scmp.ne.s32.totalorder %s455, %s456
      %p467 = scmp.eq.s32.totalorder %s48, 0
      %p468 = por %p466, %p467
      %p469 = scmp.ne.s32.totalorder %s455, %s456
      %p470 = scmp.eq.s32.totalorder %s49, 5
      %p471 = por %p469, %p470
      %p473 = scmp.ne.s32.totalorder %s456, %s472
      %p474 = scmp.eq.s32.totalorder %s49, 0
      %p475 = por %p473, %p474
      %s476 = ssub.s32 %s50, 1
      %p477 = scmp.gt.s32.totalorder %s476, 0
      %s478 = scalar_select %p477, %s476, 0
      %s479 = ssub.s32 %s62, 1
      %p480 = scmp.gt.s32.totalorder %s479, 0
      %s481 = scalar_select %p480, %s479, 0
      %s482 = ssub.s32 %s478, %s481
      %p483 = scmp.eq.s32.totalorder %s482, 0
      %s485 = sadd.s32 %s484, 1
      %s486 = scalar_select %p483, %s484, %s485
      %p489 = pneg %p483
      %p490 = scmp.eq.s32.totalorder %s43, 5
      %p491 = por %p489, %p490
      %p492 = scmp.ne.s32.totalorder %s484, %s487
      %p493 = scmp.eq.s32.totalorder %s43, 0
      %p494 = por %p492, %p493
      %p495 = scmp.ne.s32.totalorder %s484, %s487
      %p496 = scmp.eq.s32.totalorder %s48, 5
      %p497 = por %p495, %p496
      %p498 = scmp.ne.s32.totalorder %s487, %s488
      %p499 = scmp.eq.s32.totalorder %s48, 0
      %p500 = por %p498, %p499
      %p501 = scmp.ne.s32.totalorder %s487, %s488
      %p502 = scmp.eq.s32.totalorder %s49, 5
      %p503 = por %p501, %p502
      %p505 = scmp.ne.s32.totalorder %s488, %s504
      %p506 = scmp.eq.s32.totalorder %s49, 0
      %p507 = por %p505, %p506
      %s508 = ssub.s32 %s50, 1
      %p509 = scmp.gt.s32.totalorder %s508, 0
      %s510 = scalar_select %p509, %s508, 0
      %s511 = ssub.s32 %s62, 1
      %p512 = scmp.gt.s32.totalorder %s511, 0
      %s513 = scalar_select %p512, %s511, 0
      %s514 = ssub.s32 %s510, %s513
      %p515 = scmp.eq.s32.totalorder %s514, 0
      %s517 = sadd.s32 %s516, 1
      %s518 = scalar_select %p515, %s516, %s517
      %p521 = pneg %p515
      %p522 = scmp.eq.s32.totalorder %s43, 5
      %p523 = por %p521, %p522
      %p524 = scmp.ne.s32.totalorder %s516, %s519
      %p525 = scmp.eq.s32.totalorder %s43, 0
      %p526 = por %p524, %p525
      %p527 = scmp.ne.s32.totalorder %s516, %s519
      %p528 = scmp.eq.s32.totalorder %s48, 5
      %p529 = por %p527, %p528
      %p530 = scmp.ne.s32.totalorder %s519, %s520
      %p531 = scmp.eq.s32.totalorder %s48, 0
      %p532 = por %p530, %p531
      %p533 = scmp.ne.s32.totalorder %s519, %s520
      %p534 = scmp.eq.s32.totalorder %s49, 5
      %p535 = por %p533, %p534
      %p537 = scmp.ne.s32.totalorder %s520, %s536
      %p538 = scmp.eq.s32.totalorder %s49, 0
      %p539 = por %p537, %p538
      %s540 = ssub.s32 %s50, 1
      %p541 = scmp.gt.s32.totalorder %s540, 0
      %s542 = scalar_select %p541, %s540, 0
      %s543 = ssub.s32 %s62, 1
      %p544 = scmp.gt.s32.totalorder %s543, 0
      %s545 = scalar_select %p544, %s543, 0
      %s546 = ssub.s32 %s542, %s545
      %p547 = scmp.eq.s32.totalorder %s546, 0
      %s549 = sadd.s32 %s548, 1
      %s550 = scalar_select %p547, %s548, %s549
      %p553 = pneg %p547
      %p554 = scmp.eq.s32.totalorder %s43, 5
      %p555 = por %p553, %p554
      %p556 = scmp.ne.s32.totalorder %s548, %s551
      %p557 = scmp.eq.s32.totalorder %s43, 0
      %p558 = por %p556, %p557
      %p559 = scmp.ne.s32.totalorder %s548, %s551
      %p560 = scmp.eq.s32.totalorder %s48, 5
      %p561 = por %p559, %p560
      %p562 = scmp.ne.s32.totalorder %s551, %s552
      %p563 = scmp.eq.s32.totalorder %s48, 0
      %p564 = por %p562, %p563
      %p565 = scmp.ne.s32.totalorder %s551, %s552
      %p566 = scmp.eq.s32.totalorder %s49, 5
      %p567 = por %p565, %p566
      %p569 = scmp.ne.s32.totalorder %s552, %s568
      %p570 = scmp.eq.s32.totalorder %s49, 0
      %p571 = por %p569, %p570
      %s572 = ssub.s32 %s50, 1
      %p573 = scmp.gt.s32.totalorder %s572, 0
      %s574 = scalar_select %p573, %s572, 0
      %s575 = ssub.s32 %s62, 1
      %p576 = scmp.gt.s32.totalorder %s575, 0
      %s577 = scalar_select %p576, %s575, 0
      %s578 = ssub.s32 %s574, %s577
      %p579 = scmp.eq.s32.totalorder %s578, 0
      %s581 = sadd.s32 %s580, 1
      %s582 = scalar_select %p579, %s580, %s581
      %p585 = pneg %p579
      %p586 = scmp.eq.s32.totalorder %s43, 5
      %p587 = por %p585, %p586
      %p588 = scmp.ne.s32.totalorder %s580, %s583
      %p589 = scmp.eq.s32.totalorder %s43, 0
      %p590 = por %p588, %p589
      %p591 = scmp.ne.s32.totalorder %s580, %s583
      %p592 = scmp.eq.s32.totalorder %s48, 5
      %p593 = por %p591, %p592
      %p594 = scmp.ne.s32.totalorder %s583, %s584
      %p595 = scmp.eq.s32.totalorder %s48, 0
      %p596 = por %p594, %p595
      %p597 = scmp.ne.s32.totalorder %s583, %s584
      %p598 = scmp.eq.s32.totalorder %s49, 5
      %p599 = por %p597, %p598
      %p601 = scmp.ne.s32.totalorder %s584, %s600
      %p602 = scmp.eq.s32.totalorder %s49, 0
      %p603 = por %p601, %p602
      %s604 = ssub.s32 %s50, %s62
      %s605 = ssub.s32 %s51, %s58
      %s606 = sor.u32 %s604, %s605
      %p607 = scmp.eq.s32.totalorder %s606, 0
      %s609 = sadd.s32 %s608, 1
      %s610 = scalar_select %p607, %s608, %s609
      %p613 = pneg %p607
      %p614 = scmp.eq.s32.totalorder %s43, 5
      %p615 = por %p613, %p614
      %p616 = scmp.ne.s32.totalorder %s608, %s611
      %p617 = scmp.eq.s32.totalorder %s43, 0
      %p618 = por %p616, %p617
      %p619 = scmp.ne.s32.totalorder %s608, %s611
      %p620 = scmp.eq.s32.totalorder %s48, 5
      %p621 = por %p619, %p620
      %p622 = scmp.ne.s32.totalorder %s611, %s612
      %p623 = scmp.eq.s32.totalorder %s48, 0
      %p624 = por %p622, %p623
      %p625 = scmp.ne.s32.totalorder %s611, %s612
      %p626 = scmp.eq.s32.totalorder %s49, 5
      %p627 = por %p625, %p626
      %p629 = scmp.ne.s32.totalorder %s612, %s628
      %p630 = scmp.eq.s32.totalorder %s49, 0
      %p631 = por %p629, %p630
      %p632 = scmp.le.s32.totalorder 1, %s43
      %p633 = scmp.lt.s32.totalorder %s43, 7
      %p634 = pnand %p632, %p633
      %p635 = pneg %p634
      // Predicated region
      $region9: #{tpu_custom_call.1} parent=5 // pred_check
        _
      $region10: #{tpu_custom_call.1} parent=5 // pred_check_branch
        %637 = sbr.rel (%p634) target = $region12
      $region11: #{tpu_custom_call.1} parent=5 // pred_region
        %s638 = ssub.s32 %s43, 1
        // Predicated region
        $region13: #{tpu_custom_call.1} parent=11 // pred_check
          %p639 = pneg %p128
        $region14: #{tpu_custom_call.1} parent=11 // pred_check_branch
          %641 = sbr.rel (%p639) target = $region16
        $region15: #{tpu_custom_call.1} parent=11 // pred_region
          %s643 = ssub.s32 16, 16
          %644 = vsyncadd [#allocation10], %s643
          %s646 = sshll.u32 [#allocation11], 4
          %s647 = int_to_ptr.vmem [resolvable:$true] %s646
          %649 = dma.hbm_to_vmem [thread:$0]  %s2, 16, %s647, [#allocation10]
        $region16: #{tpu_custom_call.1} parent=11 // pred_fallthru
          _
        // Predicated region
        $region17: #{tpu_custom_call.1} parent=11 // pred_check
          %p650 = pneg %p149
        $region18: #{tpu_custom_call.1} parent=11 // pred_check_branch
          %652 = sbr.rel (%p650) target = $region20
        $region19: #{tpu_custom_call.1} parent=11 // pred_region
          %s654 = ssub.s32 1024, 1024
          %655 = vsyncadd [#allocation13], %s654
          %s656 = sshll.u32 [#allocation12], 4
          %s657 = int_to_ptr.vmem [resolvable:$true] %s656
          %662 = dma.hbm_to_vmem [thread:$0]  %s3, 1024, %s657, [#allocation13], 64, 64, 4
        $region20: #{tpu_custom_call.1} parent=11 // pred_fallthru
          _
        // Predicated region
        $region21: #{tpu_custom_call.1} parent=11 // pred_check
          %p663 = pneg %p170
        $region22: #{tpu_custom_call.1} parent=11 // pred_check_branch
          %665 = sbr.rel (%p663) target = $region24
        $region23: #{tpu_custom_call.1} parent=11 // pred_region
          %s667 = ssub.s32 16, 16
          %668 = vsyncadd [#allocation13], %s667
          %s670 = sshll.u32 [#allocation14], 4
          %s671 = int_to_ptr.vmem [resolvable:$true] %s670
          %673 = dma.hbm_to_vmem [thread:$0]  %s4, 16, %s671, [#allocation13]
        $region24: #{tpu_custom_call.1} parent=11 // pred_fallthru
          _
        // Predicated region
        $region25: #{tpu_custom_call.1} parent=11 // pred_check
          %p674 = pneg %p191
        $region26: #{tpu_custom_call.1} parent=11 // pred_check_branch
          %676 = sbr.rel (%p674) target = $region28
        $region27: #{tpu_custom_call.1} parent=11 // pred_region
          %s678 = ssub.s32 16, 16
          %679 = vsyncadd [#allocation8], %s678
          %682 = dma.hbm_to_smem %s5, 16, [#allocation15], [#allocation8]
        $region28: #{tpu_custom_call.1} parent=11 // pred_fallthru
          _
        // Predicated region
        $region29: #{tpu_custom_call.1} parent=11 // pred_check
          %p683 = pneg %p212
        $region30: #{tpu_custom_call.1} parent=11 // pred_check_branch
          %685 = sbr.rel (%p683) target = $region32
        $region31: #{tpu_custom_call.1} parent=11 // pred_region
          %s687 = ssub.s32 16, 16
          %688 = vsyncadd [#allocation17], %s687
          %691 = dma.hbm_to_smem %s6, 16, [#allocation16], [#allocation17]
        $region32: #{tpu_custom_call.1} parent=11 // pred_fallthru
          _
      $region12: #{tpu_custom_call.1} parent=5 // pred_fallthru
        _
      %p692 = scmp.lt.s32.totalorder %s43, 6
      // Predicated region
      $region33: #{tpu_custom_call.1} parent=5 // pred_check
        %p693 = pneg %p692
      $region34: #{tpu_custom_call.1} parent=5 // pred_check_branch
        %695 = sbr.rel (%p693) target = $region36
      $region35: #{tpu_custom_call.1} parent=5 // pred_region
        // Predicated region
        $region37: #{tpu_custom_call.1} parent=35 // pred_check
          %p696 = pneg %p75
        $region38: #{tpu_custom_call.1} parent=35 // pred_check_branch
          %698 = sbr.rel (%p696) target = $region40
        $region39: #{tpu_custom_call.1} parent=35 // pred_region
          %s699 = sand.u32 %s65, 1
          %s700 = scalar_lea.sflag [#allocation6], %s699
          %s701 = sand.u32 %s65, 1
          %s702 = smul.addr %s701, 8
          %s703 = scalar_lea.vmem [#allocation5], %s702
          %s705 = ssub.s32 128, 128
          %706 = vsyncadd %s700, %s705
          %s707 = smul.addr %s51, 2
          %s708 = smul.addr %s707, 64
          %s709 = scalar_lea.hbm %s0, %s708
          %s710 = sshll.u32 %s703, 4
          %s711 = int_to_ptr.vmem [resolvable:$true] %s710
          %716 = dma.hbm_to_vmem [thread:$0]  %s709, 128, %s711, %s700, 64, 64, 4
        $region40: #{tpu_custom_call.1} parent=35 // pred_fallthru
          _
        // Predicated region
        $region41: #{tpu_custom_call.1} parent=35 // pred_check
          %p717 = pneg %p101
        $region42: #{tpu_custom_call.1} parent=35 // pred_check_branch
          %719 = sbr.rel (%p717) target = $region44
        $region43: #{tpu_custom_call.1} parent=35 // pred_region
          %s720 = sand.u32 %s43, 1
          %s721 = scalar_lea.sflag [#allocation10], %s720
          %s722 = sand.u32 %s91, 1
          %s723 = smul.addr %s722, 8
          %s724 = scalar_lea.vmem [#allocation9], %s723
          %s726 = ssub.s32 128, 128
          %727 = vsyncadd %s721, %s726
          %s728 = smul.addr %s51, 2
          %s729 = smul.addr %s728, 64
          %s730 = scalar_lea.hbm %s1, %s729
          %s731 = sshll.u32 %s724, 4
          %s732 = int_to_ptr.vmem [resolvable:$true] %s731
          %737 = dma.hbm_to_vmem [thread:$0]  %s730, 128, %s732, %s721, 64, 64, 4
        $region44: #{tpu_custom_call.1} parent=35 // pred_fallthru
          _
        // Predicated region
        $region45: #{tpu_custom_call.1} parent=35 // pred_check
          %p738 = pneg %p238
        $region46: #{tpu_custom_call.1} parent=35 // pred_check_branch
          %740 = sbr.rel (%p738) target = $region48
        $region47: #{tpu_custom_call.1} parent=35 // pred_region
          %s741 = ssub.s32 %s50, 1
          %p742 = scmp.gt.s32.totalorder %s741, 0
          %s743 = scalar_select %p742, %s741, 0
          %p744 = scmp.lt.s32.totalorder %s743, 1
          %s745 = scalar_select %p744, %s743, 1
          %s746 = scalar_lea.vmem %s7, %s745
          %s747 = ssub.s32 %s50, 1
          %p748 = scmp.gt.s32.totalorder %s747, 0
          %s749 = scalar_select %p748, %s747, 0
        $region48: #{tpu_custom_call.1} parent=35 // pred_fallthru
          _
        // Predicated region
        $region49: #{tpu_custom_call.1} parent=35 // pred_check
          %p750 = pneg %p270
        $region50: #{tpu_custom_call.1} parent=35 // pred_check_branch
          %752 = sbr.rel (%p750) target = $region52
        $region51: #{tpu_custom_call.1} parent=35 // pred_region
          %s753 = ssub.s32 %s50, 1
          %p754 = scmp.gt.s32.totalorder %s753, 0
          %s755 = scalar_select %p754, %s753, 0
          %p756 = scmp.lt.s32.totalorder %s755, 1
          %s757 = scalar_select %p756, %s755, 1
          %s758 = scalar_lea.vmem %s8, %s757
          %s759 = ssub.s32 %s50, 1
          %p760 = scmp.gt.s32.totalorder %s759, 0
          %s761 = scalar_select %p760, %s759, 0
        $region52: #{tpu_custom_call.1} parent=35 // pred_fallthru
          _
        // Predicated region
        $region53: #{tpu_custom_call.1} parent=35 // pred_check
          %p762 = pneg %p302
        $region54: #{tpu_custom_call.1} parent=35 // pred_check_branch
          %764 = sbr.rel (%p762) target = $region56
        $region55: #{tpu_custom_call.1} parent=35 // pred_region
          %s765 = sand.u32 %s43, 1
          %s766 = scalar_lea.sflag [#allocation19], %s765
          %s767 = sand.u32 %s292, 1
          %s768 = smul.addr %s767, 192
          %s769 = scalar_lea.vmem [#allocation18], %s768
          %s770 = ssub.s32 %s50, 1
          %p771 = scmp.gt.s32.totalorder %s770, 0
          %s772 = scalar_select %p771, %s770, 0
          %s774 = ssub.s32 3072, 3072
          %775 = vsyncadd %s766, %s774
          %s776 = smul.addr %s772, 48
          %s777 = smul.addr %s776, 64
          %s778 = scalar_lea.hbm %s9, %s777
          %s779 = sshll.u32 %s769, 4
          %s780 = int_to_ptr.vmem [resolvable:$true] %s779
          %785 = dma.hbm_to_vmem [thread:$0]  %s778, 3072, %s780, %s766, 192, 192, 12
        $region56: #{tpu_custom_call.1} parent=35 // pred_fallthru
          _
        // Predicated region
        $region57: #{tpu_custom_call.1} parent=35 // pred_check
          %p786 = pneg %p334
        $region58: #{tpu_custom_call.1} parent=35 // pred_check_branch
          %788 = sbr.rel (%p786) target = $region60
        $region59: #{tpu_custom_call.1} parent=35 // pred_region
          %s789 = ssub.s32 %s50, 1
          %p790 = scmp.gt.s32.totalorder %s789, 0
          %s791 = scalar_select %p790, %s789, 0
          %p792 = scmp.lt.s32.totalorder %s791, 1
          %s793 = scalar_select %p792, %s791, 1
          %s794 = smul.addr %s793, 3
          %s795 = scalar_lea.vmem %s10, %s794
          %s796 = ssub.s32 %s50, 1
          %p797 = scmp.gt.s32.totalorder %s796, 0
          %s798 = scalar_select %p797, %s796, 0
        $region60: #{tpu_custom_call.1} parent=35 // pred_fallthru
          _
        // Predicated region
        $region61: #{tpu_custom_call.1} parent=35 // pred_check
          %p799 = pneg %p366
        $region62: #{tpu_custom_call.1} parent=35 // pred_check_branch
          %801 = sbr.rel (%p799) target = $region64
        $region63: #{tpu_custom_call.1} parent=35 // pred_region
          %s802 = sand.u32 %s43, 1
          %s803 = scalar_lea.sflag [#allocation19], %s802
          %s804 = sand.u32 %s356, 1
          %s805 = smul.addr %s804, 64
          %s806 = scalar_lea.vmem [#allocation20], %s805
          %s807 = ssub.s32 %s50, 1
          %p808 = scmp.gt.s32.totalorder %s807, 0
          %s809 = scalar_select %p808, %s807, 0
          %s811 = ssub.s32 1024, 1024
          %812 = vsyncadd %s803, %s811
          %s813 = smul.addr %s809, 16
          %s814 = smul.addr %s813, 64
          %s815 = scalar_lea.hbm %s11, %s814
          %s816 = sshll.u32 %s806, 4
          %s817 = int_to_ptr.vmem [resolvable:$true] %s816
          %822 = dma.hbm_to_vmem [thread:$0]  %s815, 1024, %s817, %s803, 64, 64, 4
        $region64: #{tpu_custom_call.1} parent=35 // pred_fallthru
          _
        // Predicated region
        $region65: #{tpu_custom_call.1} parent=35 // pred_check
          %p823 = pneg %p398
        $region66: #{tpu_custom_call.1} parent=35 // pred_check_branch
          %825 = sbr.rel (%p823) target = $region68
        $region67: #{tpu_custom_call.1} parent=35 // pred_region
          %s826 = ssub.s32 %s50, 1
          %p827 = scmp.gt.s32.totalorder %s826, 0
          %s828 = scalar_select %p827, %s826, 0
          %p829 = scmp.lt.s32.totalorder %s828, 1
          %s830 = scalar_select %p829, %s828, 1
          %s831 = scalar_lea.vmem %s12, %s830
          %s832 = ssub.s32 %s50, 1
          %p833 = scmp.gt.s32.totalorder %s832, 0
          %s834 = scalar_select %p833, %s832, 0
        $region68: #{tpu_custom_call.1} parent=35 // pred_fallthru
          _
        // Predicated region
        $region69: #{tpu_custom_call.1} parent=35 // pred_check
          %p835 = pneg %p430
        $region70: #{tpu_custom_call.1} parent=35 // pred_check_branch
          %837 = sbr.rel (%p835) target = $region72
        $region71: #{tpu_custom_call.1} parent=35 // pred_region
          %s838 = ssub.s32 %s50, 1
          %p839 = scmp.gt.s32.totalorder %s838, 0
          %s840 = scalar_select %p839, %s838, 0
          %p841 = scmp.lt.s32.totalorder %s840, 1
          %s842 = scalar_select %p841, %s840, 1
          %s843 = scalar_lea.vmem %s13, %s842
          %s844 = ssub.s32 %s50, 1
          %p845 = scmp.gt.s32.totalorder %s844, 0
          %s846 = scalar_select %p845, %s844, 0
        $region72: #{tpu_custom_call.1} parent=35 // pred_fallthru
          _
        // Predicated region
        $region73: #{tpu_custom_call.1} parent=35 // pred_check
          %p847 = pneg %p462
        $region74: #{tpu_custom_call.1} parent=35 // pred_check_branch
          %849 = sbr.rel (%p847) target = $region76
        $region75: #{tpu_custom_call.1} parent=35 // pred_region
          %s850 = ssub.s32 %s50, 1
          %p851 = scmp.gt.s32.totalorder %s850, 0
          %s852 = scalar_select %p851, %s850, 0
          %p853 = scmp.lt.s32.totalorder %s852, 1
          %s854 = scalar_select %p853, %s852, 1
          %s855 = scalar_lea.vmem %s14, %s854
          %s856 = ssub.s32 %s50, 1
          %p857 = scmp.gt.s32.totalorder %s856, 0
          %s858 = scalar_select %p857, %s856, 0
        $region76: #{tpu_custom_call.1} parent=35 // pred_fallthru
          _
        // Predicated region
        $region77: #{tpu_custom_call.1} parent=35 // pred_check
          %p859 = pneg %p494
        $region78: #{tpu_custom_call.1} parent=35 // pred_check_branch
          %861 = sbr.rel (%p859) target = $region80
        $region79: #{tpu_custom_call.1} parent=35 // pred_region
          %s862 = sand.u32 %s43, 1
          %s863 = scalar_lea.sflag [#allocation22], %s862
          %s864 = sand.u32 %s484, 1
          %s865 = smul.addr %s864, 128
          %s866 = scalar_lea.vmem [#allocation21], %s865
          %s867 = ssub.s32 %s50, 1
          %p868 = scmp.gt.s32.totalorder %s867, 0
          %s869 = scalar_select %p868, %s867, 0
          %s871 = ssub.s32 2048, 2048
          %872 = vsyncadd %s863, %s871
          %s873 = smul.addr %s869, 32
          %s874 = smul.addr %s873, 64
          %s875 = scalar_lea.hbm %s15, %s874
          %s876 = sshll.u32 %s866, 4
          %s877 = int_to_ptr.vmem [resolvable:$true] %s876
          %882 = dma.hbm_to_vmem [thread:$0]  %s875, 2048, %s877, %s863, 128, 128, 8
        $region80: #{tpu_custom_call.1} parent=35 // pred_fallthru
          _
        // Predicated region
        $region81: #{tpu_custom_call.1} parent=35 // pred_check
          %p883 = pneg %p526
        $region82: #{tpu_custom_call.1} parent=35 // pred_check_branch
          %885 = sbr.rel (%p883) target = $region84
        $region83: #{tpu_custom_call.1} parent=35 // pred_region
          %s886 = ssub.s32 %s50, 1
          %p887 = scmp.gt.s32.totalorder %s886, 0
          %s888 = scalar_select %p887, %s886, 0
          %p889 = scmp.lt.s32.totalorder %s888, 1
          %s890 = scalar_select %p889, %s888, 1
          %s891 = smul.addr %s890, 2
          %s892 = scalar_lea.vmem %s16, %s891
          %s893 = ssub.s32 %s50, 1
          %p894 = scmp.gt.s32.totalorder %s893, 0
          %s895 = scalar_select %p894, %s893, 0
        $region84: #{tpu_custom_call.1} parent=35 // pred_fallthru
          _
        // Predicated region
        $region85: #{tpu_custom_call.1} parent=35 // pred_check
          %p896 = pneg %p558
        $region86: #{tpu_custom_call.1} parent=35 // pred_check_branch
          %898 = sbr.rel (%p896) target = $region88
        $region87: #{tpu_custom_call.1} parent=35 // pred_region
          %s899 = sand.u32 %s43, 1
          %s900 = scalar_lea.sflag [#allocation22], %s899
          %s901 = sand.u32 %s548, 1
          %s902 = smul.addr %s901, 128
          %s903 = scalar_lea.vmem [#allocation23], %s902
          %s904 = ssub.s32 %s50, 1
          %p905 = scmp.gt.s32.totalorder %s904, 0
          %s906 = scalar_select %p905, %s904, 0
          %s908 = ssub.s32 2048, 2048
          %909 = vsyncadd %s900, %s908
          %s910 = smul.addr %s906, 32
          %s911 = smul.addr %s910, 64
          %s912 = scalar_lea.hbm %s17, %s911
          %s913 = sshll.u32 %s903, 4
          %s914 = int_to_ptr.vmem [resolvable:$true] %s913
          %919 = dma.hbm_to_vmem [thread:$0]  %s912, 2048, %s914, %s900, 64, 64, 4
        $region88: #{tpu_custom_call.1} parent=35 // pred_fallthru
          _
        // Predicated region
        $region89: #{tpu_custom_call.1} parent=35 // pred_check
          %p920 = pneg %p590
        $region90: #{tpu_custom_call.1} parent=35 // pred_check_branch
          %922 = sbr.rel (%p920) target = $region92
        $region91: #{tpu_custom_call.1} parent=35 // pred_region
          %s923 = ssub.s32 %s50, 1
          %p924 = scmp.gt.s32.totalorder %s923, 0
          %s925 = scalar_select %p924, %s923, 0
          %p926 = scmp.lt.s32.totalorder %s925, 1
          %s927 = scalar_select %p926, %s925, 1
          %s928 = scalar_lea.vmem %s18, %s927
          %s929 = ssub.s32 %s50, 1
          %p930 = scmp.gt.s32.totalorder %s929, 0
          %s931 = scalar_select %p930, %s929, 0
        $region92: #{tpu_custom_call.1} parent=35 // pred_fallthru
          _
      $region36: #{tpu_custom_call.1} parent=5 // pred_fallthru
        _
      %p932 = scmp.le.s32.totalorder 1, %s43
      %p933 = scmp.lt.s32.totalorder %s43, 7
      %p934 = pnand %p932, %p933
      %p935 = pneg %p934
      // Predicated region
      $region93: #{tpu_custom_call.1} parent=5 // pred_check
        _
      $region94: #{tpu_custom_call.1} parent=5 // pred_check_branch
        %937 = sbr.rel (%p934) target = $region96
      $region95: #{tpu_custom_call.1} parent=5 // pred_region
        %s938 = ssub.s32 %s43, 1
        %s939 = sand.u32 %s68, 1
        %s940 = scalar_lea.sflag [#allocation6], %s939
        %s941 = sand.u32 %s68, 1
        %s942 = smul.addr %s941, 8
        %s943 = scalar_lea.vmem [#allocation5], %s942
        // Predicated region
        $region97: #{tpu_custom_call.1} parent=95 // pred_check
          %p944 = pneg %p81
        $region98: #{tpu_custom_call.1} parent=95 // pred_check_branch
          %946 = sbr.rel (%p944) target = $region100
        $region99: #{tpu_custom_call.1} parent=95 // pred_region
          %947 = dma.done %s940, 128
        $region100: #{tpu_custom_call.1} parent=95 // pred_fallthru
          _
        %s948 = sand.u32 %s48, 1
        %s949 = scalar_lea.sflag [#allocation10], %s948
        %s950 = sand.u32 %s94, 1
        %s951 = smul.addr %s950, 8
        %s952 = scalar_lea.vmem [#allocation9], %s951
        // Predicated region
        $region101: #{tpu_custom_call.1} parent=95 // pred_check
          %p953 = pneg %p107
        $region102: #{tpu_custom_call.1} parent=95 // pred_check_branch
          %955 = sbr.rel (%p953) target = $region104
        $region103: #{tpu_custom_call.1} parent=95 // pred_region
          %956 = dma.done %s949, 128
        $region104: #{tpu_custom_call.1} parent=95 // pred_fallthru
          _
        // Predicated region
        $region105: #{tpu_custom_call.1} parent=95 // pred_check
          %p957 = pneg %p128
        $region106: #{tpu_custom_call.1} parent=95 // pred_check_branch
          %959 = sbr.rel (%p957) target = $region108
        $region107: #{tpu_custom_call.1} parent=95 // pred_region
          %960 = dma.done [#allocation10], 16
        $region108: #{tpu_custom_call.1} parent=95 // pred_fallthru
          _
        // Predicated region
        $region109: #{tpu_custom_call.1} parent=95 // pred_check
          %p961 = pneg %p149
        $region110: #{tpu_custom_call.1} parent=95 // pred_check_branch
          %963 = sbr.rel (%p961) target = $region112
        $region111: #{tpu_custom_call.1} parent=95 // pred_region
          %964 = dma.done [#allocation13], 1024
        $region112: #{tpu_custom_call.1} parent=95 // pred_fallthru
          _
        // Predicated region
        $region113: #{tpu_custom_call.1} parent=95 // pred_check
          %p965 = pneg %p170
        $region114: #{tpu_custom_call.1} parent=95 // pred_check_branch
          %967 = sbr.rel (%p965) target = $region116
        $region115: #{tpu_custom_call.1} parent=95 // pred_region
          %968 = dma.done [#allocation13], 16
        $region116: #{tpu_custom_call.1} parent=95 // pred_fallthru
          _
        // Predicated region
        $region117: #{tpu_custom_call.1} parent=95 // pred_check
          %p969 = pneg %p191
        $region118: #{tpu_custom_call.1} parent=95 // pred_check_branch
          %971 = sbr.rel (%p969) target = $region120
        $region119: #{tpu_custom_call.1} parent=95 // pred_region
          %972 = dma.done [#allocation8], 16
        $region120: #{tpu_custom_call.1} parent=95 // pred_fallthru
          _
        // Predicated region
        $region121: #{tpu_custom_call.1} parent=95 // pred_check
          %p973 = pneg %p212
        $region122: #{tpu_custom_call.1} parent=95 // pred_check_branch
          %975 = sbr.rel (%p973) target = $region124
        $region123: #{tpu_custom_call.1} parent=95 // pred_region
          %976 = dma.done [#allocation17], 16
        $region124: #{tpu_custom_call.1} parent=95 // pred_fallthru
          _
        %s977 = sand.u32 %s48, 1
        %s978 = scalar_lea.sflag [#allocation19], %s977
        %s979 = sand.u32 %s295, 1
        %s980 = smul.addr %s979, 192
        %s981 = scalar_lea.vmem [#allocation18], %s980
        // Predicated region
        $region125: #{tpu_custom_call.1} parent=95 // pred_check
          %p982 = pneg %p308
        $region126: #{tpu_custom_call.1} parent=95 // pred_check_branch
          %984 = sbr.rel (%p982) target = $region128
        $region127: #{tpu_custom_call.1} parent=95 // pred_region
          %985 = dma.done %s978, 3072
        $region128: #{tpu_custom_call.1} parent=95 // pred_fallthru
          _
        %s986 = sand.u32 %s48, 1
        %s987 = scalar_lea.sflag [#allocation19], %s986
        %s988 = sand.u32 %s359, 1
        %s989 = smul.addr %s988, 64
        %s990 = scalar_lea.vmem [#allocation20], %s989
        // Predicated region
        $region129: #{tpu_custom_call.1} parent=95 // pred_check
          %p991 = pneg %p372
        $region130: #{tpu_custom_call.1} parent=95 // pred_check_branch
          %993 = sbr.rel (%p991) target = $region132
        $region131: #{tpu_custom_call.1} parent=95 // pred_region
          %994 = dma.done %s987, 1024
        $region132: #{tpu_custom_call.1} parent=95 // pred_fallthru
          _
        %s995 = sand.u32 %s48, 1
        %s996 = scalar_lea.sflag [#allocation22], %s995
        %s997 = sand.u32 %s487, 1
        %s998 = smul.addr %s997, 128
        %s999 = scalar_lea.vmem [#allocation21], %s998
        // Predicated region
        $region133: #{tpu_custom_call.1} parent=95 // pred_check
          %p1000 = pneg %p500
        $region134: #{tpu_custom_call.1} parent=95 // pred_check_branch
          %1002 = sbr.rel (%p1000) target = $region136
        $region135: #{tpu_custom_call.1} parent=95 // pred_region
          %1003 = dma.done %s996, 2048
        $region136: #{tpu_custom_call.1} parent=95 // pred_fallthru
          _
        %s1004 = sand.u32 %s48, 1
        %s1005 = scalar_lea.sflag [#allocation22], %s1004
        %s1006 = sand.u32 %s551, 1
        %s1007 = smul.addr %s1006, 128
        %s1008 = scalar_lea.vmem [#allocation23], %s1007
        // Predicated region
        $region137: #{tpu_custom_call.1} parent=95 // pred_check
          %p1009 = pneg %p564
        $region138: #{tpu_custom_call.1} parent=95 // pred_check_branch
          %1011 = sbr.rel (%p1009) target = $region140
        $region139: #{tpu_custom_call.1} parent=95 // pred_region
          %1012 = dma.done %s1005, 2048
        $region140: #{tpu_custom_call.1} parent=95 // pred_fallthru
          _
        %1013 = sfence
        %s1014 = sand.u32 %s68, 1
        %s1015 = scalar_lea.sflag [#allocation6], %s1014
        %s1016 = sand.u32 %s68, 1
        %s1017 = smul.addr %s1016, 8
        %s1018 = scalar_lea.vmem [#allocation5], %s1017
        %p1019 = pneg %p81
        %p1020 = pneg %p78
        %s1021 = sand.u32 %s48, 1
        %s1022 = scalar_lea.sflag [#allocation10], %s1021
        %s1023 = sand.u32 %s94, 1
        %s1024 = smul.addr %s1023, 8
        %s1025 = scalar_lea.vmem [#allocation9], %s1024
        %p1026 = pneg %p107
        %p1027 = pneg %p104
        %p1028 = pneg %p128
        %p1029 = pneg %p125
        %p1030 = pneg %p149
        %p1031 = pneg %p146
        %p1032 = pneg %p170
        %p1033 = pneg %p167
        %p1034 = pneg %p191
        %p1035 = pneg %p188
        %p1036 = pneg %p212
        %p1037 = pneg %p209
        %s1038 = ssub.s32 %s52, 1
        %p1039 = scmp.gt.s32.totalorder %s1038, 0
        %s1040 = scalar_select %p1039, %s1038, 0
        %p1041 = scmp.lt.s32.totalorder %s1040, 1
        %s1042 = scalar_select %p1041, %s1040, 1
        %s1043 = scalar_lea.vmem %s7, %s1042
        %p1044 = pneg %p244
        %p1045 = pneg %p241
        %s1046 = ssub.s32 %s52, 1
        %p1047 = scmp.gt.s32.totalorder %s1046, 0
        %s1048 = scalar_select %p1047, %s1046, 0
        %p1049 = scmp.lt.s32.totalorder %s1048, 1
        %s1050 = scalar_select %p1049, %s1048, 1
        %s1051 = scalar_lea.vmem %s8, %s1050
        %p1052 = pneg %p276
        %p1053 = pneg %p273
        %s1054 = sand.u32 %s48, 1
        %s1055 = scalar_lea.sflag [#allocation19], %s1054
        %s1056 = sand.u32 %s295, 1
        %s1057 = smul.addr %s1056, 192
        %s1058 = scalar_lea.vmem [#allocation18], %s1057
        %p1059 = pneg %p308
        %p1060 = pneg %p305
        %s1061 = ssub.s32 %s52, 1
        %p1062 = scmp.gt.s32.totalorder %s1061, 0
        %s1063 = scalar_select %p1062, %s1061, 0
        %p1064 = scmp.lt.s32.totalorder %s1063, 1
        %s1065 = scalar_select %p1064, %s1063, 1
        %s1066 = smul.addr %s1065, 3
        %s1067 = scalar_lea.vmem %s10, %s1066
        %p1068 = pneg %p340
        %p1069 = pneg %p337
        %s1070 = sand.u32 %s48, 1
        %s1071 = scalar_lea.sflag [#allocation19], %s1070
        %s1072 = sand.u32 %s359, 1
        %s1073 = smul.addr %s1072, 64
        %s1074 = scalar_lea.vmem [#allocation20], %s1073
        %p1075 = pneg %p372
        %p1076 = pneg %p369
        %s1077 = ssub.s32 %s52, 1
        %p1078 = scmp.gt.s32.totalorder %s1077, 0
        %s1079 = scalar_select %p1078, %s1077, 0
        %p1080 = scmp.lt.s32.totalorder %s1079, 1
        %s1081 = scalar_select %p1080, %s1079, 1
        %s1082 = scalar_lea.vmem %s12, %s1081
        %p1083 = pneg %p404
        %p1084 = pneg %p401
        %s1085 = ssub.s32 %s52, 1
        %p1086 = scmp.gt.s32.totalorder %s1085, 0
        %s1087 = scalar_select %p1086, %s1085, 0
        %p1088 = scmp.lt.s32.totalorder %s1087, 1
        %s1089 = scalar_select %p1088, %s1087, 1
        %s1090 = scalar_lea.vmem %s13, %s1089
        %p1091 = pneg %p436
        %p1092 = pneg %p433
        %s1093 = ssub.s32 %s52, 1
        %p1094 = scmp.gt.s32.totalorder %s1093, 0
        %s1095 = scalar_select %p1094, %s1093, 0
        %p1096 = scmp.lt.s32.totalorder %s1095, 1
        %s1097 = scalar_select %p1096, %s1095, 1
        %s1098 = scalar_lea.vmem %s14, %s1097
        %p1099 = pneg %p468
        %p1100 = pneg %p465
        %s1101 = sand.u32 %s48, 1
        %s1102 = scalar_lea.sflag [#allocation22], %s1101
        %s1103 = sand.u32 %s487, 1
        %s1104 = smul.addr %s1103, 128
        %s1105 = scalar_lea.vmem [#allocation21], %s1104
        %p1106 = pneg %p500
        %p1107 = pneg %p497
        %s1108 = ssub.s32 %s52, 1
        %p1109 = scmp.gt.s32.totalorder %s1108, 0
        %s1110 = scalar_select %p1109, %s1108, 0
        %p1111 = scmp.lt.s32.totalorder %s1110, 1
        %s1112 = scalar_select %p1111, %s1110, 1
        %s1113 = smul.addr %s1112, 2
        %s1114 = scalar_lea.vmem %s16, %s1113
        %p1115 = pneg %p532
        %p1116 = pneg %p529
        %s1117 = sand.u32 %s48, 1
        %s1118 = scalar_lea.sflag [#allocation22], %s1117
        %s1119 = sand.u32 %s551, 1
        %s1120 = smul.addr %s1119, 128
        %s1121 = scalar_lea.vmem [#allocation23], %s1120
        %p1122 = pneg %p564
        %p1123 = pneg %p561
        %s1124 = ssub.s32 %s52, 1
        %p1125 = scmp.gt.s32.totalorder %s1124, 0
        %s1126 = scalar_select %p1125, %s1124, 0
        %p1127 = scmp.lt.s32.totalorder %s1126, 1
        %s1128 = scalar_select %p1127, %s1126, 1
        %s1129 = scalar_lea.vmem %s18, %s1128
        %p1130 = pneg %p596
        %p1131 = pneg %p593
        %p1132 = pneg %p624
        %p1133 = pneg %p621
        %s1134 = sand.u32 %s611, 1
        %s1135 = scalar_lea.sflag [#allocation7], %s1134
        %s1136 = sand.u32 %s611, 1
        %s1137 = smul.addr %s1136, 16
        %s1138 = scalar_lea.vmem [#allocation24], %s1137
        %s1139 = ssub.s32 %s52, 1
        %p1140 = scmp.gt.s32.totalorder %s1139, 0
        %s1141 = scalar_select %p1140, %s1139, 0
        %p1142 = scmp.lt.s32.totalorder %s1141, 1
        %s1143 = scalar_select %p1142, %s1141, 1
        %s1144 = scalar_lea.vmem %s7, %s1143
        %s1145 = ssub.s32 %s52, 1
        %p1146 = scmp.gt.s32.totalorder %s1145, 0
        %s1147 = scalar_select %p1146, %s1145, 0
        %s1148 = ssub.s32 %s52, 1
        %p1149 = scmp.gt.s32.totalorder %s1148, 0
        %s1150 = scalar_select %p1149, %s1148, 0
        %p1151 = scmp.lt.s32.totalorder %s1150, 1
        %s1152 = scalar_select %p1151, %s1150, 1
        %s1153 = scalar_lea.vmem %s8, %s1152
        %s1154 = ssub.s32 %s52, 1
        %p1155 = scmp.gt.s32.totalorder %s1154, 0
        %s1156 = scalar_select %p1155, %s1154, 0
        %s1157 = ssub.s32 %s52, 1
        %p1158 = scmp.gt.s32.totalorder %s1157, 0
        %s1159 = scalar_select %p1158, %s1157, 0
        %s1160 = ssub.s32 %s52, 1
        %p1161 = scmp.gt.s32.totalorder %s1160, 0
        %s1162 = scalar_select %p1161, %s1160, 0
        %p1163 = scmp.lt.s32.totalorder %s1162, 1
        %s1164 = scalar_select %p1163, %s1162, 1
        %s1165 = smul.addr %s1164, 3
        %s1166 = scalar_lea.vmem %s10, %s1165
        %s1167 = ssub.s32 %s52, 1
        %p1168 = scmp.gt.s32.totalorder %s1167, 0
        %s1169 = scalar_select %p1168, %s1167, 0
        %s1170 = ssub.s32 %s52, 1
        %p1171 = scmp.gt.s32.totalorder %s1170, 0
        %s1172 = scalar_select %p1171, %s1170, 0
        %s1173 = ssub.s32 %s52, 1
        %p1174 = scmp.gt.s32.totalorder %s1173, 0
        %s1175 = scalar_select %p1174, %s1173, 0
        %p1176 = scmp.lt.s32.totalorder %s1175, 1
        %s1177 = scalar_select %p1176, %s1175, 1
        %s1178 = scalar_lea.vmem %s12, %s1177
        %s1179 = ssub.s32 %s52, 1
        %p1180 = scmp.gt.s32.totalorder %s1179, 0
        %s1181 = scalar_select %p1180, %s1179, 0
        %s1182 = ssub.s32 %s52, 1
        %p1183 = scmp.gt.s32.totalorder %s1182, 0
        %s1184 = scalar_select %p1183, %s1182, 0
        %p1185 = scmp.lt.s32.totalorder %s1184, 1
        %s1186 = scalar_select %p1185, %s1184, 1
        %s1187 = scalar_lea.vmem %s13, %s1186
        %s1188 = ssub.s32 %s52, 1
        %p1189 = scmp.gt.s32.totalorder %s1188, 0
        %s1190 = scalar_select %p1189, %s1188, 0
        %s1191 = ssub.s32 %s52, 1
        %p1192 = scmp.gt.s32.totalorder %s1191, 0
        %s1193 = scalar_select %p1192, %s1191, 0
        %p1194 = scmp.lt.s32.totalorder %s1193, 1
        %s1195 = scalar_select %p1194, %s1193, 1
        %s1196 = scalar_lea.vmem %s14, %s1195
        %s1197 = ssub.s32 %s52, 1
        %p1198 = scmp.gt.s32.totalorder %s1197, 0
        %s1199 = scalar_select %p1198, %s1197, 0
        %s1200 = ssub.s32 %s52, 1
        %p1201 = scmp.gt.s32.totalorder %s1200, 0
        %s1202 = scalar_select %p1201, %s1200, 0
        %s1203 = ssub.s32 %s52, 1
        %p1204 = scmp.gt.s32.totalorder %s1203, 0
        %s1205 = scalar_select %p1204, %s1203, 0
        %p1206 = scmp.lt.s32.totalorder %s1205, 1
        %s1207 = scalar_select %p1206, %s1205, 1
        %s1208 = smul.addr %s1207, 2
        %s1209 = scalar_lea.vmem %s16, %s1208
        %s1210 = ssub.s32 %s52, 1
        %p1211 = scmp.gt.s32.totalorder %s1210, 0
        %s1212 = scalar_select %p1211, %s1210, 0
        %s1213 = ssub.s32 %s52, 1
        %p1214 = scmp.gt.s32.totalorder %s1213, 0
        %s1215 = scalar_select %p1214, %s1213, 0
        %s1216 = ssub.s32 %s52, 1
        %p1217 = scmp.gt.s32.totalorder %s1216, 0
        %s1218 = scalar_select %p1217, %s1216, 0
        %p1219 = scmp.lt.s32.totalorder %s1218, 1
        %s1220 = scalar_select %p1219, %s1218, 1
        %s1221 = scalar_lea.vmem %s18, %s1220
        %s1222 = ssub.s32 %s52, 1
        %p1223 = scmp.gt.s32.totalorder %s1222, 0
        %s1224 = scalar_select %p1223, %s1222, 0
        %p1226 = scmp.eq.s32.totalorder %s52, 0
        // Predicated region
        $region141: #{tpu_custom_call.1} parent=95 // pred_check
          %p1227 = pneg %p1226
        $region142: #{tpu_custom_call.1} parent=95 // pred_check_branch
          %1229 = sbr.rel (%p1227) target = $region144
        $region143: #{tpu_custom_call.1} parent=95 // pred_region
          %v1230 = vld [vmem:[%s943] sm:$0xf]
          %v1231 = vld [vmem:[%s943 + $0x4] sm:$0xf]
          %v1232 = vld [vmem:[#allocation12] sm:$0xf]
          %v1233 = vld [vmem:[#allocation12 + $0x4] sm:$0xf]
          %v1234 = vld [vmem:[#allocation12 + $0x8] sm:$0xf]
          %v1235 = vld [vmem:[#allocation12 + $0xc] sm:$0xf]
          %v1236 = vld [vmem:[#allocation12 + $0x10] sm:$0xf]
          %v1237 = vld [vmem:[#allocation12 + $0x14] sm:$0xf]
          %v1238 = vld [vmem:[#allocation12 + $0x18] sm:$0xf]
          %v1239 = vld [vmem:[#allocation12 + $0x1c] sm:$0xf]
          %v1240 = vld [vmem:[#allocation12 + $0x20] sm:$0xf]
          %v1241 = vld [vmem:[#allocation12 + $0x24] sm:$0xf]
          %v1242 = vld [vmem:[#allocation12 + $0x28] sm:$0xf]
          %v1243 = vld [vmem:[#allocation12 + $0x2c] sm:$0xf]
          %v1244 = vld [vmem:[#allocation12 + $0x30] sm:$0xf]
          %v1245 = vld [vmem:[#allocation12 + $0x34] sm:$0xf]
          %v1246 = vld [vmem:[#allocation12 + $0x38] sm:$0xf]
          %v1247 = vld [vmem:[#allocation12 + $0x3c] sm:$0xf]
          %v1248 = vld [vmem:[#allocation14] sm:$0x1]
          %v1250 = vlaneseq
          %v1251 = vshrl.u32 %v1250, 7
          %v1252 = vsub.s32 0, %v1251
          %v1253 = vrot.slane %v1248, %v1252
          %v1257 = vunpack.c.l.b16 %v1230
          %v1258 = vunpack.c.l.b16 %v1231
          %v1259 = vpack.c.b16 %v1258, %v1257
          %v1277 = vunpack.c.l.b16 %v1232
          %v1278 = vunpack.c.l.b16 %v1233
          %v1279 = vunpack.c.l.b16 %v1234
          %v1280 = vunpack.c.l.b16 %v1235
          %v1281 = vunpack.c.l.b16 %v1236
          %v1282 = vunpack.c.l.b16 %v1237
          %v1283 = vunpack.c.l.b16 %v1238
          %v1284 = vunpack.c.l.b16 %v1239
          %v1285 = vunpack.c.l.b16 %v1240
          %v1286 = vunpack.c.l.b16 %v1241
          %v1287 = vunpack.c.l.b16 %v1242
          %v1288 = vunpack.c.l.b16 %v1243
          %v1289 = vunpack.c.l.b16 %v1244
          %v1290 = vunpack.c.l.b16 %v1245
          %v1291 = vunpack.c.l.b16 %v1246
          %v1292 = vunpack.c.l.b16 %v1247
          %v1293 = vpack.c.b16 %v1278, %v1277
          %v1294 = vpack.c.b16 %v1280, %v1279
          %v1295 = vpack.c.b16 %v1282, %v1281
          %v1296 = vpack.c.b16 %v1284, %v1283
          %v1297 = vpack.c.b16 %v1286, %v1285
          %v1298 = vpack.c.b16 %v1288, %v1287
          %v1299 = vpack.c.b16 %v1290, %v1289
          %v1300 = vpack.c.b16 %v1292, %v1291
          %1309 = vmatprep.subr.bf16.mxu0 0
          %1310 = vmatpush1.bf16.msra.mxu0 %v1300
          %1311 = vmatprep.subr.bf16.mxu0 0
          %1312 = vmatpush1.bf16.msra.mxu0 %v1299
          %1313 = vmatprep.subr.bf16.mxu0 0
          %1314 = vmatpush1.bf16.msra.mxu0 %v1298
          %1315 = vmatprep.subr.bf16.mxu0 0
          %1316 = vmatpush1.bf16.msra.mxu0 %v1297
          %1317 = vmatprep.subr.bf16.mxu0 0
          %1318 = vmatpush1.bf16.msra.mxu0 %v1296
          %1319 = vmatprep.subr.bf16.mxu0 0
          %1320 = vmatpush1.bf16.msra.mxu0 %v1295
          %1321 = vmatprep.subr.bf16.mxu0 0
          %1322 = vmatpush1.bf16.msra.mxu0 %v1294
          %1323 = vmatprep.subr.bf16.mxu0 0
          %1324 = vmatpush1.bf16.msra.mxu0 %v1293
          %1325 = vmatprep.subr.bf16.mxu0 0
          %1326 = vmatpush2.bf16.msra.mxu0 0
          %1327 = vmatprep.subr.bf16.mxu0 0
          %1328 = vmatpush2.bf16.msra.mxu0 0
          %1329 = vmatprep.subr.bf16.mxu0 0
          %1330 = vmatpush2.bf16.msra.mxu0 0
          %1331 = vmatprep.subr.bf16.mxu0 0
          %1332 = vmatpush2.bf16.msra.mxu0 0
          %1333 = vmatprep.subr.bf16.mxu0 0
          %1334 = vmatpush2.bf16.msra.mxu0 0
          %1335 = vmatprep.subr.bf16.mxu0 0
          %1336 = vmatpush2.bf16.msra.mxu0 0
          %1337 = vmatprep.subr.bf16.mxu0 0
          %1338 = vmatpush2.bf16.msra.mxu0 0
          %1339 = vmatprep.subr.bf16.mxu0 0
          %1340 = vmatpush2.bf16.msra.mxu0 0
          %1341 = vmatprep.mubr.bf16.mxu0 0
          %1342 = vmatmul.mubr.bf16.gmra.mxu0 %v1259
          %v1343 = vpop.f32.mrf.mxu0
          %v1344 = vadd.f32 %v1253, %v1343
          %v1345 = vpop.f32.mrf.mxu0
          %v1346 = vpop.f32.mrf.mxu0
          %v1347 = vadd.f32 %v1253, %v1346
          %v1348 = vpop.f32.mrf.mxu0
          %1349 = vdwg.mxu0
          %v1350 = vlaneseq
          %v1351 = vshrl.u32 %v1350, 7
          %v1352 = vadd.s32 %v1351, 8
          %vm1353 = vcmp.eq.s32.totalorder %v1351, 0
          %vm1354 = vcmp.eq.s32.totalorder %v1352, 0
          %v1355 = vld [vmem:[#allocation11] sm:$0x1]
          %v1356 = vsel %vm1353, 1, 0
          %v1357 = vsel %vm1354, 1, 0
          %vm1358 = vcmp.eq.s32.totalorder %v1356, 1
          %vm1359 = vcmp.eq.s32.totalorder %v1357, 1
          %v1361 = vlaneseq
          %v1362 = vshrl.u32 %v1361, 7
          %v1363 = vsub.s32 0, %v1362
          %v1364 = vrot.slane %v1355, %v1363
          %v1366 = vsel %vm1358, %v1364, %v1344
          %v1367 = vsel %vm1359, %v1364, %v1347
          %s1368 = smul.u32 %s53, 16
          %s1369 = scalar_lea.vmem [#allocation2], %s1368
          %1370 = vst [vmem:[%s1369] sm:$0xff] %v1366
          %1371 = vst [vmem:[%s1369 + $0x8] sm:$0xff] %v1367
          %1372 = vst [vmem:[%s1138] sm:$0xff] %v1366
          %1373 = vst [vmem:[%s1138 + $0x8] sm:$0xff] %v1367
        $region144: #{tpu_custom_call.1} parent=95 // pred_fallthru
          _
        %p1374 = scmp.gt.s32.totalorder %s52, 0
        // Predicated region
        $region145: #{tpu_custom_call.1} parent=95 // pred_check
          %p1375 = pneg %p1374
        $region146: #{tpu_custom_call.1} parent=95 // pred_check_branch
          %1377 = sbr.rel (%p1375) target = $region148
        $region147: #{tpu_custom_call.1} parent=95 // pred_region
          %s1378 = smul.u32 %s53, 16
          %s1379 = scalar_lea.vmem [#allocation2], %s1378
          %v1380 = vld [vmem:[%s1379] sm:$0xff]
          %v1381 = vld [vmem:[%s1379 + $0x8] sm:$0xff]
          %v1382 = vld [vmem:[%s1144] sm:$0x1]
          %v1383 = vld [vmem:[%s1153] sm:$0x1]
          %1384 = vadd.xlane.f32.xlu0 %v1380
          %v1385 = vpop.xlane.xlu0 %1384
          %1386 = vadd.xlane.f32.xlu0 %v1381
          %v1387 = vpop.xlane.xlu0 %1386
          %v1388 = vrcp.pop 128.0
          %v1389 = vmul.f32 %v1385, %v1388
          %v1390 = vmul.f32 %v1387, %v1388
          %v1391 = vsub.f32 %v1380, %v1389
          %v1392 = vsub.f32 %v1381, %v1390
          %v1393 = vmul.f32 %v1391, %v1391
          %v1394 = vmul.f32 %v1392, %v1392
          %1395 = vadd.xlane.f32.xlu0 %v1393
          %v1396 = vpop.xlane.xlu0 %1395
          %1397 = vadd.xlane.f32.xlu0 %v1394
          %v1398 = vpop.xlane.xlu0 %1397
          %v1399 = vmul.f32 %v1396, %v1388
          %v1400 = vmul.f32 %v1398, %v1388
          %v1401 = vadd.f32 %v1399, 1e-05
          %v1402 = vadd.f32 %v1400, 1e-05
          %v1403 = vrsqrt.pop %v1401
          %v1404 = vrsqrt.pop %v1402
          %v1405 = vmul.f32 %v1391, %v1403
          %v1406 = vmul.f32 %v1392, %v1404
          %v1408 = vlaneseq
          %v1409 = vshrl.u32 %v1408, 7
          %v1410 = vsub.s32 0, %v1409
          %v1411 = vrot.slane %v1382, %v1410
          %v1413 = vmul.f32 %v1405, %v1411
          %v1414 = vmul.f32 %v1406, %v1411
          %v1416 = vlaneseq
          %v1417 = vshrl.u32 %v1416, 7
          %v1418 = vsub.s32 0, %v1417
          %v1419 = vrot.slane %v1383, %v1418
          %v1421 = vadd.f32 %v1413, %v1419
          %v1422 = vadd.f32 %v1414, %v1419
          %v1423 = vpack.c.bf16 %v1422, %v1421
          %v1424 = vld [vmem:[%s981] sm:$0xff]
          %v1425 = vld [vmem:[%s981 + $0x8] sm:$0xf]
          %v1426 = vld [vmem:[%s981 + $0xc] sm:$0xff]
          %v1427 = vld [vmem:[%s981 + $0x14] sm:$0xf]
          %v1428 = vld [vmem:[%s981 + $0x18] sm:$0xff]
          %v1429 = vld [vmem:[%s981 + $0x20] sm:$0xf]
          %v1430 = vld [vmem:[%s981 + $0x24] sm:$0xff]
          %v1431 = vld [vmem:[%s981 + $0x2c] sm:$0xf]
          %v1432 = vld [vmem:[%s981 + $0x30] sm:$0xff]
          %v1433 = vld [vmem:[%s981 + $0x38] sm:$0xf]
          %v1434 = vld [vmem:[%s981 + $0x3c] sm:$0xff]
          %v1435 = vld [vmem:[%s981 + $0x44] sm:$0xf]
          %v1436 = vld [vmem:[%s981 + $0x48] sm:$0xff]
          %v1437 = vld [vmem:[%s981 + $0x50] sm:$0xf]
          %v1438 = vld [vmem:[%s981 + $0x54] sm:$0xff]
          %v1439 = vld [vmem:[%s981 + $0x5c] sm:$0xf]
          %v1440 = vld [vmem:[%s981 + $0x60] sm:$0xff]
          %v1441 = vld [vmem:[%s981 + $0x68] sm:$0xf]
          %v1442 = vld [vmem:[%s981 + $0x6c] sm:$0xff]
          %v1443 = vld [vmem:[%s981 + $0x74] sm:$0xf]
          %v1444 = vld [vmem:[%s981 + $0x78] sm:$0xff]
          %v1445 = vld [vmem:[%s981 + $0x80] sm:$0xf]
          %v1446 = vld [vmem:[%s981 + $0x84] sm:$0xff]
          %v1447 = vld [vmem:[%s981 + $0x8c] sm:$0xf]
          %v1448 = vld [vmem:[%s981 + $0x90] sm:$0xff]
          %v1449 = vld [vmem:[%s981 + $0x98] sm:$0xf]
          %v1450 = vld [vmem:[%s981 + $0x9c] sm:$0xff]
          %v1451 = vld [vmem:[%s981 + $0xa4] sm:$0xf]
          %v1452 = vld [vmem:[%s981 + $0xa8] sm:$0xff]
          %v1453 = vld [vmem:[%s981 + $0xb0] sm:$0xf]
          %v1454 = vld [vmem:[%s981 + $0xb4] sm:$0xff]
          %v1455 = vld [vmem:[%s981 + $0xbc] sm:$0xf]
          %v1456 = vld [vmem:[%s1166] sm:$0x7]
          %v1458 = vlaneseq
          %v1459 = vshrl.u32 %v1458, 7
          %v1460 = vsub.s32 0, %v1459
          %v1461 = vrot.slane %v1456, %v1460
          %v1462 = vlaneseq
          %v1463 = vshrl.u32 %v1462, 7
          %v1464 = vsub.s32 1, %v1463
          %v1465 = vrot.slane %v1456, %v1464
          %v1466 = vlaneseq
          %v1467 = vshrl.u32 %v1466, 7
          %v1468 = vsub.s32 2, %v1467
          %v1469 = vrot.slane %v1456, %v1468
          %v1505 = vunpack.c.l.b16 %v1424
          %v1506 = vunpack.c.h.b16 %v1424
          %v1507 = vunpack.c.l.b16 %v1425
          %v1508 = vunpack.c.l.b16 %v1426
          %v1509 = vunpack.c.h.b16 %v1426
          %v1510 = vunpack.c.l.b16 %v1427
          %v1511 = vunpack.c.l.b16 %v1428
          %v1512 = vunpack.c.h.b16 %v1428
          %v1513 = vunpack.c.l.b16 %v1429
          %v1514 = vunpack.c.l.b16 %v1430
          %v1515 = vunpack.c.h.b16 %v1430
          %v1516 = vunpack.c.l.b16 %v1431
          %v1517 = vunpack.c.l.b16 %v1432
          %v1518 = vunpack.c.h.b16 %v1432
          %v1519 = vunpack.c.l.b16 %v1433
          %v1520 = vunpack.c.l.b16 %v1434
          %v1521 = vunpack.c.h.b16 %v1434
          %v1522 = vunpack.c.l.b16 %v1435
          %v1523 = vunpack.c.l.b16 %v1436
          %v1524 = vunpack.c.h.b16 %v1436
          %v1525 = vunpack.c.l.b16 %v1437
          %v1526 = vunpack.c.l.b16 %v1438
          %v1527 = vunpack.c.h.b16 %v1438
          %v1528 = vunpack.c.l.b16 %v1439
          %v1529 = vunpack.c.l.b16 %v1440
          %v1530 = vunpack.c.h.b16 %v1440
          %v1531 = vunpack.c.l.b16 %v1441
          %v1532 = vunpack.c.l.b16 %v1442
          %v1533 = vunpack.c.h.b16 %v1442
          %v1534 = vunpack.c.l.b16 %v1443
          %v1535 = vunpack.c.l.b16 %v1444
          %v1536 = vunpack.c.h.b16 %v1444
          %v1537 = vunpack.c.l.b16 %v1445
          %v1538 = vunpack.c.l.b16 %v1446
          %v1539 = vunpack.c.h.b16 %v1446
          %v1540 = vunpack.c.l.b16 %v1447
          %v1541 = vunpack.c.l.b16 %v1448
          %v1542 = vunpack.c.h.b16 %v1448
          %v1543 = vunpack.c.l.b16 %v1449
          %v1544 = vunpack.c.l.b16 %v1450
          %v1545 = vunpack.c.h.b16 %v1450
          %v1546 = vunpack.c.l.b16 %v1451
          %v1547 = vunpack.c.l.b16 %v1452
          %v1548 = vunpack.c.h.b16 %v1452
          %v1549 = vunpack.c.l.b16 %v1453
          %v1550 = vunpack.c.l.b16 %v1454
          %v1551 = vunpack.c.h.b16 %v1454
          %v1552 = vunpack.c.l.b16 %v1455
          %v1553 = vpack.c.b16 %v1508, %v1505
          %v1554 = vpack.c.b16 %v1509, %v1506
          %v1555 = vpack.c.b16 %v1510, %v1507
          %v1556 = vpack.c.b16 %v1514, %v1511
          %v1557 = vpack.c.b16 %v1515, %v1512
          %v1558 = vpack.c.b16 %v1516, %v1513
          %v1559 = vpack.c.b16 %v1520, %v1517
          %v1560 = vpack.c.b16 %v1521, %v1518
          %v1561 = vpack.c.b16 %v1522, %v1519
          %v1562 = vpack.c.b16 %v1526, %v1523
          %v1563 = vpack.c.b16 %v1527, %v1524
          %v1564 = vpack.c.b16 %v1528, %v1525
          %v1565 = vpack.c.b16 %v1532, %v1529
          %v1566 = vpack.c.b16 %v1533, %v1530
          %v1567 = vpack.c.b16 %v1534, %v1531
          %v1568 = vpack.c.b16 %v1538, %v1535
          %v1569 = vpack.c.b16 %v1539, %v1536
          %v1570 = vpack.c.b16 %v1540, %v1537
          %v1571 = vpack.c.b16 %v1544, %v1541
          %v1572 = vpack.c.b16 %v1545, %v1542
          %v1573 = vpack.c.b16 %v1546, %v1543
          %v1574 = vpack.c.b16 %v1550, %v1547
          %v1575 = vpack.c.b16 %v1551, %v1548
          %v1576 = vpack.c.b16 %v1552, %v1549
          %1601 = vmatprep.subr.bf16.mxu0 %v1575
          %1602 = vmatpush1.bf16.msra.mxu0 %v1574
          %1603 = vmatprep.subr.bf16.mxu0 %v1572
          %1604 = vmatpush1.bf16.msra.mxu0 %v1571
          %1605 = vmatprep.subr.bf16.mxu0 %v1569
          %1606 = vmatpush1.bf16.msra.mxu0 %v1568
          %1607 = vmatprep.subr.bf16.mxu0 %v1566
          %1608 = vmatpush1.bf16.msra.mxu0 %v1565
          %1609 = vmatprep.subr.bf16.mxu0 %v1563
          %1610 = vmatpush1.bf16.msra.mxu0 %v1562
          %1611 = vmatprep.subr.bf16.mxu0 %v1560
          %1612 = vmatpush1.bf16.msra.mxu0 %v1559
          %1613 = vmatprep.subr.bf16.mxu0 %v1557
          %1614 = vmatpush1.bf16.msra.mxu0 %v1556
          %1615 = vmatprep.subr.bf16.mxu0 %v1554
          %1616 = vmatpush1.bf16.msra.mxu0 %v1553
          %1617 = vmatprep.subr.bf16.mxu0 0
          %1618 = vmatpush2.bf16.msra.mxu0 0
          %1619 = vmatprep.subr.bf16.mxu0 0
          %1620 = vmatpush2.bf16.msra.mxu0 0
          %1621 = vmatprep.subr.bf16.mxu0 0
          %1622 = vmatpush2.bf16.msra.mxu0 0
          %1623 = vmatprep.subr.bf16.mxu0 0
          %1624 = vmatpush2.bf16.msra.mxu0 0
          %1625 = vmatprep.subr.bf16.mxu0 0
          %1626 = vmatpush2.bf16.msra.mxu0 0
          %1627 = vmatprep.subr.bf16.mxu0 0
          %1628 = vmatpush2.bf16.msra.mxu0 0
          %1629 = vmatprep.subr.bf16.mxu0 0
          %1630 = vmatpush2.bf16.msra.mxu0 0
          %1631 = vmatprep.subr.bf16.mxu0 0
          %1632 = vmatpush2.bf16.msra.mxu0 0
          %1633 = vmatprep.mubr.bf16.mxu0 0
          %1634 = vmatmul.mubr.bf16.gmra.mxu0 %v1423
          %v1635 = vpop.f32.mrf.mxu0
          %v1636 = vadd.f32 %v1461, %v1635
          %v1637 = vpop.f32.mrf.mxu0
          %v1638 = vadd.f32 %v1465, %v1637
          %v1639 = vpop.f32.mrf.mxu0
          %v1640 = vadd.f32 %v1461, %v1639
          %v1641 = vpop.f32.mrf.mxu0
          %v1642 = vadd.f32 %v1465, %v1641
          %1643 = vdwg.mxu0
          %1644 = vmatprep.subr.bf16.mxu0 0
          %1645 = vmatpush1.bf16.msra.mxu0 %v1576
          %1646 = vmatprep.subr.bf16.mxu0 0
          %1647 = vmatpush1.bf16.msra.mxu0 %v1573
          %1648 = vmatprep.subr.bf16.mxu0 0
          %1649 = vmatpush1.bf16.msra.mxu0 %v1570
          %1650 = vmatprep.subr.bf16.mxu0 0
          %1651 = vmatpush1.bf16.msra.mxu0 %v1567
          %1652 = vmatprep.subr.bf16.mxu0 0
          %1653 = vmatpush1.bf16.msra.mxu0 %v1564
          %1654 = vmatprep.subr.bf16.mxu0 0
          %1655 = vmatpush1.bf16.msra.mxu0 %v1561
          %1656 = vmatprep.subr.bf16.mxu0 0
          %1657 = vmatpush1.bf16.msra.mxu0 %v1558
          %1658 = vmatprep.subr.bf16.mxu0 0
          %1659 = vmatpush1.bf16.msra.mxu0 %v1555
          %1660 = vmatprep.subr.bf16.mxu0 0
          %1661 = vmatpush2.bf16.msra.mxu0 0
          %1662 = vmatprep.subr.bf16.mxu0 0
          %1663 = vmatpush2.bf16.msra.mxu0 0
          %1664 = vmatprep.subr.bf16.mxu0 0
          %1665 = vmatpush2.bf16.msra.mxu0 0
          %1666 = vmatprep.subr.bf16.mxu0 0
          %1667 = vmatpush2.bf16.msra.mxu0 0
          %1668 = vmatprep.subr.bf16.mxu0 0
          %1669 = vmatpush2.bf16.msra.mxu0 0
          %1670 = vmatprep.subr.bf16.mxu0 0
          %1671 = vmatpush2.bf16.msra.mxu0 0
          %1672 = vmatprep.subr.bf16.mxu0 0
          %1673 = vmatpush2.bf16.msra.mxu0 0
          %1674 = vmatprep.subr.bf16.mxu0 0
          %1675 = vmatpush2.bf16.msra.mxu0 0
          %1676 = vmatprep.mubr.bf16.mxu0 0
          %1677 = vmatmul.mubr.bf16.gmra.mxu0 %v1423
          %v1678 = vpop.f32.mrf.mxu0
          %v1679 = vadd.f32 %v1469, %v1678
          %v1680 = vpop.f32.mrf.mxu0
          %v1681 = vpop.f32.mrf.mxu0
          %v1682 = vadd.f32 %v1469, %v1681
          %v1683 = vpop.f32.mrf.mxu0
          %1684 = vdwg.mxu0
          %v1685 = vpack.c.bf16 %v1640, %v1636
          %v1686 = vpack.c.bf16 %v1642, %v1638
          %v1687 = vpack.c.bf16 %v1682, %v1679
          %v1691 = vunpack.c.l.b16 %v1685
          %v1692 = vunpack.c.l.b16 %v1686
          %v1693 = vunpack.c.l.b16 %v1687
          %v1694 = vunpack.c.h.b16 %v1685
          %v1695 = vunpack.c.h.b16 %v1686
          %v1696 = vunpack.c.h.b16 %v1687
          %v1697 = vpack.c.b16 %v1692, %v1691
          %v1698 = vpack.c.b16 %v1693, %v1693
          %v1699 = vpack.c.b16 %v1695, %v1694
          %v1700 = vpack.c.b16 %v1696, %v1696
          %1705 = vst [vmem:[#allocation3] sm:$0xff] %v1697
          %1706 = vst [vmem:[#allocation3 + $0x8] sm:$0xf] %v1698
          %1707 = vst [vmem:[#allocation3 + $0xc] sm:$0xff] %v1699
          %1708 = vst [vmem:[#allocation3 + $0x14] sm:$0xf] %v1700
          %v1709 = vld [vmem:[%s952] sm:$0xf]
          %v1710 = vld [vmem:[%s952 + $0x4] sm:$0xf]
          %v1711 = vunpack.c.l.bf16 %v1709
          %v1712 = vunpack.c.l.bf16 %v1710
          %v1713 = vlaneseq
          %v1714 = vand.u32 %v1713, 127
          %vm1715 = vcmp.lt.s32.totalorder %v1714, 12
          %v1716 = vld [vmem:[#allocation3] sm:$0xf]
          %v1717 = vld [vmem:[#allocation3 + $0xc] sm:$0xf]
          %v1718 = vld [vmem:[#allocation3 + $0x4] sm:$0xf]
          %v1719 = vld [vmem:[#allocation3 + $0x10] sm:$0xf]
          %v1720 = vld [vmem:[#allocation3 + $0x8] sm:$0xf]
          %v1721 = vld [vmem:[#allocation3 + $0x14] sm:$0xf]
          %s1722 = sld [smem:[#allocation15]]
          %v1723 = vstv %s1722
          %v1724 = vmul.f32 %v1711, %v1723
          %v1725 = vmul.f32 %v1712, %v1723
          %v1728 = vunpack.c.l.b16 %v1716
          %v1729 = vunpack.c.l.b16 %v1717
          %v1730 = vpack.c.b16 %v1729, %v1728
          %v1733 = vunpack.c.l.b16 %v1718
          %v1734 = vunpack.c.l.b16 %v1719
          %v1735 = vpack.c.b16 %v1734, %v1733
          %vm1736 = vcmask 261120
          %v1738 = vsel %vm1736, %v1730, 0
          %v1741 = vsel %vm1736, %v1735, 0
          %1743 = vmatprep.subr.bf16.mxu0 0
          %1744 = vmatpush1.bf16.xpose.msra.mxu0 0
          %1745 = vmatprep.subr.bf16.mxu0 0
          %1746 = vmatpush1.bf16.xpose.msra.mxu0 0
          %1747 = vmatprep.subr.bf16.mxu0 0
          %1748 = vmatpush1.bf16.xpose.msra.mxu0 0
          %1749 = vmatprep.subr.bf16.mxu0 0
          %1750 = vmatpush1.bf16.xpose.msra.mxu0 0
          %1751 = vmatprep.subr.bf16.mxu0 0
          %1752 = vmatpush1.bf16.xpose.msra.mxu0 0
          %1753 = vmatprep.subr.bf16.mxu0 0
          %1754 = vmatpush1.bf16.xpose.msra.mxu0 0
          %1755 = vmatprep.subr.bf16.mxu0 0
          %1756 = vmatpush1.bf16.xpose.msra.mxu0 0
          %1757 = vmatprep.subr.bf16.mxu0 0
          %1758 = vmatpush1.bf16.xpose.msra.mxu0 %v1741
          %1759 = vmatprep.subr.bf16.mxu0 0
          %1760 = vmatpush2.bf16.xpose.msra.mxu0 0
          %1761 = vmatprep.subr.bf16.mxu0 0
          %1762 = vmatpush2.bf16.xpose.msra.mxu0 0
          %1763 = vmatprep.subr.bf16.mxu0 0
          %1764 = vmatpush2.bf16.xpose.msra.mxu0 0
          %1765 = vmatprep.subr.bf16.mxu0 0
          %1766 = vmatpush2.bf16.xpose.msra.mxu0 0
          %1767 = vmatprep.subr.bf16.mxu0 0
          %1768 = vmatpush2.bf16.xpose.msra.mxu0 0
          %1769 = vmatprep.subr.bf16.mxu0 0
          %1770 = vmatpush2.bf16.xpose.msra.mxu0 0
          %1771 = vmatprep.subr.bf16.mxu0 0
          %1772 = vmatpush2.bf16.xpose.msra.mxu0 0
          %1773 = vmatprep.subr.bf16.mxu0 0
          %1774 = vmatpush2.bf16.xpose.msra.mxu0 0
          %1775 = vmatprep.mubr.bf16.mxu0 0
          %1776 = vmatmul.mubr.bf16.gmra.mxu0 %v1738
          %v1777 = vpop.f32.mrf.mxu0
          %v1778 = vadd.f32 %v1724, %v1777
          %v1779 = vpop.f32.mrf.mxu0
          %v1780 = vpop.f32.mrf.mxu0
          %v1781 = vadd.f32 %v1725, %v1780
          %v1782 = vpop.f32.mrf.mxu0
          %1783 = vdwg.mxu0
          %s1784 = sld [smem:[#allocation16]]
          %v1785 = vstv %s1784
          %v1786 = vadd.f32 %v1778, %v1785
          %v1787 = vadd.f32 %v1781, %v1785
          %v1788 = vsel %vm1715, 1, 0
          %vm1789 = vcmp.eq.s32.totalorder %v1788, 1
          %v1790 = vsel %vm1789, %v1786, -1e+09
          %v1791 = vsel %vm1789, %v1787, -1e+09
          %vm1792 = vcmask 130048
          %v1793 = vsel %vm1792, %v1790, -inf
          %1794 = vmax.xlane.f32.xlu0 %v1793
          %v1795 = vpop.xlane.xlu0 %1794
          %v1796 = vsel %vm1792, %v1791, -inf
          %1797 = vmax.xlane.f32.xlu0 %v1796
          %v1798 = vpop.xlane.xlu0 %1797
          %v1799 = vsub.f32 %v1790, %v1795
          %v1800 = vsub.f32 %v1791, %v1798
          %v1801 = vmul.f32 %v1799, 1.442695
          %v1802 = vpow.pop %v1801
          %v1803 = vmul.f32 %v1800, 1.442695
          %v1804 = vpow.pop %v1803
          %v1805 = vsel %vm1792, %v1802, 0.0
          %1806 = vadd.xlane.f32.xlu0 %v1805
          %v1807 = vpop.xlane.xlu0 %1806
          %v1808 = vsel %vm1792, %v1804, 0.0
          %1809 = vadd.xlane.f32.xlu0 %v1808
          %v1810 = vpop.xlane.xlu0 %1809
          %v1811 = vrcp.pop %v1807
          %v1812 = vrcp.pop %v1810
          %v1813 = vpack.c.bf16 %v1804, %v1802
          %v1816 = vunpack.c.l.b16 %v1720
          %v1817 = vunpack.c.l.b16 %v1721
          %v1818 = vpack.c.b16 %v1817, %v1816
          %v1821 = vsel %vm1792, %v1813, 0
          %1823 = vmatprep.subr.bf16.mxu0 0
          %1824 = vmatpush1.bf16.msra.mxu0 0
          %1825 = vmatprep.subr.bf16.mxu0 0
          %1826 = vmatpush1.bf16.msra.mxu0 0
          %1827 = vmatprep.subr.bf16.mxu0 0
          %1828 = vmatpush1.bf16.msra.mxu0 0
          %1829 = vmatprep.subr.bf16.mxu0 0
          %1830 = vmatpush1.bf16.msra.mxu0 0
          %1831 = vmatprep.subr.bf16.mxu0 0
          %1832 = vmatpush1.bf16.msra.mxu0 0
          %1833 = vmatprep.subr.bf16.mxu0 0
          %1834 = vmatpush1.bf16.msra.mxu0 0
          %1835 = vmatprep.subr.bf16.mxu0 0
          %1836 = vmatpush1.bf16.msra.mxu0 0
          %1837 = vmatprep.subr.bf16.mxu0 0
          %1838 = vmatpush1.bf16.msra.mxu0 %v1818
          %1839 = vmatprep.subr.bf16.mxu0 0
          %1840 = vmatpush2.bf16.msra.mxu0 0
          %1841 = vmatprep.subr.bf16.mxu0 0
          %1842 = vmatpush2.bf16.msra.mxu0 0
          %1843 = vmatprep.subr.bf16.mxu0 0
          %1844 = vmatpush2.bf16.msra.mxu0 0
          %1845 = vmatprep.subr.bf16.mxu0 0
          %1846 = vmatpush2.bf16.msra.mxu0 0
          %1847 = vmatprep.subr.bf16.mxu0 0
          %1848 = vmatpush2.bf16.msra.mxu0 0
          %1849 = vmatprep.subr.bf16.mxu0 0
          %1850 = vmatpush2.bf16.msra.mxu0 0
          %1851 = vmatprep.subr.bf16.mxu0 0
          %1852 = vmatpush2.bf16.msra.mxu0 0
          %1853 = vmatprep.subr.bf16.mxu0 0
          %1854 = vmatpush2.bf16.msra.mxu0 0
          %1855 = vmatprep.mubr.bf16.mxu0 0
          %1856 = vmatmul.mubr.bf16.gmra.mxu0 %v1821
          %v1857 = vpop.f32.mrf.mxu0
          %v1858 = vadd.f32 0.0, %v1857
          %v1859 = vpop.f32.mrf.mxu0
          %v1860 = vpop.f32.mrf.mxu0
          %v1861 = vadd.f32 0.0, %v1860
          %v1862 = vpop.f32.mrf.mxu0
          %1863 = vdwg.mxu0
          %v1864 = vmul.f32 %v1858, %v1811
          %v1865 = vmul.f32 %v1861, %v1812
          %v1866 = vpack.c.bf16 %v1865, %v1864
          %v1868 = vunpack.c.l.b16 %v1866
          %v1869 = vunpack.c.h.b16 %v1866
          %v1870 = vpack.c.b16 %v1868, %v1868
          %v1871 = vpack.c.b16 %v1869, %v1869
          %vm1874 = vcmask 257024
          %1875 = vst.msk [vmem:[#allocation4] sm:$0xf] %vm1874, %v1870
          %1876 = vst.msk [vmem:[#allocation4 + $0x4] sm:$0xf] %vm1874, %v1871
          %v1877 = vld [vmem:[#allocation3] sm:$0xf]
          %v1878 = vld [vmem:[#allocation3 + $0xc] sm:$0xf]
          %v1879 = vld [vmem:[#allocation3 + $0x4] sm:$0xf]
          %v1880 = vld [vmem:[#allocation3 + $0x10] sm:$0xf]
          %v1881 = vld [vmem:[#allocation3 + $0x8] sm:$0xf]
          %v1882 = vld [vmem:[#allocation3 + $0x14] sm:$0xf]
          %s1883 = sld [smem:[#allocation15 + $0x1]]
          %v1884 = vstv %s1883
          %v1885 = vmul.f32 %v1711, %v1884
          %v1886 = vmul.f32 %v1712, %v1884
          %v1889 = vunpack.c.l.b16 %v1877
          %v1890 = vunpack.c.l.b16 %v1878
          %v1891 = vpack.c.b16 %v1890, %v1889
          %1892 = vrot.lane.b32.xlu0 %v1891, 96
          %v1893 = vpop.permute.xlu0 %1892
          %v1896 = vunpack.c.l.b16 %v1879
          %v1897 = vunpack.c.l.b16 %v1880
          %v1898 = vpack.c.b16 %v1897, %v1896
          %1899 = vrot.lane.b32.xlu0 %v1898, 96
          %v1900 = vpop.permute.xlu0 %1899
          %v1902 = vsel %vm1736, %v1893, 0
          %v1905 = vsel %vm1736, %v1900, 0
          %1907 = vmatprep.subr.bf16.mxu0 0
          %1908 = vmatpush1.bf16.xpose.msra.mxu0 0
          %1909 = vmatprep.subr.bf16.mxu0 0
          %1910 = vmatpush1.bf16.xpose.msra.mxu0 0
          %1911 = vmatprep.subr.bf16.mxu0 0
          %1912 = vmatpush1.bf16.xpose.msra.mxu0 0
          %1913 = vmatprep.subr.bf16.mxu0 0
          %1914 = vmatpush1.bf16.xpose.msra.mxu0 0
          %1915 = vmatprep.subr.bf16.mxu0 0
          %1916 = vmatpush1.bf16.xpose.msra.mxu0 0
          %1917 = vmatprep.subr.bf16.mxu0 0
          %1918 = vmatpush1.bf16.xpose.msra.mxu0 0
          %1919 = vmatprep.subr.bf16.mxu0 0
          %1920 = vmatpush1.bf16.xpose.msra.mxu0 0
          %1921 = vmatprep.subr.bf16.mxu0 0
          %1922 = vmatpush1.bf16.xpose.msra.mxu0 %v1905
          %1923 = vmatprep.subr.bf16.mxu0 0
          %1924 = vmatpush2.bf16.xpose.msra.mxu0 0
          %1925 = vmatprep.subr.bf16.mxu0 0
          %1926 = vmatpush2.bf16.xpose.msra.mxu0 0
          %1927 = vmatprep.subr.bf16.mxu0 0
          %1928 = vmatpush2.bf16.xpose.msra.mxu0 0
          %1929 = vmatprep.subr.bf16.mxu0 0
          %1930 = vmatpush2.bf16.xpose.msra.mxu0 0
          %1931 = vmatprep.subr.bf16.mxu0 0
          %1932 = vmatpush2.bf16.xpose.msra.mxu0 0
          %1933 = vmatprep.subr.bf16.mxu0 0
          %1934 = vmatpush2.bf16.xpose.msra.mxu0 0
          %1935 = vmatprep.subr.bf16.mxu0 0
          %1936 = vmatpush2.bf16.xpose.msra.mxu0 0
          %1937 = vmatprep.subr.bf16.mxu0 0
          %1938 = vmatpush2.bf16.xpose.msra.mxu0 0
          %1939 = vmatprep.mubr.bf16.mxu0 0
          %1940 = vmatmul.mubr.bf16.gmra.mxu0 %v1902
          %v1941 = vpop.f32.mrf.mxu0
          %v1942 = vadd.f32 %v1885, %v1941
          %v1943 = vpop.f32.mrf.mxu0
          %v1944 = vpop.f32.mrf.mxu0
          %v1945 = vadd.f32 %v1886, %v1944
          %v1946 = vpop.f32.mrf.mxu0
          %1947 = vdwg.mxu0
          %s1948 = sld [smem:[#allocation16 + $0x1]]
          %v1949 = vstv %s1948
          %v1950 = vadd.f32 %v1942, %v1949
          %v1951 = vadd.f32 %v1945, %v1949
          %v1952 = vsel %vm1789, %v1950, -1e+09
          %v1953 = vsel %vm1789, %v1951, -1e+09
          %v1954 = vsel %vm1792, %v1952, -inf
          %1955 = vmax.xlane.f32.xlu0 %v1954
          %v1956 = vpop.xlane.xlu0 %1955
          %v1957 = vsel %vm1792, %v1953, -inf
          %1958 = vmax.xlane.f32.xlu0 %v1957
          %v1959 = vpop.xlane.xlu0 %1958
          %v1960 = vsub.f32 %v1952, %v1956
          %v1961 = vsub.f32 %v1953, %v1959
          %v1962 = vmul.f32 %v1960, 1.442695
          %v1963 = vpow.pop %v1962
          %v1964 = vmul.f32 %v1961, 1.442695
          %v1965 = vpow.pop %v1964
          %v1966 = vsel %vm1792, %v1963, 0.0
          %1967 = vadd.xlane.f32.xlu0 %v1966
          %v1968 = vpop.xlane.xlu0 %1967
          %v1969 = vsel %vm1792, %v1965, 0.0
          %1970 = vadd.xlane.f32.xlu0 %v1969
          %v1971 = vpop.xlane.xlu0 %1970
          %v1972 = vrcp.pop %v1968
          %v1973 = vrcp.pop %v1971
          %v1974 = vpack.c.bf16 %v1965, %v1963
          %v1977 = vunpack.c.l.b16 %v1881
          %v1978 = vunpack.c.l.b16 %v1882
          %v1979 = vpack.c.b16 %v1978, %v1977
          %1980 = vrot.lane.b32.xlu0 %v1979, 96
          %v1981 = vpop.permute.xlu0 %1980
          %v1984 = vsel %vm1792, %v1974, 0
          %1986 = vmatprep.subr.bf16.mxu0 0
          %1987 = vmatpush1.bf16.msra.mxu0 0
          %1988 = vmatprep.subr.bf16.mxu0 0
          %1989 = vmatpush1.bf16.msra.mxu0 0
          %1990 = vmatprep.subr.bf16.mxu0 0
          %1991 = vmatpush1.bf16.msra.mxu0 0
          %1992 = vmatprep.subr.bf16.mxu0 0
          %1993 = vmatpush1.bf16.msra.mxu0 0
          %1994 = vmatprep.subr.bf16.mxu0 0
          %1995 = vmatpush1.bf16.msra.mxu0 0
          %1996 = vmatprep.subr.bf16.mxu0 0
          %1997 = vmatpush1.bf16.msra.mxu0 0
          %1998 = vmatprep.subr.bf16.mxu0 0
          %1999 = vmatpush1.bf16.msra.mxu0 0
          %2000 = vmatprep.subr.bf16.mxu0 0
          %2001 = vmatpush1.bf16.msra.mxu0 %v1981
          %2002 = vmatprep.subr.bf16.mxu0 0
          %2003 = vmatpush2.bf16.msra.mxu0 0
          %2004 = vmatprep.subr.bf16.mxu0 0
          %2005 = vmatpush2.bf16.msra.mxu0 0
          %2006 = vmatprep.subr.bf16.mxu0 0
          %2007 = vmatpush2.bf16.msra.mxu0 0
          %2008 = vmatprep.subr.bf16.mxu0 0
          %2009 = vmatpush2.bf16.msra.mxu0 0
          %2010 = vmatprep.subr.bf16.mxu0 0
          %2011 = vmatpush2.bf16.msra.mxu0 0
          %2012 = vmatprep.subr.bf16.mxu0 0
          %2013 = vmatpush2.bf16.msra.mxu0 0
          %2014 = vmatprep.subr.bf16.mxu0 0
          %2015 = vmatpush2.bf16.msra.mxu0 0
          %2016 = vmatprep.subr.bf16.mxu0 0
          %2017 = vmatpush2.bf16.msra.mxu0 0
          %2018 = vmatprep.mubr.bf16.mxu0 0
          %2019 = vmatmul.mubr.bf16.gmra.mxu0 %v1984
          %v2020 = vpop.f32.mrf.mxu0
          %v2021 = vadd.f32 0.0, %v2020
          %v2022 = vpop.f32.mrf.mxu0
          %v2023 = vpop.f32.mrf.mxu0
          %v2024 = vadd.f32 0.0, %v2023
          %v2025 = vpop.f32.mrf.mxu0
          %2026 = vdwg.mxu0
          %v2027 = vmul.f32 %v2021, %v1972
          %v2028 = vmul.f32 %v2024, %v1973
          %v2029 = vpack.c.bf16 %v2028, %v2027
          %v2031 = vunpack.c.l.b16 %v2029
          %v2032 = vunpack.c.h.b16 %v2029
          %v2033 = vpack.c.b16 %v2031, %v2031
          %v2034 = vpack.c.b16 %v2032, %v2032
          %2035 = vrot.lane.b32.xlu0 %v2033, 32
          %v2036 = vpop.permute.xlu0 %2035
          %2037 = vrot.lane.b32.xlu0 %v2034, 32
          %v2038 = vpop.permute.xlu0 %2037
          %vm2041 = vcmask 519424
          %2042 = vst.msk [vmem:[#allocation4] sm:$0xf] %vm2041, %v2036
          %2043 = vst.msk [vmem:[#allocation4 + $0x4] sm:$0xf] %vm2041, %v2038
          %v2044 = vld [vmem:[#allocation3] sm:$0xf]
          %v2045 = vld [vmem:[#allocation3 + $0xc] sm:$0xf]
          %v2046 = vld [vmem:[#allocation3 + $0x4] sm:$0xf]
          %v2047 = vld [vmem:[#allocation3 + $0x10] sm:$0xf]
          %v2048 = vld [vmem:[#allocation3 + $0x8] sm:$0xf]
          %v2049 = vld [vmem:[#allocation3 + $0x14] sm:$0xf]
          %s2050 = sld [smem:[#allocation15 + $0x2]]
          %v2051 = vstv %s2050
          %v2052 = vmul.f32 %v1711, %v2051
          %v2053 = vmul.f32 %v1712, %v2051
          %v2056 = vunpack.c.l.b16 %v2044
          %v2057 = vunpack.c.l.b16 %v2045
          %v2058 = vpack.c.b16 %v2057, %v2056
          %2059 = vrot.lane.b32.xlu0 %v2058, 64
          %v2060 = vpop.permute.xlu0 %2059
          %v2063 = vunpack.c.l.b16 %v2046
          %v2064 = vunpack.c.l.b16 %v2047
          %v2065 = vpack.c.b16 %v2064, %v2063
          %2066 = vrot.lane.b32.xlu0 %v2065, 64
          %v2067 = vpop.permute.xlu0 %2066
          %v2069 = vsel %vm1736, %v2060, 0
          %v2072 = vsel %vm1736, %v2067, 0
          %2074 = vmatprep.subr.bf16.mxu0 0
          %2075 = vmatpush1.bf16.xpose.msra.mxu0 0
          %2076 = vmatprep.subr.bf16.mxu0 0
          %2077 = vmatpush1.bf16.xpose.msra.mxu0 0
          %2078 = vmatprep.subr.bf16.mxu0 0
          %2079 = vmatpush1.bf16.xpose.msra.mxu0 0
          %2080 = vmatprep.subr.bf16.mxu0 0
          %2081 = vmatpush1.bf16.xpose.msra.mxu0 0
          %2082 = vmatprep.subr.bf16.mxu0 0
          %2083 = vmatpush1.bf16.xpose.msra.mxu0 0
          %2084 = vmatprep.subr.bf16.mxu0 0
          %2085 = vmatpush1.bf16.xpose.msra.mxu0 0
          %2086 = vmatprep.subr.bf16.mxu0 0
          %2087 = vmatpush1.bf16.xpose.msra.mxu0 0
          %2088 = vmatprep.subr.bf16.mxu0 0
          %2089 = vmatpush1.bf16.xpose.msra.mxu0 %v2072
          %2090 = vmatprep.subr.bf16.mxu0 0
          %2091 = vmatpush2.bf16.xpose.msra.mxu0 0
          %2092 = vmatprep.subr.bf16.mxu0 0
          %2093 = vmatpush2.bf16.xpose.msra.mxu0 0
          %2094 = vmatprep.subr.bf16.mxu0 0
          %2095 = vmatpush2.bf16.xpose.msra.mxu0 0
          %2096 = vmatprep.subr.bf16.mxu0 0
          %2097 = vmatpush2.bf16.xpose.msra.mxu0 0
          %2098 = vmatprep.subr.bf16.mxu0 0
          %2099 = vmatpush2.bf16.xpose.msra.mxu0 0
          %2100 = vmatprep.subr.bf16.mxu0 0
          %2101 = vmatpush2.bf16.xpose.msra.mxu0 0
          %2102 = vmatprep.subr.bf16.mxu0 0
          %2103 = vmatpush2.bf16.xpose.msra.mxu0 0
          %2104 = vmatprep.subr.bf16.mxu0 0
          %2105 = vmatpush2.bf16.xpose.msra.mxu0 0
          %2106 = vmatprep.mubr.bf16.mxu0 0
          %2107 = vmatmul.mubr.bf16.gmra.mxu0 %v2069
          %v2108 = vpop.f32.mrf.mxu0
          %v2109 = vadd.f32 %v2052, %v2108
          %v2110 = vpop.f32.mrf.mxu0
          %v2111 = vpop.f32.mrf.mxu0
          %v2112 = vadd.f32 %v2053, %v2111
          %v2113 = vpop.f32.mrf.mxu0
          %2114 = vdwg.mxu0
          %s2115 = sld [smem:[#allocation16 + $0x2]]
          %v2116 = vstv %s2115
          %v2117 = vadd.f32 %v2109, %v2116
          %v2118 = vadd.f32 %v2112, %v2116
          %v2119 = vsel %vm1789, %v2117, -1e+09
          %v2120 = vsel %vm1789, %v2118, -1e+09
          %v2121 = vsel %vm1792, %v2119, -inf
          %2122 = vmax.xlane.f32.xlu0 %v2121
          %v2123 = vpop.xlane.xlu0 %2122
          %v2124 = vsel %vm1792, %v2120, -inf
          %2125 = vmax.xlane.f32.xlu0 %v2124
          %v2126 = vpop.xlane.xlu0 %2125
          %v2127 = vsub.f32 %v2119, %v2123
          %v2128 = vsub.f32 %v2120, %v2126
          %v2129 = vmul.f32 %v2127, 1.442695
          %v2130 = vpow.pop %v2129
          %v2131 = vmul.f32 %v2128, 1.442695
          %v2132 = vpow.pop %v2131
          %v2133 = vsel %vm1792, %v2130, 0.0
          %2134 = vadd.xlane.f32.xlu0 %v2133
          %v2135 = vpop.xlane.xlu0 %2134
          %v2136 = vsel %vm1792, %v2132, 0.0
          %2137 = vadd.xlane.f32.xlu0 %v2136
          %v2138 = vpop.xlane.xlu0 %2137
          %v2139 = vrcp.pop %v2135
          %v2140 = vrcp.pop %v2138
          %v2141 = vpack.c.bf16 %v2132, %v2130
          %v2144 = vunpack.c.l.b16 %v2048
          %v2145 = vunpack.c.l.b16 %v2049
          %v2146 = vpack.c.b16 %v2145, %v2144
          %2147 = vrot.lane.b32.xlu0 %v2146, 64
          %v2148 = vpop.permute.xlu0 %2147
          %v2151 = vsel %vm1792, %v2141, 0
          %2153 = vmatprep.subr.bf16.mxu0 0
          %2154 = vmatpush1.bf16.msra.mxu0 0
          %2155 = vmatprep.subr.bf16.mxu0 0
          %2156 = vmatpush1.bf16.msra.mxu0 0
          %2157 = vmatprep.subr.bf16.mxu0 0
          %2158 = vmatpush1.bf16.msra.mxu0 0
          %2159 = vmatprep.subr.bf16.mxu0 0
          %2160 = vmatpush1.bf16.msra.mxu0 0
          %2161 = vmatprep.subr.bf16.mxu0 0
          %2162 = vmatpush1.bf16.msra.mxu0 0
          %2163 = vmatprep.subr.bf16.mxu0 0
          %2164 = vmatpush1.bf16.msra.mxu0 0
          %2165 = vmatprep.subr.bf16.mxu0 0
          %2166 = vmatpush1.bf16.msra.mxu0 0
          %2167 = vmatprep.subr.bf16.mxu0 0
          %2168 = vmatpush1.bf16.msra.mxu0 %v2148
          %2169 = vmatprep.subr.bf16.mxu0 0
          %2170 = vmatpush2.bf16.msra.mxu0 0
          %2171 = vmatprep.subr.bf16.mxu0 0
          %2172 = vmatpush2.bf16.msra.mxu0 0
          %2173 = vmatprep.subr.bf16.mxu0 0
          %2174 = vmatpush2.bf16.msra.mxu0 0
          %2175 = vmatprep.subr.bf16.mxu0 0
          %2176 = vmatpush2.bf16.msra.mxu0 0
          %2177 = vmatprep.subr.bf16.mxu0 0
          %2178 = vmatpush2.bf16.msra.mxu0 0
          %2179 = vmatprep.subr.bf16.mxu0 0
          %2180 = vmatpush2.bf16.msra.mxu0 0
          %2181 = vmatprep.subr.bf16.mxu0 0
          %2182 = vmatpush2.bf16.msra.mxu0 0
          %2183 = vmatprep.subr.bf16.mxu0 0
          %2184 = vmatpush2.bf16.msra.mxu0 0
          %2185 = vmatprep.mubr.bf16.mxu0 0
          %2186 = vmatmul.mubr.bf16.gmra.mxu0 %v2151
          %v2187 = vpop.f32.mrf.mxu0
          %v2188 = vadd.f32 0.0, %v2187
          %v2189 = vpop.f32.mrf.mxu0
          %v2190 = vpop.f32.mrf.mxu0
          %v2191 = vadd.f32 0.0, %v2190
          %v2192 = vpop.f32.mrf.mxu0
          %2193 = vdwg.mxu0
          %v2194 = vmul.f32 %v2188, %v2139
          %v2195 = vmul.f32 %v2191, %v2140
          %v2196 = vpack.c.bf16 %v2195, %v2194
          %v2198 = vunpack.c.l.b16 %v2196
          %v2199 = vunpack.c.h.b16 %v2196
          %v2200 = vpack.c.b16 %v2198, %v2198
          %v2201 = vpack.c.b16 %v2199, %v2199
          %2202 = vrot.lane.b32.xlu0 %v2200, 64
          %v2203 = vpop.permute.xlu0 %2202
          %2204 = vrot.lane.b32.xlu0 %v2201, 64
          %v2205 = vpop.permute.xlu0 %2204
          %vm2208 = vcmask 781824
          %2209 = vst.msk [vmem:[#allocation4] sm:$0xf] %vm2208, %v2203
          %2210 = vst.msk [vmem:[#allocation4 + $0x4] sm:$0xf] %vm2208, %v2205
          %v2211 = vld [vmem:[#allocation3] sm:$0xf]
          %v2212 = vld [vmem:[#allocation3 + $0xc] sm:$0xf]
          %v2213 = vld [vmem:[#allocation3 + $0x4] sm:$0xf]
          %v2214 = vld [vmem:[#allocation3 + $0x10] sm:$0xf]
          %v2215 = vld [vmem:[#allocation3 + $0x8] sm:$0xf]
          %v2216 = vld [vmem:[#allocation3 + $0x14] sm:$0xf]
          %s2217 = sld [smem:[#allocation15 + $0x3]]
          %v2218 = vstv %s2217
          %v2219 = vmul.f32 %v1711, %v2218
          %v2220 = vmul.f32 %v1712, %v2218
          %v2223 = vunpack.c.l.b16 %v2211
          %v2224 = vunpack.c.l.b16 %v2212
          %v2225 = vpack.c.b16 %v2224, %v2223
          %2226 = vrot.lane.b32.xlu0 %v2225, 32
          %v2227 = vpop.permute.xlu0 %2226
          %v2230 = vunpack.c.l.b16 %v2213
          %v2231 = vunpack.c.l.b16 %v2214
          %v2232 = vpack.c.b16 %v2231, %v2230
          %2233 = vrot.lane.b32.xlu0 %v2232, 32
          %v2234 = vpop.permute.xlu0 %2233
          %v2236 = vsel %vm1736, %v2227, 0
          %v2239 = vsel %vm1736, %v2234, 0
          %2241 = vmatprep.subr.bf16.mxu0 0
          %2242 = vmatpush1.bf16.xpose.msra.mxu0 0
          %2243 = vmatprep.subr.bf16.mxu0 0
          %2244 = vmatpush1.bf16.xpose.msra.mxu0 0
          %2245 = vmatprep.subr.bf16.mxu0 0
          %2246 = vmatpush1.bf16.xpose.msra.mxu0 0
          %2247 = vmatprep.subr.bf16.mxu0 0
          %2248 = vmatpush1.bf16.xpose.msra.mxu0 0
          %2249 = vmatprep.subr.bf16.mxu0 0
          %2250 = vmatpush1.bf16.xpose.msra.mxu0 0
          %2251 = vmatprep.subr.bf16.mxu0 0
          %2252 = vmatpush1.bf16.xpose.msra.mxu0 0
          %2253 = vmatprep.subr.bf16.mxu0 0
          %2254 = vmatpush1.bf16.xpose.msra.mxu0 0
          %2255 = vmatprep.subr.bf16.mxu0 0
          %2256 = vmatpush1.bf16.xpose.msra.mxu0 %v2239
          %2257 = vmatprep.subr.bf16.mxu0 0
          %2258 = vmatpush2.bf16.xpose.msra.mxu0 0
          %2259 = vmatprep.subr.bf16.mxu0 0
          %2260 = vmatpush2.bf16.xpose.msra.mxu0 0
          %2261 = vmatprep.subr.bf16.mxu0 0
          %2262 = vmatpush2.bf16.xpose.msra.mxu0 0
          %2263 = vmatprep.subr.bf16.mxu0 0
          %2264 = vmatpush2.bf16.xpose.msra.mxu0 0
          %2265 = vmatprep.subr.bf16.mxu0 0
          %2266 = vmatpush2.bf16.xpose.msra.mxu0 0
          %2267 = vmatprep.subr.bf16.mxu0 0
          %2268 = vmatpush2.bf16.xpose.msra.mxu0 0
          %2269 = vmatprep.subr.bf16.mxu0 0
          %2270 = vmatpush2.bf16.xpose.msra.mxu0 0
          %2271 = vmatprep.subr.bf16.mxu0 0
          %2272 = vmatpush2.bf16.xpose.msra.mxu0 0
          %2273 = vmatprep.mubr.bf16.mxu0 0
          %2274 = vmatmul.mubr.bf16.gmra.mxu0 %v2236
          %v2275 = vpop.f32.mrf.mxu0
          %v2276 = vadd.f32 %v2219, %v2275
          %v2277 = vpop.f32.mrf.mxu0
          %v2278 = vpop.f32.mrf.mxu0
          %v2279 = vadd.f32 %v2220, %v2278
          %v2280 = vpop.f32.mrf.mxu0
          %2281 = vdwg.mxu0
          %s2282 = sld [smem:[#allocation16 + $0x3]]
          %v2283 = vstv %s2282
          %v2284 = vadd.f32 %v2276, %v2283
          %v2285 = vadd.f32 %v2279, %v2283
          %v2286 = vsel %vm1789, %v2284, -1e+09
          %v2287 = vsel %vm1789, %v2285, -1e+09
          %v2288 = vsel %vm1792, %v2286, -inf
          %2289 = vmax.xlane.f32.xlu0 %v2288
          %v2290 = vpop.xlane.xlu0 %2289
          %v2291 = vsel %vm1792, %v2287, -inf
          %2292 = vmax.xlane.f32.xlu0 %v2291
          %v2293 = vpop.xlane.xlu0 %2292
          %v2294 = vsub.f32 %v2286, %v2290
          %v2295 = vsub.f32 %v2287, %v2293
          %v2296 = vmul.f32 %v2294, 1.442695
          %v2297 = vpow.pop %v2296
          %v2298 = vmul.f32 %v2295, 1.442695
          %v2299 = vpow.pop %v2298
          %v2300 = vsel %vm1792, %v2297, 0.0
          %2301 = vadd.xlane.f32.xlu0 %v2300
          %v2302 = vpop.xlane.xlu0 %2301
          %v2303 = vsel %vm1792, %v2299, 0.0
          %2304 = vadd.xlane.f32.xlu0 %v2303
          %v2305 = vpop.xlane.xlu0 %2304
          %v2306 = vrcp.pop %v2302
          %v2307 = vrcp.pop %v2305
          %v2308 = vpack.c.bf16 %v2299, %v2297
          %v2311 = vunpack.c.l.b16 %v2215
          %v2312 = vunpack.c.l.b16 %v2216
          %v2313 = vpack.c.b16 %v2312, %v2311
          %2314 = vrot.lane.b32.xlu0 %v2313, 32
          %v2315 = vpop.permute.xlu0 %2314
          %v2318 = vsel %vm1792, %v2308, 0
          %2320 = vmatprep.subr.bf16.mxu0 0
          %2321 = vmatpush1.bf16.msra.mxu0 0
          %2322 = vmatprep.subr.bf16.mxu0 0
          %2323 = vmatpush1.bf16.msra.mxu0 0
          %2324 = vmatprep.subr.bf16.mxu0 0
          %2325 = vmatpush1.bf16.msra.mxu0 0
          %2326 = vmatprep.subr.bf16.mxu0 0
          %2327 = vmatpush1.bf16.msra.mxu0 0
          %2328 = vmatprep.subr.bf16.mxu0 0
          %2329 = vmatpush1.bf16.msra.mxu0 0
          %2330 = vmatprep.subr.bf16.mxu0 0
          %2331 = vmatpush1.bf16.msra.mxu0 0
          %2332 = vmatprep.subr.bf16.mxu0 0
          %2333 = vmatpush1.bf16.msra.mxu0 0
          %2334 = vmatprep.subr.bf16.mxu0 0
          %2335 = vmatpush1.bf16.msra.mxu0 %v2315
          %2336 = vmatprep.subr.bf16.mxu0 0
          %2337 = vmatpush2.bf16.msra.mxu0 0
          %2338 = vmatprep.subr.bf16.mxu0 0
          %2339 = vmatpush2.bf16.msra.mxu0 0
          %2340 = vmatprep.subr.bf16.mxu0 0
          %2341 = vmatpush2.bf16.msra.mxu0 0
          %2342 = vmatprep.subr.bf16.mxu0 0
          %2343 = vmatpush2.bf16.msra.mxu0 0
          %2344 = vmatprep.subr.bf16.mxu0 0
          %2345 = vmatpush2.bf16.msra.mxu0 0
          %2346 = vmatprep.subr.bf16.mxu0 0
          %2347 = vmatpush2.bf16.msra.mxu0 0
          %2348 = vmatprep.subr.bf16.mxu0 0
          %2349 = vmatpush2.bf16.msra.mxu0 0
          %2350 = vmatprep.subr.bf16.mxu0 0
          %2351 = vmatpush2.bf16.msra.mxu0 0
          %2352 = vmatprep.mubr.bf16.mxu0 0
          %2353 = vmatmul.mubr.bf16.gmra.mxu0 %v2318
          %v2354 = vpop.f32.mrf.mxu0
          %v2355 = vadd.f32 0.0, %v2354
          %v2356 = vpop.f32.mrf.mxu0
          %v2357 = vpop.f32.mrf.mxu0
          %v2358 = vadd.f32 0.0, %v2357
          %v2359 = vpop.f32.mrf.mxu0
          %2360 = vdwg.mxu0
          %v2361 = vmul.f32 %v2355, %v2306
          %v2362 = vmul.f32 %v2358, %v2307
          %v2363 = vpack.c.bf16 %v2362, %v2361
          %v2365 = vunpack.c.l.b16 %v2363
          %v2366 = vunpack.c.h.b16 %v2363
          %v2367 = vpack.c.b16 %v2365, %v2365
          %v2368 = vpack.c.b16 %v2366, %v2366
          %2369 = vrot.lane.b32.xlu0 %v2367, 96
          %v2370 = vpop.permute.xlu0 %2369
          %2371 = vrot.lane.b32.xlu0 %v2368, 96
          %v2372 = vpop.permute.xlu0 %2371
          %vm2375 = vcmask 1044224
          %2376 = vst.msk [vmem:[#allocation4] sm:$0xf] %vm2375, %v2370
          %2377 = vst.msk [vmem:[#allocation4 + $0x4] sm:$0xf] %vm2375, %v2372
          %v2378 = vld [vmem:[#allocation4] sm:$0xf]
          %v2379 = vld [vmem:[#allocation4 + $0x4] sm:$0xf]
          %v2380 = vld [vmem:[%s990] sm:$0xf]
          %v2381 = vld [vmem:[%s990 + $0x4] sm:$0xf]
          %v2382 = vld [vmem:[%s990 + $0x8] sm:$0xf]
          %v2383 = vld [vmem:[%s990 + $0xc] sm:$0xf]
          %v2384 = vld [vmem:[%s990 + $0x10] sm:$0xf]
          %v2385 = vld [vmem:[%s990 + $0x14] sm:$0xf]
          %v2386 = vld [vmem:[%s990 + $0x18] sm:$0xf]
          %v2387 = vld [vmem:[%s990 + $0x1c] sm:$0xf]
          %v2388 = vld [vmem:[%s990 + $0x20] sm:$0xf]
          %v2389 = vld [vmem:[%s990 + $0x24] sm:$0xf]
          %v2390 = vld [vmem:[%s990 + $0x28] sm:$0xf]
          %v2391 = vld [vmem:[%s990 + $0x2c] sm:$0xf]
          %v2392 = vld [vmem:[%s990 + $0x30] sm:$0xf]
          %v2393 = vld [vmem:[%s990 + $0x34] sm:$0xf]
          %v2394 = vld [vmem:[%s990 + $0x38] sm:$0xf]
          %v2395 = vld [vmem:[%s990 + $0x3c] sm:$0xf]
          %v2398 = vunpack.c.l.b16 %v2378
          %v2399 = vunpack.c.l.b16 %v2379
          %v2400 = vpack.c.b16 %v2399, %v2398
          %v2418 = vunpack.c.l.b16 %v2380
          %v2419 = vunpack.c.l.b16 %v2381
          %v2420 = vunpack.c.l.b16 %v2382
          %v2421 = vunpack.c.l.b16 %v2383
          %v2422 = vunpack.c.l.b16 %v2384
          %v2423 = vunpack.c.l.b16 %v2385
          %v2424 = vunpack.c.l.b16 %v2386
          %v2425 = vunpack.c.l.b16 %v2387
          %v2426 = vunpack.c.l.b16 %v2388
          %v2427 = vunpack.c.l.b16 %v2389
          %v2428 = vunpack.c.l.b16 %v2390
          %v2429 = vunpack.c.l.b16 %v2391
          %v2430 = vunpack.c.l.b16 %v2392
          %v2431 = vunpack.c.l.b16 %v2393
          %v2432 = vunpack.c.l.b16 %v2394
          %v2433 = vunpack.c.l.b16 %v2395
          %v2434 = vpack.c.b16 %v2419, %v2418
          %v2435 = vpack.c.b16 %v2421, %v2420
          %v2436 = vpack.c.b16 %v2423, %v2422
          %v2437 = vpack.c.b16 %v2425, %v2424
          %v2438 = vpack.c.b16 %v2427, %v2426
          %v2439 = vpack.c.b16 %v2429, %v2428
          %v2440 = vpack.c.b16 %v2431, %v2430
          %v2441 = vpack.c.b16 %v2433, %v2432
          %2450 = vmatprep.subr.bf16.mxu0 0
          %2451 = vmatpush1.bf16.msra.mxu0 %v2441
          %2452 = vmatprep.subr.bf16.mxu0 0
          %2453 = vmatpush1.bf16.msra.mxu0 %v2440
          %2454 = vmatprep.subr.bf16.mxu0 0
          %2455 = vmatpush1.bf16.msra.mxu0 %v2439
          %2456 = vmatprep.subr.bf16.mxu0 0
          %2457 = vmatpush1.bf16.msra.mxu0 %v2438
          %2458 = vmatprep.subr.bf16.mxu0 0
          %2459 = vmatpush1.bf16.msra.mxu0 %v2437
          %2460 = vmatprep.subr.bf16.mxu0 0
          %2461 = vmatpush1.bf16.msra.mxu0 %v2436
          %2462 = vmatprep.subr.bf16.mxu0 0
          %2463 = vmatpush1.bf16.msra.mxu0 %v2435
          %2464 = vmatprep.subr.bf16.mxu0 0
          %2465 = vmatpush1.bf16.msra.mxu0 %v2434
          %2466 = vmatprep.subr.bf16.mxu0 0
          %2467 = vmatpush2.bf16.msra.mxu0 0
          %2468 = vmatprep.subr.bf16.mxu0 0
          %2469 = vmatpush2.bf16.msra.mxu0 0
          %2470 = vmatprep.subr.bf16.mxu0 0
          %2471 = vmatpush2.bf16.msra.mxu0 0
          %2472 = vmatprep.subr.bf16.mxu0 0
          %2473 = vmatpush2.bf16.msra.mxu0 0
          %2474 = vmatprep.subr.bf16.mxu0 0
          %2475 = vmatpush2.bf16.msra.mxu0 0
          %2476 = vmatprep.subr.bf16.mxu0 0
          %2477 = vmatpush2.bf16.msra.mxu0 0
          %2478 = vmatprep.subr.bf16.mxu0 0
          %2479 = vmatpush2.bf16.msra.mxu0 0
          %2480 = vmatprep.subr.bf16.mxu0 0
          %2481 = vmatpush2.bf16.msra.mxu0 0
          %2482 = vmatprep.mubr.bf16.mxu0 0
          %2483 = vmatmul.mubr.bf16.gmra.mxu0 %v2400
          %v2484 = vpop.f32.mrf.mxu0
          %v2485 = vadd.f32 0.0, %v2484
          %v2486 = vpop.f32.mrf.mxu0
          %v2487 = vpop.f32.mrf.mxu0
          %v2488 = vadd.f32 0.0, %v2487
          %v2489 = vpop.f32.mrf.mxu0
          %2490 = vdwg.mxu0
          %v2491 = vadd.f32 %v1380, %v2485
          %v2492 = vadd.f32 %v1381, %v2488
          %v2493 = vld [vmem:[%s1178] sm:$0x1]
          %v2495 = vlaneseq
          %v2496 = vshrl.u32 %v2495, 7
          %v2497 = vsub.s32 0, %v2496
          %v2498 = vrot.slane %v2493, %v2497
          %v2500 = vadd.f32 %v2491, %v2498
          %v2501 = vadd.f32 %v2492, %v2498
          %v2502 = vld [vmem:[%s1187] sm:$0x1]
          %v2503 = vld [vmem:[%s1196] sm:$0x1]
          %2504 = vadd.xlane.f32.xlu0 %v2500
          %v2505 = vpop.xlane.xlu0 %2504
          %2506 = vadd.xlane.f32.xlu0 %v2501
          %v2507 = vpop.xlane.xlu0 %2506
          %v2508 = vmul.f32 %v2505, %v1388
          %v2509 = vmul.f32 %v2507, %v1388
          %v2510 = vsub.f32 %v2500, %v2508
          %v2511 = vsub.f32 %v2501, %v2509
          %v2512 = vmul.f32 %v2510, %v2510
          %v2513 = vmul.f32 %v2511, %v2511
          %2514 = vadd.xlane.f32.xlu0 %v2512
          %v2515 = vpop.xlane.xlu0 %2514
          %2516 = vadd.xlane.f32.xlu0 %v2513
          %v2517 = vpop.xlane.xlu0 %2516
          %v2518 = vmul.f32 %v2515, %v1388
          %v2519 = vmul.f32 %v2517, %v1388
          %v2520 = vadd.f32 %v2518, 1e-05
          %v2521 = vadd.f32 %v2519, 1e-05
          %v2522 = vrsqrt.pop %v2520
          %v2523 = vrsqrt.pop %v2521
          %v2524 = vmul.f32 %v2510, %v2522
          %v2525 = vmul.f32 %v2511, %v2523
          %v2527 = vlaneseq
          %v2528 = vshrl.u32 %v2527, 7
          %v2529 = vsub.s32 0, %v2528
          %v2530 = vrot.slane %v2502, %v2529
          %v2532 = vmul.f32 %v2524, %v2530
          %v2533 = vmul.f32 %v2525, %v2530
          %v2535 = vlaneseq
          %v2536 = vshrl.u32 %v2535, 7
          %v2537 = vsub.s32 0, %v2536
          %v2538 = vrot.slane %v2503, %v2537
          %v2540 = vadd.f32 %v2532, %v2538
          %v2541 = vadd.f32 %v2533, %v2538
          %v2542 = vpack.c.bf16 %v2541, %v2540
          %v2543 = vld [vmem:[%s999] sm:$0xff]
          %v2544 = vld [vmem:[%s999 + $0x8] sm:$0xff]
          %v2545 = vld [vmem:[%s999 + $0x10] sm:$0xff]
          %v2546 = vld [vmem:[%s999 + $0x18] sm:$0xff]
          %v2547 = vld [vmem:[%s999 + $0x20] sm:$0xff]
          %v2548 = vld [vmem:[%s999 + $0x28] sm:$0xff]
          %v2549 = vld [vmem:[%s999 + $0x30] sm:$0xff]
          %v2550 = vld [vmem:[%s999 + $0x38] sm:$0xff]
          %v2551 = vld [vmem:[%s999 + $0x40] sm:$0xff]
          %v2552 = vld [vmem:[%s999 + $0x48] sm:$0xff]
          %v2553 = vld [vmem:[%s999 + $0x50] sm:$0xff]
          %v2554 = vld [vmem:[%s999 + $0x58] sm:$0xff]
          %v2555 = vld [vmem:[%s999 + $0x60] sm:$0xff]
          %v2556 = vld [vmem:[%s999 + $0x68] sm:$0xff]
          %v2557 = vld [vmem:[%s999 + $0x70] sm:$0xff]
          %v2558 = vld [vmem:[%s999 + $0x78] sm:$0xff]
          %v2559 = vld [vmem:[%s1209] sm:$0x3]
          %v2561 = vlaneseq
          %v2562 = vshrl.u32 %v2561, 7
          %v2563 = vsub.s32 0, %v2562
          %v2564 = vrot.slane %v2559, %v2563
          %v2565 = vlaneseq
          %v2566 = vshrl.u32 %v2565, 7
          %v2567 = vsub.s32 1, %v2566
          %v2568 = vrot.slane %v2559, %v2567
          %v2587 = vunpack.c.l.b16 %v2543
          %v2588 = vunpack.c.h.b16 %v2543
          %v2589 = vunpack.c.l.b16 %v2544
          %v2590 = vunpack.c.h.b16 %v2544
          %v2591 = vunpack.c.l.b16 %v2545
          %v2592 = vunpack.c.h.b16 %v2545
          %v2593 = vunpack.c.l.b16 %v2546
          %v2594 = vunpack.c.h.b16 %v2546
          %v2595 = vunpack.c.l.b16 %v2547
          %v2596 = vunpack.c.h.b16 %v2547
          %v2597 = vunpack.c.l.b16 %v2548
          %v2598 = vunpack.c.h.b16 %v2548
          %v2599 = vunpack.c.l.b16 %v2549
          %v2600 = vunpack.c.h.b16 %v2549
          %v2601 = vunpack.c.l.b16 %v2550
          %v2602 = vunpack.c.h.b16 %v2550
          %v2603 = vunpack.c.l.b16 %v2551
          %v2604 = vunpack.c.h.b16 %v2551
          %v2605 = vunpack.c.l.b16 %v2552
          %v2606 = vunpack.c.h.b16 %v2552
          %v2607 = vunpack.c.l.b16 %v2553
          %v2608 = vunpack.c.h.b16 %v2553
          %v2609 = vunpack.c.l.b16 %v2554
          %v2610 = vunpack.c.h.b16 %v2554
          %v2611 = vunpack.c.l.b16 %v2555
          %v2612 = vunpack.c.h.b16 %v2555
          %v2613 = vunpack.c.l.b16 %v2556
          %v2614 = vunpack.c.h.b16 %v2556
          %v2615 = vunpack.c.l.b16 %v2557
          %v2616 = vunpack.c.h.b16 %v2557
          %v2617 = vunpack.c.l.b16 %v2558
          %v2618 = vunpack.c.h.b16 %v2558
          %v2619 = vpack.c.b16 %v2589, %v2587
          %v2620 = vpack.c.b16 %v2590, %v2588
          %v2621 = vpack.c.b16 %v2593, %v2591
          %v2622 = vpack.c.b16 %v2594, %v2592
          %v2623 = vpack.c.b16 %v2597, %v2595
          %v2624 = vpack.c.b16 %v2598, %v2596
          %v2625 = vpack.c.b16 %v2601, %v2599
          %v2626 = vpack.c.b16 %v2602, %v2600
          %v2627 = vpack.c.b16 %v2605, %v2603
          %v2628 = vpack.c.b16 %v2606, %v2604
          %v2629 = vpack.c.b16 %v2609, %v2607
          %v2630 = vpack.c.b16 %v2610, %v2608
          %v2631 = vpack.c.b16 %v2613, %v2611
          %v2632 = vpack.c.b16 %v2614, %v2612
          %v2633 = vpack.c.b16 %v2617, %v2615
          %v2634 = vpack.c.b16 %v2618, %v2616
          %2651 = vmatprep.subr.bf16.mxu0 %v2634
          %2652 = vmatpush1.bf16.msra.mxu0 %v2633
          %2653 = vmatprep.subr.bf16.mxu0 %v2632
          %2654 = vmatpush1.bf16.msra.mxu0 %v2631
          %2655 = vmatprep.subr.bf16.mxu0 %v2630
          %2656 = vmatpush1.bf16.msra.mxu0 %v2629
          %2657 = vmatprep.subr.bf16.mxu0 %v2628
          %2658 = vmatpush1.bf16.msra.mxu0 %v2627
          %2659 = vmatprep.subr.bf16.mxu0 %v2626
          %2660 = vmatpush1.bf16.msra.mxu0 %v2625
          %2661 = vmatprep.subr.bf16.mxu0 %v2624
          %2662 = vmatpush1.bf16.msra.mxu0 %v2623
          %2663 = vmatprep.subr.bf16.mxu0 %v2622
          %2664 = vmatpush1.bf16.msra.mxu0 %v2621
          %2665 = vmatprep.subr.bf16.mxu0 %v2620
          %2666 = vmatpush1.bf16.msra.mxu0 %v2619
          %2667 = vmatprep.subr.bf16.mxu0 0
          %2668 = vmatpush2.bf16.msra.mxu0 0
          %2669 = vmatprep.subr.bf16.mxu0 0
          %2670 = vmatpush2.bf16.msra.mxu0 0
          %2671 = vmatprep.subr.bf16.mxu0 0
          %2672 = vmatpush2.bf16.msra.mxu0 0
          %2673 = vmatprep.subr.bf16.mxu0 0
          %2674 = vmatpush2.bf16.msra.mxu0 0
          %2675 = vmatprep.subr.bf16.mxu0 0
          %2676 = vmatpush2.bf16.msra.mxu0 0
          %2677 = vmatprep.subr.bf16.mxu0 0
          %2678 = vmatpush2.bf16.msra.mxu0 0
          %2679 = vmatprep.subr.bf16.mxu0 0
          %2680 = vmatpush2.bf16.msra.mxu0 0
          %2681 = vmatprep.subr.bf16.mxu0 0
          %2682 = vmatpush2.bf16.msra.mxu0 0
          %2683 = vmatprep.mubr.bf16.mxu0 0
          %2684 = vmatmul.mubr.bf16.gmra.mxu0 %v2542
          %v2685 = vpop.f32.mrf.mxu0
          %v2686 = vadd.f32 %v2564, %v2685
          %v2687 = vpop.f32.mrf.mxu0
          %v2688 = vadd.f32 %v2568, %v2687
          %v2689 = vpop.f32.mrf.mxu0
          %v2690 = vadd.f32 %v2564, %v2689
          %v2691 = vpop.f32.mrf.mxu0
          %v2692 = vadd.f32 %v2568, %v2691
          %2693 = vdwg.mxu0
          %v2694 = vmul.f32 %v2686, 0.5
          %v2695 = vmul.f32 %v2688, 0.5
          %v2696 = vmul.f32 %v2690, 0.5
          %v2697 = vmul.f32 %v2692, 0.5
          %v2698 = vmul.f32 %v2686, 0.044715
          %v2699 = vmul.f32 %v2688, 0.044715
          %v2700 = vmul.f32 %v2690, 0.044715
          %v2701 = vmul.f32 %v2692, 0.044715
          %v2702 = vmul.f32 %v2698, %v2686
          %v2703 = vmul.f32 %v2699, %v2688
          %v2704 = vmul.f32 %v2700, %v2690
          %v2705 = vmul.f32 %v2701, %v2692
          %v2706 = vmul.f32 %v2702, %v2686
          %v2707 = vmul.f32 %v2703, %v2688
          %v2708 = vmul.f32 %v2704, %v2690
          %v2709 = vmul.f32 %v2705, %v2692
          %v2710 = vadd.f32 %v2686, %v2706
          %v2711 = vadd.f32 %v2688, %v2707
          %v2712 = vadd.f32 %v2690, %v2708
          %v2713 = vadd.f32 %v2692, %v2709
          %v2714 = vmul.f32 %v2710, 0.7978846
          %v2715 = vmul.f32 %v2711, 0.7978846
          %v2716 = vmul.f32 %v2712, 0.7978846
          %v2717 = vmul.f32 %v2713, 0.7978846
          %v2718 = vtanh.pop %v2714
          %v2719 = vtanh.pop %v2715
          %v2720 = vtanh.pop %v2716
          %v2721 = vtanh.pop %v2717
          %v2722 = vadd.f32 %v2718, 1.0
          %v2723 = vadd.f32 %v2719, 1.0
          %v2724 = vadd.f32 %v2720, 1.0
          %v2725 = vadd.f32 %v2721, 1.0
          %v2726 = vmul.f32 %v2694, %v2722
          %v2727 = vmul.f32 %v2695, %v2723
          %v2728 = vmul.f32 %v2696, %v2724
          %v2729 = vmul.f32 %v2697, %v2725
          %v2730 = vpack.c.bf16 %v2728, %v2726
          %v2731 = vpack.c.bf16 %v2729, %v2727
          %v2732 = vld [vmem:[%s1008] sm:$0xf]
          %v2733 = vld [vmem:[%s1008 + $0x4] sm:$0xf]
          %v2734 = vld [vmem:[%s1008 + $0x8] sm:$0xf]
          %v2735 = vld [vmem:[%s1008 + $0xc] sm:$0xf]
          %v2736 = vld [vmem:[%s1008 + $0x10] sm:$0xf]
          %v2737 = vld [vmem:[%s1008 + $0x14] sm:$0xf]
          %v2738 = vld [vmem:[%s1008 + $0x18] sm:$0xf]
          %v2739 = vld [vmem:[%s1008 + $0x1c] sm:$0xf]
          %v2740 = vld [vmem:[%s1008 + $0x20] sm:$0xf]
          %v2741 = vld [vmem:[%s1008 + $0x24] sm:$0xf]
          %v2742 = vld [vmem:[%s1008 + $0x28] sm:$0xf]
          %v2743 = vld [vmem:[%s1008 + $0x2c] sm:$0xf]
          %v2744 = vld [vmem:[%s1008 + $0x30] sm:$0xf]
          %v2745 = vld [vmem:[%s1008 + $0x34] sm:$0xf]
          %v2746 = vld [vmem:[%s1008 + $0x38] sm:$0xf]
          %v2747 = vld [vmem:[%s1008 + $0x3c] sm:$0xf]
          %v2748 = vld [vmem:[%s1008 + $0x40] sm:$0xf]
          %v2749 = vld [vmem:[%s1008 + $0x44] sm:$0xf]
          %v2750 = vld [vmem:[%s1008 + $0x48] sm:$0xf]
          %v2751 = vld [vmem:[%s1008 + $0x4c] sm:$0xf]
          %v2752 = vld [vmem:[%s1008 + $0x50] sm:$0xf]
          %v2753 = vld [vmem:[%s1008 + $0x54] sm:$0xf]
          %v2754 = vld [vmem:[%s1008 + $0x58] sm:$0xf]
          %v2755 = vld [vmem:[%s1008 + $0x5c] sm:$0xf]
          %v2756 = vld [vmem:[%s1008 + $0x60] sm:$0xf]
          %v2757 = vld [vmem:[%s1008 + $0x64] sm:$0xf]
          %v2758 = vld [vmem:[%s1008 + $0x68] sm:$0xf]
          %v2759 = vld [vmem:[%s1008 + $0x6c] sm:$0xf]
          %v2760 = vld [vmem:[%s1008 + $0x70] sm:$0xf]
          %v2761 = vld [vmem:[%s1008 + $0x74] sm:$0xf]
          %v2762 = vld [vmem:[%s1008 + $0x78] sm:$0xf]
          %v2763 = vld [vmem:[%s1008 + $0x7c] sm:$0xf]
          %v2764 = vld [vmem:[%s1221] sm:$0x1]
          %v2766 = vlaneseq
          %v2767 = vshrl.u32 %v2766, 7
          %v2768 = vsub.s32 0, %v2767
          %v2769 = vrot.slane %v2764, %v2768
          %v2803 = vunpack.c.l.b16 %v2732
          %v2804 = vunpack.c.l.b16 %v2733
          %v2805 = vunpack.c.l.b16 %v2734
          %v2806 = vunpack.c.l.b16 %v2735
          %v2807 = vunpack.c.l.b16 %v2736
          %v2808 = vunpack.c.l.b16 %v2737
          %v2809 = vunpack.c.l.b16 %v2738
          %v2810 = vunpack.c.l.b16 %v2739
          %v2811 = vunpack.c.l.b16 %v2740
          %v2812 = vunpack.c.l.b16 %v2741
          %v2813 = vunpack.c.l.b16 %v2742
          %v2814 = vunpack.c.l.b16 %v2743
          %v2815 = vunpack.c.l.b16 %v2744
          %v2816 = vunpack.c.l.b16 %v2745
          %v2817 = vunpack.c.l.b16 %v2746
          %v2818 = vunpack.c.l.b16 %v2747
          %v2819 = vunpack.c.l.b16 %v2748
          %v2820 = vunpack.c.l.b16 %v2749
          %v2821 = vunpack.c.l.b16 %v2750
          %v2822 = vunpack.c.l.b16 %v2751
          %v2823 = vunpack.c.l.b16 %v2752
          %v2824 = vunpack.c.l.b16 %v2753
          %v2825 = vunpack.c.l.b16 %v2754
          %v2826 = vunpack.c.l.b16 %v2755
          %v2827 = vunpack.c.l.b16 %v2756
          %v2828 = vunpack.c.l.b16 %v2757
          %v2829 = vunpack.c.l.b16 %v2758
          %v2830 = vunpack.c.l.b16 %v2759
          %v2831 = vunpack.c.l.b16 %v2760
          %v2832 = vunpack.c.l.b16 %v2761
          %v2833 = vunpack.c.l.b16 %v2762
          %v2834 = vunpack.c.l.b16 %v2763
          %v2835 = vpack.c.b16 %v2804, %v2803
          %v2836 = vpack.c.b16 %v2806, %v2805
          %v2837 = vpack.c.b16 %v2808, %v2807
          %v2838 = vpack.c.b16 %v2810, %v2809
          %v2839 = vpack.c.b16 %v2812, %v2811
          %v2840 = vpack.c.b16 %v2814, %v2813
          %v2841 = vpack.c.b16 %v2816, %v2815
          %v2842 = vpack.c.b16 %v2818, %v2817
          %v2843 = vpack.c.b16 %v2820, %v2819
          %v2844 = vpack.c.b16 %v2822, %v2821
          %v2845 = vpack.c.b16 %v2824, %v2823
          %v2846 = vpack.c.b16 %v2826, %v2825
          %v2847 = vpack.c.b16 %v2828, %v2827
          %v2848 = vpack.c.b16 %v2830, %v2829
          %v2849 = vpack.c.b16 %v2832, %v2831
          %v2850 = vpack.c.b16 %v2834, %v2833
          %2867 = vmatprep.subr.bf16.mxu0 0
          %2868 = vmatpush1.bf16.msra.mxu0 %v2842
          %2869 = vmatprep.subr.bf16.mxu0 0
          %2870 = vmatpush1.bf16.msra.mxu0 %v2841
          %2871 = vmatprep.subr.bf16.mxu0 0
          %2872 = vmatpush1.bf16.msra.mxu0 %v2840
          %2873 = vmatprep.subr.bf16.mxu0 0
          %2874 = vmatpush1.bf16.msra.mxu0 %v2839
          %2875 = vmatprep.subr.bf16.mxu0 0
          %2876 = vmatpush1.bf16.msra.mxu0 %v2838
          %2877 = vmatprep.subr.bf16.mxu0 0
          %2878 = vmatpush1.bf16.msra.mxu0 %v2837
          %2879 = vmatprep.subr.bf16.mxu0 0
          %2880 = vmatpush1.bf16.msra.mxu0 %v2836
          %2881 = vmatprep.subr.bf16.mxu0 0
          %2882 = vmatpush1.bf16.msra.mxu0 %v2835
          %2883 = vmatprep.subr.bf16.mxu0 0
          %2884 = vmatpush2.bf16.msra.mxu0 %v2850
          %2885 = vmatprep.subr.bf16.mxu0 0
          %2886 = vmatpush2.bf16.msra.mxu0 %v2849
          %2887 = vmatprep.subr.bf16.mxu0 0
          %2888 = vmatpush2.bf16.msra.mxu0 %v2848
          %2889 = vmatprep.subr.bf16.mxu0 0
          %2890 = vmatpush2.bf16.msra.mxu0 %v2847
          %2891 = vmatprep.subr.bf16.mxu0 0
          %2892 = vmatpush2.bf16.msra.mxu0 %v2846
          %2893 = vmatprep.subr.bf16.mxu0 0
          %2894 = vmatpush2.bf16.msra.mxu0 %v2845
          %2895 = vmatprep.subr.bf16.mxu0 0
          %2896 = vmatpush2.bf16.msra.mxu0 %v2844
          %2897 = vmatprep.subr.bf16.mxu0 0
          %2898 = vmatpush2.bf16.msra.mxu0 %v2843
          %2899 = vmatprep.mubr.bf16.mxu0 %v2731
          %2900 = vmatmul.mubr.bf16.gmra.mxu0 %v2730
          %v2901 = vpop.f32.mrf.mxu0
          %v2902 = vadd.f32 %v2769, %v2901
          %v2903 = vpop.f32.mrf.mxu0
          %v2904 = vpop.f32.mrf.mxu0
          %v2905 = vadd.f32 %v2769, %v2904
          %v2906 = vpop.f32.mrf.mxu0
          %2907 = vdwg.mxu0
          %v2908 = vadd.f32 %v2500, %v2902
          %v2909 = vadd.f32 %v2501, %v2905
          %2910 = vst [vmem:[%s1379] sm:$0xff] %v2908
          %2911 = vst [vmem:[%s1379 + $0x8] sm:$0xff] %v2909
          %2912 = vst [vmem:[%s1138] sm:$0xff] %v2908
          %2913 = vst [vmem:[%s1138 + $0x8] sm:$0xff] %v2909
        $region148: #{tpu_custom_call.1} parent=95 // pred_fallthru
          _
        %s2914 = sand.u32 %s611, 1
        %s2915 = scalar_lea.sflag [#allocation7], %s2914
        %s2916 = sand.u32 %s611, 1
        %s2917 = smul.addr %s2916, 16
        %s2918 = scalar_lea.vmem [#allocation24], %s2917
        // Predicated region
        $region149: #{tpu_custom_call.1} parent=95 // pred_check
          %p2919 = pneg %p621
        $region150: #{tpu_custom_call.1} parent=95 // pred_check_branch
          %2921 = sbr.rel (%p2919) target = $region152
        $region151: #{tpu_custom_call.1} parent=95 // pred_region
          %s2923 = ssub.s32 256, 256
          %2924 = vsyncadd %s2915, %s2923
          %s2925 = smul.addr %s53, 2
          %s2926 = smul.addr %s52, 4
          %s2927 = sadd.s32 %s2925, %s2926
          %s2928 = smul.addr %s2927, 128
          %s2929 = scalar_lea.hbm %s19, %s2928
          %s2930 = sshll.u32 %s2918, 4
          %s2931 = int_to_ptr.vmem [resolvable:$true] %s2930
          %2936 = dma.vmem_to_hbm [thread:$0]  %s2931, 256, %s2929, %s2915, 128, 128, 8
        $region152: #{tpu_custom_call.1} parent=95 // pred_fallthru
          _
      $region96: #{tpu_custom_call.1} parent=5 // pred_fallthru
        _
      %p2937 = scmp.le.s32.totalorder 2, %s43
      // Predicated region
      $region153: #{tpu_custom_call.1} parent=5 // pred_check
        %p2938 = pneg %p2937
      $region154: #{tpu_custom_call.1} parent=5 // pred_check_branch
        %2940 = sbr.rel (%p2938) target = $region156
      $region155: #{tpu_custom_call.1} parent=5 // pred_region
        %s2941 = ssub.s32 %s43, 2
        // Predicated region
        $region157: #{tpu_custom_call.1} parent=155 // pred_check
          %p2942 = pneg %p627
        $region158: #{tpu_custom_call.1} parent=155 // pred_check_branch
          %2944 = sbr.rel (%p2942) target = $region160
        $region159: #{tpu_custom_call.1} parent=155 // pred_region
          %s2945 = sand.u32 %s612, 1
          %s2946 = scalar_lea.sflag [#allocation7], %s2945
          %s2947 = sand.u32 %s612, 1
          %s2948 = smul.addr %s2947, 16
          %s2949 = scalar_lea.vmem [#allocation24], %s2948
          %2950 = dma.done %s2946, 256
        $region160: #{tpu_custom_call.1} parent=155 // pred_fallthru
          _
      $region156: #{tpu_custom_call.1} parent=5 // pred_fallthru
        _
    $region6: #{tpu_custom_call.1} parent=1 // loop_footer
      %s47 = sadd.s32 1, %s43
    $region7: #{tpu_custom_call.1} parent=1 // loop_footer_branch
      %42 = sbr.rel target = $region3
    $region8: #{tpu_custom_call.1} parent=1 // loop_exit
      _
    %2951 = vsyncpa [#allocation6], 1
    %s2952 = scalar_lea.sflag [#allocation6], 1
    %2953 = vsyncpa %s2952, 1
    %2954 = vsyncpa [#allocation10], 1
    %s2955 = scalar_lea.sflag [#allocation10], 1
    %2956 = vsyncpa %s2955, 1
    %2957 = vsyncpa [#allocation13], 1
    %2958 = vsyncpa [#allocation19], 1
    %s2959 = scalar_lea.sflag [#allocation19], 1
    %2960 = vsyncpa %s2959, 1
    %2961 = vsyncpa [#allocation22], 1
    %s2962 = scalar_lea.sflag [#allocation22], 1
    %2963 = vsyncpa %s2962, 1
    %2964 = vsyncpa [#allocation7], 1
    %s2965 = scalar_lea.sflag [#allocation7], 1
    %2966 = vsyncpa %s2965, 1
    %2967 = vsyncpa [#allocation8], 1
    %s2968 = scalar_lea.sflag [#allocation8], 1
    %2969 = vsyncpa %s2968, 1
    %2970 = vsyncpa [#allocation17], 1

</llo_original>
